<compile_context>
chip_gen: v5e
topology: v5e:2x2
jax: 0.10.0
libtpu: 0.0.40
codegen_flags: <defaults>
</compile_context>

<pallas_src>
import functools

import jax
import jax.numpy as jnp
from jax import lax
from jax.experimental import pallas as pl
from jax.experimental.pallas import tpu as pltpu

EPS = 1e-5
_HIGHEST = lax.Precision.HIGHEST


# --------------------------------------------------------------------------- #
# wrapper-side constant building (plain JAX, runs once)
# --------------------------------------------------------------------------- #
def _conv_bands(w_rs, L):
    """Band matrices that turn a 'same' conv into matmuls over the output column axis.

    w_rs: (2, K, K) with w_rs[ch, r, s]; r = shift along the output ROW axis (handled by
          sublane-offset slices of the row-padded pooled scratch), s = shift along the
          output COLUMN axis (length L, folded in here).
    Returns (2, K, L, L) with bands[ch, r, l + s - P, l] = w_rs[ch, r, s]; entries that
    fall outside [0, L) are dropped, which implements the zero column padding.
    """
    K = w_rs.shape[-1]
    P = (K - 1) // 2
    shifts = jnp.stack(
        [jnp.eye(L, k=P - s, dtype=jnp.float32) for s in range(K)])      # (K, L, L)
    return jnp.einsum('crs,sab->crab', w_rs.astype(jnp.float32), shifts)  # (2, K, L, L)


def _fold_bn(w, bn, mean_len):
    """Fold eval-mode BatchNorm2d(1) and the ZPool mean factor into the conv weight."""
    gamma, beta, rmean, rvar = (jnp.asarray(v, jnp.float32) for v in bn)
    scale = gamma / jnp.sqrt(rvar + EPS)
    shift = beta - rmean * scale
    w_eff = w.astype(jnp.float32) * scale
    w_eff = w_eff.at[1].divide(jnp.float32(mean_len))   # mean channel of ZPool -> sum/len
    return w_eff, shift


def _channel_tile(C, HW, budget_bytes=2 * 1024 * 1024):
    """Channel tile that divides C; tiles smaller than C stay multiples of 8."""
    if C * HW * 4 <= budget_bytes or C % 8 != 0:
        return C
    ct = C
    while ct % 2 == 0 and (ct // 2) % 8 == 0 and ct * HW * 4 > budget_bytes:
        ct //= 2
    return ct


# --------------------------------------------------------------------------- #
# kernel 1: fused ZPool + banded-matmul conv  ->  attention maps
# --------------------------------------------------------------------------- #
def _gate_kernel(x_ref, band_cw_ref, band_hc_ref, shift_ref,
                 gcw_ref, ghc_ref,
                 pcw_max, pcw_sum, phc_max, phc_sum,
                 *, C, H, W, ct, n_ct):
    ci = pl.program_id(1)

    # Zero only the halo rows, once per batch element; the interior rows are fully
    # overwritten by the per-tile stores below (no full-scratch clears).
    @pl.when(ci == 0)
    def _init():
        for ref, p in ((pcw_max, 3), (pcw_sum, 3), (phc_max, 2), (phc_sum, 2)):
            z = jnp.zeros((p, ref.shape[1]), jnp.float32)
            ref[0:p, :] = z
            ref[p + C:, :] = z

    x = x_ref[0]                      # (ct, H, W), read once; feeds both branches

    # Fused ZPool for both branches in one pass over the tile.
    pmax = jnp.max(x, axis=2)         # (ct, H)  cw: max over W
    psum = jnp.sum(x, axis=2)         # (ct, H)  cw: sum over W (1/W folded into bands)
    qmax = jnp.max(x, axis=1)         # (ct, W)  hc: max over H
    qsum = jnp.sum(x, axis=1)         # (ct, W)  hc: sum over H (1/H folded into bands)

    if n_ct == 1:
        off = 0                                   # static fast path
    else:
        off = pl.multiple_of(ci * ct, ct)
    pcw_max[pl.ds(3 + off, ct), :] = pmax
    pcw_sum[pl.ds(3 + off, ct), :] = psum
    phc_max[pl.ds(2 + off, ct), :] = qmax
    phc_sum[pl.ds(2 + off, ct), :] = qsum

    # On the last channel tile, evaluate both "same" convs as banded MXU matmuls and
    # emit the BN-folded attention maps (scale already in the bands, shift added here).
    @pl.when(ci == n_ct - 1)
    def _finish():
        acc_cw = jnp.zeros((C, H), jnp.float32)
        for r in range(7):
            acc_cw = acc_cw + jnp.dot(
                pcw_max[r:r + C, :], band_cw_ref[r, :, :],
                preferred_element_type=jnp.float32, precision=_HIGHEST)
            acc_cw = acc_cw + jnp.dot(
                pcw_sum[r:r + C, :], band_cw_ref[7 + r, :, :],
                preferred_element_type=jnp.float32, precision=_HIGHEST)
        acc_hc = jnp.zeros((C, W), jnp.float32)
        for r in range(5):
            acc_hc = acc_hc + jnp.dot(
                phc_max[r:r + C, :], band_hc_ref[r, :, :],
                preferred_element_type=jnp.float32, precision=_HIGHEST)
            acc_hc = acc_hc + jnp.dot(
                phc_sum[r:r + C, :], band_hc_ref[5 + r, :, :],
                preferred_element_type=jnp.float32, precision=_HIGHEST)
        gcw_ref[0] = acc_cw + shift_ref[0]        # (C, H)
        ghc_ref[0] = acc_hc + shift_ref[1]        # (C, W)


# --------------------------------------------------------------------------- #
# kernel 2: lane-dense elementwise apply, x factored out of the branch sum
# --------------------------------------------------------------------------- #
def _apply_kernel(x_ref, gcw_ref, ghc_ref, ecw_ref, ehc_ref, out_ref):
    # Expand g_cw[c, h] + g_hc[c, w] to the lane-dense (ct, H*W) layout with two 0/1
    # MXU matmuls, then apply the gate with a single VPU multiply.
    gate = jnp.dot(gcw_ref[0], ecw_ref[...],
                   preferred_element_type=jnp.float32, precision=_HIGHEST)
    gate = gate + jnp.dot(ghc_ref[0], ehc_ref[...],
                          preferred_element_type=jnp.float32, precision=_HIGHEST)
    out_ref[0] = x_ref[0] * gate


# --------------------------------------------------------------------------- #
# wrapper
# --------------------------------------------------------------------------- #
def triplet_attention(x, w_cw, w_hc, bn_cw, bn_hc):
    """TripletAttention forward (no_spatial=False path).

    x:     (N, C, H, W) float32
    w_cw:  (2, 7, 7) conv weight of the cw gate (PyTorch weight[0])
    w_hc:  (2, 5, 5) conv weight of the hc gate
    bn_*:  (gamma, beta, running_mean, running_var) eval-mode BatchNorm2d(1) params
    """
    N, C, H, W = x.shape
    HW = H * W

    w_cw_eff, shift_cw = _fold_bn(w_cw, bn_cw, W)
    w_hc_eff, shift_hc = _fold_bn(w_hc, bn_hc, H)

    # cw gate: output rows = C (shift = 2nd spatial weight index), cols = H (1st index).
    band_cw = _conv_bands(jnp.swapaxes(w_cw_eff, 1, 2), H).reshape(2 * 7, H, H)
    # hc gate: output rows = C (shift = 1st spatial weight index), cols = W (2nd index).
    band_hc = _conv_bands(w_hc_eff, W).reshape(2 * 5, W, W)
    shifts = jnp.stack([shift_cw, shift_hc]).astype(jnp.float32)

    ct = _channel_tile(C, HW)
    n_ct = C // ct

    gate_kernel = functools.partial(_gate_kernel, C=C, H=H, W=W, ct=ct, n_ct=n_ct)
    g_cw, g_hc = pl.pallas_call(
        gate_kernel,
        out_shape=(jax.ShapeDtypeStruct((N, C, H), jnp.float32),
                   jax.ShapeDtypeStruct((N, C, W), jnp.float32)),
        grid_spec=pltpu.PrefetchScalarGridSpec(
            num_scalar_prefetch=0,
            grid=(N, n_ct),
            in_specs=[
                pl.BlockSpec((1, ct, H, W), lambda n, i: (n, i, 0, 0)),
                pl.BlockSpec((2 * 7, H, H), lambda n, i: (0, 0, 0)),
                pl.BlockSpec((2 * 5, W, W), lambda n, i: (0, 0, 0)),
                pl.BlockSpec(memory_space=pltpu.MemorySpace.SMEM),
            ],
            out_specs=(
                pl.BlockSpec((1, C, H), lambda n, i: (n, 0, 0)),
                pl.BlockSpec((1, C, W), lambda n, i: (n, 0, 0)),
            ),
            scratch_shapes=[
                pltpu.VMEM((C + 6, H), jnp.float32),   # cw pooled max, row-padded halo
                pltpu.VMEM((C + 6, H), jnp.float32),   # cw pooled sum
                pltpu.VMEM((C + 4, W), jnp.float32),   # hc pooled max
                pltpu.VMEM((C + 4, W), jnp.float32),   # hc pooled sum
            ],
        ),
        compiler_params=pltpu.CompilerParams(
            dimension_semantics=("parallel", "arbitrary")),
    )(x, band_cw, band_hc, shifts)

    # Lane-dense apply on the flattened (N, C, H*W) view of x.
    e_cw = jnp.repeat(jnp.eye(H, dtype=jnp.float32), W, axis=1)   # (H, H*W)
    e_hc = jnp.tile(jnp.eye(W, dtype=jnp.float32), (1, H))        # (W, H*W)
    x_flat = x.reshape(N, C, HW)

    out_flat = pl.pallas_call(
        _apply_kernel,
        out_shape=jax.ShapeDtypeStruct((N, C, HW), jnp.float32),
        grid_spec=pltpu.PrefetchScalarGridSpec(
            num_scalar_prefetch=0,
            grid=(N, n_ct),
            in_specs=[
                pl.BlockSpec((1, ct, HW), lambda n, i: (n, i, 0)),
                pl.BlockSpec((1, ct, H), lambda n, i: (n, i, 0)),
                pl.BlockSpec((1, ct, W), lambda n, i: (n, i, 0)),
                pl.BlockSpec((H, HW), lambda n, i: (0, 0)),
                pl.BlockSpec((W, HW), lambda n, i: (0, 0)),
            ],
            out_specs=pl.BlockSpec((1, ct, HW), lambda n, i: (n, i, 0)),
        ),
        compiler_params=pltpu.CompilerParams(
            dimension_semantics=("parallel", "parallel")),
    )(x_flat, g_cw, g_hc, e_cw, e_hc)
    return out_flat.reshape(N, C, H, W)


# --------------------------------------------------------------------------- #
# pure-JAX reference mirroring the PyTorch forward (eval-mode BN)
# --------------------------------------------------------------------------- #
def _reference(x, w_cw, w_hc, bn_cw, bn_hc):
    def gate(xp, wgt, bn):
        gamma, beta, rmean, rvar = bn
        pool = jnp.stack([jnp.max(xp, axis=1), jnp.mean(xp, axis=1)], axis=1)
        k = wgt.shape[-1]
        pad = (k - 1) // 2
        conv = lax.conv_general_dilated(
            pool, wgt[None].astype(jnp.float32), window_strides=(1, 1),
            padding=((pad, pad), (pad, pad)),
            dimension_numbers=("NCHW", "OIHW", "NCHW"),
            precision=_HIGHEST)
        att = (conv - rmean) * (gamma / jnp.sqrt(rvar + EPS)) + beta
        return xp * att

    x_cw = jnp.transpose(x, (0, 3, 2, 1))
    out1 = jnp.transpose(gate(x_cw, w_cw, bn_cw), (0, 3, 2, 1))
    x_hc = jnp.transpose(x, (0, 2, 1, 3))
    out2 = jnp.transpose(gate(x_hc, w_hc, bn_hc), (0, 2, 1, 3))
    return out1 + out2


if __name__ == "__main__":
    key = jax.random.PRNGKey(0)
    kx, kw1, kw2 = jax.random.split(key, 3)

    N, C, H, W = 2, 4, 16, 16
    x = jax.random.normal(kx, (N, C, H, W), jnp.float32)

    # Conv weights of the two gates (PyTorch shapes (1,2,7,7) / (1,2,5,5), squeezed).
    w_cw = jax.random.normal(kw1, (2, 7, 7), jnp.float32) * 0.1
    w_hc = jax.random.normal(kw2, (2, 5, 5), jnp.float32) * 0.1

    # Eval-mode BatchNorm2d(1) params at PyTorch deterministic init: (gamma, beta, mean, var).
    # TODO(synk): training-mode batch statistics are not reproduced; eval-mode BN is
    # folded into the conv band matrices and shift terms.
    bn_cw = (1.0, 0.0, 0.0, 1.0)
    bn_hc = (1.0, 0.0, 0.0, 1.0)

    out = jax.block_until_ready(triplet_attention(x, w_cw, w_hc, bn_cw, bn_hc))
    ref = _reference(x, w_cw, w_hc, bn_cw, bn_hc)

    assert out.shape == (N, C, H, W) and out.dtype == jnp.float32
    max_err = float(jnp.max(jnp.abs(out - ref)))
    assert max_err < 1e-3, f"max abs error {max_err}"
    print("KERNEL_OK")
</pallas_src>

<mosaic_0001>
module attributes {stable_mosaic.version = 11 : i64} {
  func.func @_gate_kernel(%arg0: i32, %arg1: i32, %arg2: memref<1x4x16x16xf32, #tpu.memory_space<vmem>>, %arg3: memref<14x16x16xf32, #tpu.memory_space<vmem>>, %arg4: memref<10x16x16xf32, #tpu.memory_space<vmem>>, %arg5: memref<2xf32, #tpu.memory_space<smem>>, %arg6: memref<1x4x16xf32, #tpu.memory_space<vmem>>, %arg7: memref<1x4x16xf32, #tpu.memory_space<vmem>>, %arg8: memref<10x16xf32, #tpu.memory_space<vmem>>, %arg9: memref<10x16xf32, #tpu.memory_space<vmem>>, %arg10: memref<8x16xf32, #tpu.memory_space<vmem>>, %arg11: memref<8x16xf32, #tpu.memory_space<vmem>>) attributes {dimension_semantics = [#tpu.dimension_semantics<parallel>, #tpu.dimension_semantics<arbitrary>], iteration_bounds = array<i64: 2, 1>, scalar_prefetch = 0 : i64, scratch_operands = 4 : i64, tpu.core_type = #tpu.core_type<tc>, window_params = [{transform_indices = @transform_0, window_bounds = array<i64: 1, 4, 16, 16>}, {pipeline_mode = #tpu.pipeline_mode<synchronous>, transform_indices = @transform_1, window_bounds = array<i64: 14, 16, 16>}, {pipeline_mode = #tpu.pipeline_mode<synchronous>, transform_indices = @transform_2, window_bounds = array<i64: 10, 16, 16>}, {transform_indices = @transform_3, window_bounds = array<i64: 2>}, {transform_indices = @transform_4, window_bounds = array<i64: 1, 4, 16>}, {transform_indices = @transform_5, window_bounds = array<i64: 1, 4, 16>}]} {
    %c0_i32 = arith.constant 0 : i32
    %0 = arith.cmpi eq, %arg1, %c0_i32 : i32
    %1 = arith.extui %0 : i1 to i32
    %c0_i32_0 = arith.constant 0 : i32
    %2 = arith.cmpi ne, %1, %c0_i32_0 : i32
    scf.if %2 {
      %cst_15 = arith.constant 0.000000e+00 : f32
      %16 = vector.broadcast %cst_15 : f32 to vector<3x16xf32>
      %c0_16 = arith.constant 0 : index
      %c0_17 = arith.constant 0 : index
      %17 = vector.load %arg8[%c0_16, %c0_17] : memref<10x16xf32, #tpu.memory_space<vmem>>, vector<3x16xf32>
      tpu.vector_store %arg8[%c0_16, %c0_17], %16 {strides = array<i32>} : memref<10x16xf32, #tpu.memory_space<vmem>>, vector<3x16xf32>,
      %c7 = arith.constant 7 : index
      %c0_18 = arith.constant 0 : index
      %18 = vector.load %arg8[%c7, %c0_18] : memref<10x16xf32, #tpu.memory_space<vmem>>, vector<3x16xf32>
      tpu.vector_store %arg8[%c7, %c0_18], %16 {strides = array<i32>} : memref<10x16xf32, #tpu.memory_space<vmem>>, vector<3x16xf32>,
      %cst_19 = arith.constant 0.000000e+00 : f32
      %19 = vector.broadcast %cst_19 : f32 to vector<3x16xf32>
      %c0_20 = arith.constant 0 : index
      %c0_21 = arith.constant 0 : index
      %20 = vector.load %arg9[%c0_20, %c0_21] : memref<10x16xf32, #tpu.memory_space<vmem>>, vector<3x16xf32>
      tpu.vector_store %arg9[%c0_20, %c0_21], %19 {strides = array<i32>} : memref<10x16xf32, #tpu.memory_space<vmem>>, vector<3x16xf32>,
      %c7_22 = arith.constant 7 : index
      %c0_23 = arith.constant 0 : index
      %21 = vector.load %arg9[%c7_22, %c0_23] : memref<10x16xf32, #tpu.memory_space<vmem>>, vector<3x16xf32>
      tpu.vector_store %arg9[%c7_22, %c0_23], %19 {strides = array<i32>} : memref<10x16xf32, #tpu.memory_space<vmem>>, vector<3x16xf32>,
      %cst_24 = arith.constant 0.000000e+00 : f32
      %22 = vector.broadcast %cst_24 : f32 to vector<2x16xf32>
      %c0_25 = arith.constant 0 : index
      %c0_26 = arith.constant 0 : index
      %23 = vector.load %arg10[%c0_25, %c0_26] : memref<8x16xf32, #tpu.memory_space<vmem>>, vector<2x16xf32>
      tpu.vector_store %arg10[%c0_25, %c0_26], %22 {strides = array<i32>} : memref<8x16xf32, #tpu.memory_space<vmem>>, vector<2x16xf32>,
      %c6 = arith.constant 6 : index
      %c0_27 = arith.constant 0 : index
      %24 = vector.load %arg10[%c6, %c0_27] : memref<8x16xf32, #tpu.memory_space<vmem>>, vector<2x16xf32>
      tpu.vector_store %arg10[%c6, %c0_27], %22 {strides = array<i32>} : memref<8x16xf32, #tpu.memory_space<vmem>>, vector<2x16xf32>,
      %cst_28 = arith.constant 0.000000e+00 : f32
      %25 = vector.broadcast %cst_28 : f32 to vector<2x16xf32>
      %c0_29 = arith.constant 0 : index
      %c0_30 = arith.constant 0 : index
      %26 = vector.load %arg11[%c0_29, %c0_30] : memref<8x16xf32, #tpu.memory_space<vmem>>, vector<2x16xf32>
      tpu.vector_store %arg11[%c0_29, %c0_30], %25 {strides = array<i32>} : memref<8x16xf32, #tpu.memory_space<vmem>>, vector<2x16xf32>,
      %c6_31 = arith.constant 6 : index
      %c0_32 = arith.constant 0 : index
      %27 = vector.load %arg11[%c6_31, %c0_32] : memref<8x16xf32, #tpu.memory_space<vmem>>, vector<2x16xf32>
      tpu.vector_store %arg11[%c6_31, %c0_32], %25 {strides = array<i32>} : memref<8x16xf32, #tpu.memory_space<vmem>>, vector<2x16xf32>,
    } else {
    }
    %c0 = arith.constant 0 : index
    %c0_1 = arith.constant 0 : index
    %c0_2 = arith.constant 0 : index
    %c0_3 = arith.constant 0 : index
    %3 = vector.load %arg2[%c0, %c0_1, %c0_2, %c0_3] : memref<1x4x16x16xf32, #tpu.memory_space<vmem>>, vector<1x4x16x16xf32>
    %4 = vector.shape_cast %3 : vector<1x4x16x16xf32> to vector<4x16x16xf32>
    %cst = arith.constant dense<0xFF800000> : vector<4x16xf32>
    %5 = vector.multi_reduction <maximumf>, %4, %cst [2] : vector<4x16x16xf32> to vector<4x16xf32>
    %cst_4 = arith.constant dense<0.000000e+00> : vector<4x16xf32>
    %6 = vector.multi_reduction <add>, %4, %cst_4 [2] : vector<4x16x16xf32> to vector<4x16xf32>
    %cst_5 = arith.constant dense<0xFF800000> : vector<4x16xf32>
    %7 = vector.multi_reduction <maximumf>, %4, %cst_5 [1] : vector<4x16x16xf32> to vector<4x16xf32>
    %cst_6 = arith.constant dense<0.000000e+00> : vector<4x16xf32>
    %8 = vector.multi_reduction <add>, %4, %cst_6 [1] : vector<4x16x16xf32> to vector<4x16xf32>
    %c3 = arith.constant 3 : index
    %c0_7 = arith.constant 0 : index
    %9 = vector.load %arg8[%c3, %c0_7] : memref<10x16xf32, #tpu.memory_space<vmem>>, vector<4x16xf32>
    tpu.vector_store %arg8[%c3, %c0_7], %5 {strides = array<i32>} : memref<10x16xf32, #tpu.memory_space<vmem>>, vector<4x16xf32>,
    %c3_8 = arith.constant 3 : index
    %c0_9 = arith.constant 0 : index
    %10 = vector.load %arg9[%c3_8, %c0_9] : memref<10x16xf32, #tpu.memory_space<vmem>>, vector<4x16xf32>
    tpu.vector_store %arg9[%c3_8, %c0_9], %6 {strides = array<i32>} : memref<10x16xf32, #tpu.memory_space<vmem>>, vector<4x16xf32>,
    %c2 = arith.constant 2 : index
    %c0_10 = arith.constant 0 : index
    %11 = vector.load %arg10[%c2, %c0_10] : memref<8x16xf32, #tpu.memory_space<vmem>>, vector<4x16xf32>
    tpu.vector_store %arg10[%c2, %c0_10], %7 {strides = array<i32>} : memref<8x16xf32, #tpu.memory_space<vmem>>, vector<4x16xf32>,
    %c2_11 = arith.constant 2 : index
    %c0_12 = arith.constant 0 : index
    %12 = vector.load %arg11[%c2_11, %c0_12] : memref<8x16xf32, #tpu.memory_space<vmem>>, vector<4x16xf32>
    tpu.vector_store %arg11[%c2_11, %c0_12], %8 {strides = array<i32>} : memref<8x16xf32, #tpu.memory_space<vmem>>, vector<4x16xf32>,
    %c0_i32_13 = arith.constant 0 : i32
    %13 = arith.cmpi eq, %arg1, %c0_i32_13 : i32
    %14 = arith.extui %13 : i1 to i32
    %c0_i32_14 = arith.constant 0 : i32
    %15 = arith.cmpi ne, %14, %c0_i32_14 : i32
    scf.if %15 {
      %cst_15 = arith.constant 0.000000e+00 : f32
      %16 = vector.broadcast %cst_15 : f32 to vector<4x16xf32>
      %c0_16 = arith.constant 0 : index
      %c0_17 = arith.constant 0 : index
      %17 = vector.load %arg8[%c0_16, %c0_17] : memref<10x16xf32, #tpu.memory_space<vmem>>, vector<4x16xf32>
      %c0_18 = arith.constant 0 : index
      %c0_19 = arith.constant 0 : index
      %c0_20 = arith.constant 0 : index
      %18 = vector.load %arg3[%c0_18, %c0_19, %c0_20] : memref<14x16x16xf32, #tpu.memory_space<vmem>>, vector<1x16x16xf32>
      %19 = vector.shape_cast %18 : vector<1x16x16xf32> to vector<16x16xf32>
      %cst_21 = arith.constant dense<0.000000e+00> : vector<4x16xf32>
      %20 = tpu.matmul %17, %19, %cst_21 {dimension_numbers = #tpu.dot_dimension_numbers<[1], [0], [0], [1], [0, 0, 1, 1], [], []>, precision = #tpu.contract_precision<fp32>} : vector<4x16xf32>, vector<16x16xf32>, vector<4x16xf32> -> vector<4x16xf32>
      %21 = arith.addf %16, %20 : vector<4x16xf32>
      %c0_22 = arith.constant 0 : index
      %c0_23 = arith.constant 0 : index
      %22 = vector.load %arg9[%c0_22, %c0_23] : memref<10x16xf32, #tpu.memory_space<vmem>>, vector<4x16xf32>
      %c7 = arith.constant 7 : index
      %c0_24 = arith.constant 0 : index
      %c0_25 = arith.constant 0 : index
      %23 = vector.load %arg3[%c7, %c0_24, %c0_25] : memref<14x16x16xf32, #tpu.memory_space<vmem>>, vector<1x16x16xf32>
      %24 = vector.shape_cast %23 : vector<1x16x16xf32> to vector<16x16xf32>
      %cst_26 = arith.constant dense<0.000000e+00> : vector<4x16xf32>
      %25 = tpu.matmul %22, %24, %cst_26 {dimension_numbers = #tpu.dot_dimension_numbers<[1], [0], [0], [1], [0, 0, 1, 1], [], []>, precision = #tpu.contract_precision<fp32>} : vector<4x16xf32>, vector<16x16xf32>, vector<4x16xf32> -> vector<4x16xf32>
      %26 = arith.addf %21, %25 : vector<4x16xf32>
      %c1 = arith.constant 1 : index
      %c0_27 = arith.constant 0 : index
      %27 = vector.load %arg8[%c1, %c0_27] : memref<10x16xf32, #tpu.memory_space<vmem>>, vector<4x16xf32>
      %c1_28 = arith.constant 1 : index
      %c0_29 = arith.constant 0 : index
      %c0_30 = arith.constant 0 : index
      %28 = vector.load %arg3[%c1_28, %c0_29, %c0_30] : memref<14x16x16xf32, #tpu.memory_space<vmem>>, vector<1x16x16xf32>
      %29 = vector.shape_cast %28 : vector<1x16x16xf32> to vector<16x16xf32>
      %cst_31 = arith.constant dense<0.000000e+00> : vector<4x16xf32>
      %30 = tpu.matmul %27, %29, %cst_31 {dimension_numbers = #tpu.dot_dimension_numbers<[1], [0], [0], [1], [0, 0, 1, 1], [], []>, precision = #tpu.contract_precision<fp32>} : vector<4x16xf32>, vector<16x16xf32>, vector<4x16xf32> -> vector<4x16xf32>
      %31 = arith.addf %26, %30 : vector<4x16xf32>
      %c1_32 = arith.constant 1 : index
      %c0_33 = arith.constant 0 : index
      %32 = vector.load %arg9[%c1_32, %c0_33] : memref<10x16xf32, #tpu.memory_space<vmem>>, vector<4x16xf32>
      %c8 = arith.constant 8 : index
      %c0_34 = arith.constant 0 : index
      %c0_35 = arith.constant 0 : index
      %33 = vector.load %arg3[%c8, %c0_34, %c0_35] : memref<14x16x16xf32, #tpu.memory_space<vmem>>, vector<1x16x16xf32>
      %34 = vector.shape_cast %33 : vector<1x16x16xf32> to vector<16x16xf32>
      %cst_36 = arith.constant dense<0.000000e+00> : vector<4x16xf32>
      %35 = tpu.matmul %32, %34, %cst_36 {dimension_numbers = #tpu.dot_dimension_numbers<[1], [0], [0], [1], [0, 0, 1, 1], [], []>, precision = #tpu.contract_precision<fp32>} : vector<4x16xf32>, vector<16x16xf32>, vector<4x16xf32> -> vector<4x16xf32>
      %36 = arith.addf %31, %35 : vector<4x16xf32>
      %c2_37 = arith.constant 2 : index
      %c0_38 = arith.constant 0 : index
      %37 = vector.load %arg8[%c2_37, %c0_38] : memref<10x16xf32, #tpu.memory_space<vmem>>, vector<4x16xf32>
      %c2_39 = arith.constant 2 : index
      %c0_40 = arith.constant 0 : index
      %c0_41 = arith.constant 0 : index
      %38 = vector.load %arg3[%c2_39, %c0_40, %c0_41] : memref<14x16x16xf32, #tpu.memory_space<vmem>>, vector<1x16x16xf32>
      %39 = vector.shape_cast %38 : vector<1x16x16xf32> to vector<16x16xf32>
      %cst_42 = arith.constant dense<0.000000e+00> : vector<4x16xf32>
      %40 = tpu.matmul %37, %39, %cst_42 {dimension_numbers = #tpu.dot_dimension_numbers<[1], [0], [0], [1], [0, 0, 1, 1], [], []>, precision = #tpu.contract_precision<fp32>} : vector<4x16xf32>, vector<16x16xf32>, vector<4x16xf32> -> vector<4x16xf32>
      %41 = arith.addf %36, %40 : vector<4x16xf32>
      %c2_43 = arith.constant 2 : index
      %c0_44 = arith.constant 0 : index
      %42 = vector.load %arg9[%c2_43, %c0_44] : memref<10x16xf32, #tpu.memory_space<vmem>>, vector<4x16xf32>
      %c9 = arith.constant 9 : index
      %c0_45 = arith.constant 0 : index
      %c0_46 = arith.constant 0 : index
      %43 = vector.load %arg3[%c9, %c0_45, %c0_46] : memref<14x16x16xf32, #tpu.memory_space<vmem>>, vector<1x16x16xf32>
      %44 = vector.shape_cast %43 : vector<1x16x16xf32> to vector<16x16xf32>
      %cst_47 = arith.constant dense<0.000000e+00> : vector<4x16xf32>
      %45 = tpu.matmul %42, %44, %cst_47 {dimension_numbers = #tpu.dot_dimension_numbers<[1], [0], [0], [1], [0, 0, 1, 1], [], []>, precision = #tpu.contract_precision<fp32>} : vector<4x16xf32>, vector<16x16xf32>, vector<4x16xf32> -> vector<4x16xf32>
      %46 = arith.addf %41, %45 : vector<4x16xf32>
      %c3_48 = arith.constant 3 : index
      %c0_49 = arith.constant 0 : index
      %47 = vector.load %arg8[%c3_48, %c0_49] : memref<10x16xf32, #tpu.memory_space<vmem>>, vector<4x16xf32>
      %c3_50 = arith.constant 3 : index
      %c0_51 = arith.constant 0 : index
      %c0_52 = arith.constant 0 : index
      %48 = vector.load %arg3[%c3_50, %c0_51, %c0_52] : memref<14x16x16xf32, #tpu.memory_space<vmem>>, vector<1x16x16xf32>
      %49 = vector.shape_cast %48 : vector<1x16x16xf32> to vector<16x16xf32>
      %cst_53 = arith.constant dense<0.000000e+00> : vector<4x16xf32>
      %50 = tpu.matmul %47, %49, %cst_53 {dimension_numbers = #tpu.dot_dimension_numbers<[1], [0], [0], [1], [0, 0, 1, 1], [], []>, precision = #tpu.contract_precision<fp32>} : vector<4x16xf32>, vector<16x16xf32>, vector<4x16xf32> -> vector<4x16xf32>
      %51 = arith.addf %46, %50 : vector<4x16xf32>
      %c3_54 = arith.constant 3 : index
      %c0_55 = arith.constant 0 : index
      %52 = vector.load %arg9[%c3_54, %c0_55] : memref<10x16xf32, #tpu.memory_space<vmem>>, vector<4x16xf32>
      %c10 = arith.constant 10 : index
      %c0_56 = arith.constant 0 : index
      %c0_57 = arith.constant 0 : index
      %53 = vector.load %arg3[%c10, %c0_56, %c0_57] : memref<14x16x16xf32, #tpu.memory_space<vmem>>, vector<1x16x16xf32>
      %54 = vector.shape_cast %53 : vector<1x16x16xf32> to vector<16x16xf32>
      %cst_58 = arith.constant dense<0.000000e+00> : vector<4x16xf32>
      %55 = tpu.matmul %52, %54, %cst_58 {dimension_numbers = #tpu.dot_dimension_numbers<[1], [0], [0], [1], [0, 0, 1, 1], [], []>, precision = #tpu.contract_precision<fp32>} : vector<4x16xf32>, vector<16x16xf32>, vector<4x16xf32> -> vector<4x16xf32>
      %56 = arith.addf %51, %55 : vector<4x16xf32>
      %c4 = arith.constant 4 : index
      %c0_59 = arith.constant 0 : index
      %57 = vector.load %arg8[%c4, %c0_59] : memref<10x16xf32, #tpu.memory_space<vmem>>, vector<4x16xf32>
      %c4_60 = arith.constant 4 : index
      %c0_61 = arith.constant 0 : index
      %c0_62 = arith.constant 0 : index
      %58 = vector.load %arg3[%c4_60, %c0_61, %c0_62] : memref<14x16x16xf32, #tpu.memory_space<vmem>>, vector<1x16x16xf32>
      %59 = vector.shape_cast %58 : vector<1x16x16xf32> to vector<16x16xf32>
      %cst_63 = arith.constant dense<0.000000e+00> : vector<4x16xf32>
      %60 = tpu.matmul %57, %59, %cst_63 {dimension_numbers = #tpu.dot_dimension_numbers<[1], [0], [0], [1], [0, 0, 1, 1], [], []>, precision = #tpu.contract_precision<fp32>} : vector<4x16xf32>, vector<16x16xf32>, vector<4x16xf32> -> vector<4x16xf32>
      %61 = arith.addf %56, %60 : vector<4x16xf32>
      %c4_64 = arith.constant 4 : index
      %c0_65 = arith.constant 0 : index
      %62 = vector.load %arg9[%c4_64, %c0_65] : memref<10x16xf32, #tpu.memory_space<vmem>>, vector<4x16xf32>
      %c11 = arith.constant 11 : index
      %c0_66 = arith.constant 0 : index
      %c0_67 = arith.constant 0 : index
      %63 = vector.load %arg3[%c11, %c0_66, %c0_67] : memref<14x16x16xf32, #tpu.memory_space<vmem>>, vector<1x16x16xf32>
      %64 = vector.shape_cast %63 : vector<1x16x16xf32> to vector<16x16xf32>
      %cst_68 = arith.constant dense<0.000000e+00> : vector<4x16xf32>
      %65 = tpu.matmul %62, %64, %cst_68 {dimension_numbers = #tpu.dot_dimension_numbers<[1], [0], [0], [1], [0, 0, 1, 1], [], []>, precision = #tpu.contract_precision<fp32>} : vector<4x16xf32>, vector<16x16xf32>, vector<4x16xf32> -> vector<4x16xf32>
      %66 = arith.addf %61, %65 : vector<4x16xf32>
      %c5 = arith.constant 5 : index
      %c0_69 = arith.constant 0 : index
      %67 = vector.load %arg8[%c5, %c0_69] : memref<10x16xf32, #tpu.memory_space<vmem>>, vector<4x16xf32>
      %c5_70 = arith.constant 5 : index
      %c0_71 = arith.constant 0 : index
      %c0_72 = arith.constant 0 : index
      %68 = vector.load %arg3[%c5_70, %c0_71, %c0_72] : memref<14x16x16xf32, #tpu.memory_space<vmem>>, vector<1x16x16xf32>
      %69 = vector.shape_cast %68 : vector<1x16x16xf32> to vector<16x16xf32>
      %cst_73 = arith.constant dense<0.000000e+00> : vector<4x16xf32>
      %70 = tpu.matmul %67, %69, %cst_73 {dimension_numbers = #tpu.dot_dimension_numbers<[1], [0], [0], [1], [0, 0, 1, 1], [], []>, precision = #tpu.contract_precision<fp32>} : vector<4x16xf32>, vector<16x16xf32>, vector<4x16xf32> -> vector<4x16xf32>
      %71 = arith.addf %66, %70 : vector<4x16xf32>
      %c5_74 = arith.constant 5 : index
      %c0_75 = arith.constant 0 : index
      %72 = vector.load %arg9[%c5_74, %c0_75] : memref<10x16xf32, #tpu.memory_space<vmem>>, vector<4x16xf32>
      %c12 = arith.constant 12 : index
      %c0_76 = arith.constant 0 : index
      %c0_77 = arith.constant 0 : index
      %73 = vector.load %arg3[%c12, %c0_76, %c0_77] : memref<14x16x16xf32, #tpu.memory_space<vmem>>, vector<1x16x16xf32>
      %74 = vector.shape_cast %73 : vector<1x16x16xf32> to vector<16x16xf32>
      %cst_78 = arith.constant dense<0.000000e+00> : vector<4x16xf32>
      %75 = tpu.matmul %72, %74, %cst_78 {dimension_numbers = #tpu.dot_dimension_numbers<[1], [0], [0], [1], [0, 0, 1, 1], [], []>, precision = #tpu.contract_precision<fp32>} : vector<4x16xf32>, vector<16x16xf32>, vector<4x16xf32> -> vector<4x16xf32>
      %76 = arith.addf %71, %75 : vector<4x16xf32>
      %c6 = arith.constant 6 : index
      %c0_79 = arith.constant 0 : index
      %77 = vector.load %arg8[%c6, %c0_79] : memref<10x16xf32, #tpu.memory_space<vmem>>, vector<4x16xf32>
      %c6_80 = arith.constant 6 : index
      %c0_81 = arith.constant 0 : index
      %c0_82 = arith.constant 0 : index
      %78 = vector.load %arg3[%c6_80, %c0_81, %c0_82] : memref<14x16x16xf32, #tpu.memory_space<vmem>>, vector<1x16x16xf32>
      %79 = vector.shape_cast %78 : vector<1x16x16xf32> to vector<16x16xf32>
      %cst_83 = arith.constant dense<0.000000e+00> : vector<4x16xf32>
      %80 = tpu.matmul %77, %79, %cst_83 {dimension_numbers = #tpu.dot_dimension_numbers<[1], [0], [0], [1], [0, 0, 1, 1], [], []>, precision = #tpu.contract_precision<fp32>} : vector<4x16xf32>, vector<16x16xf32>, vector<4x16xf32> -> vector<4x16xf32>
      %81 = arith.addf %76, %80 : vector<4x16xf32>
      %c6_84 = arith.constant 6 : index
      %c0_85 = arith.constant 0 : index
      %82 = vector.load %arg9[%c6_84, %c0_85] : memref<10x16xf32, #tpu.memory_space<vmem>>, vector<4x16xf32>
      %c13 = arith.constant 13 : index
      %c0_86 = arith.constant 0 : index
      %c0_87 = arith.constant 0 : index
      %83 = vector.load %arg3[%c13, %c0_86, %c0_87] : memref<14x16x16xf32, #tpu.memory_space<vmem>>, vector<1x16x16xf32>
      %84 = vector.shape_cast %83 : vector<1x16x16xf32> to vector<16x16xf32>
      %cst_88 = arith.constant dense<0.000000e+00> : vector<4x16xf32>
      %85 = tpu.matmul %82, %84, %cst_88 {dimension_numbers = #tpu.dot_dimension_numbers<[1], [0], [0], [1], [0, 0, 1, 1], [], []>, precision = #tpu.contract_precision<fp32>} : vector<4x16xf32>, vector<16x16xf32>, vector<4x16xf32> -> vector<4x16xf32>
      %86 = arith.addf %81, %85 : vector<4x16xf32>
      %cst_89 = arith.constant 0.000000e+00 : f32
      %87 = vector.broadcast %cst_89 : f32 to vector<4x16xf32>
      %c0_90 = arith.constant 0 : index
      %c0_91 = arith.constant 0 : index
      %88 = vector.load %arg10[%c0_90, %c0_91] : memref<8x16xf32, #tpu.memory_space<vmem>>, vector<4x16xf32>
      %c0_92 = arith.constant 0 : index
      %c0_93 = arith.constant 0 : index
      %c0_94 = arith.constant 0 : index
      %89 = vector.load %arg4[%c0_92, %c0_93, %c0_94] : memref<10x16x16xf32, #tpu.memory_space<vmem>>, vector<1x16x16xf32>
      %90 = vector.shape_cast %89 : vector<1x16x16xf32> to vector<16x16xf32>
      %cst_95 = arith.constant dense<0.000000e+00> : vector<4x16xf32>
      %91 = tpu.matmul %88, %90, %cst_95 {dimension_numbers = #tpu.dot_dimension_numbers<[1], [0], [0], [1], [0, 0, 1, 1], [], []>, precision = #tpu.contract_precision<fp32>} : vector<4x16xf32>, vector<16x16xf32>, vector<4x16xf32> -> vector<4x16xf32>
      %92 = arith.addf %87, %91 : vector<4x16xf32>
      %c0_96 = arith.constant 0 : index
      %c0_97 = arith.constant 0 : index
      %93 = vector.load %arg11[%c0_96, %c0_97] : memref<8x16xf32, #tpu.memory_space<vmem>>, vector<4x16xf32>
      %c5_98 = arith.constant 5 : index
      %c0_99 = arith.constant 0 : index
      %c0_100 = arith.constant 0 : index
      %94 = vector.load %arg4[%c5_98, %c0_99, %c0_100] : memref<10x16x16xf32, #tpu.memory_space<vmem>>, vector<1x16x16xf32>
      %95 = vector.shape_cast %94 : vector<1x16x16xf32> to vector<16x16xf32>
      %cst_101 = arith.constant dense<0.000000e+00> : vector<4x16xf32>
      %96 = tpu.matmul %93, %95, %cst_101 {dimension_numbers = #tpu.dot_dimension_numbers<[1], [0], [0], [1], [0, 0, 1, 1], [], []>, precision = #tpu.contract_precision<fp32>} : vector<4x16xf32>, vector<16x16xf32>, vector<4x16xf32> -> vector<4x16xf32>
      %97 = arith.addf %92, %96 : vector<4x16xf32>
      %c1_102 = arith.constant 1 : index
      %c0_103 = arith.constant 0 : index
      %98 = vector.load %arg10[%c1_102, %c0_103] : memref<8x16xf32, #tpu.memory_space<vmem>>, vector<4x16xf32>
      %c1_104 = arith.constant 1 : index
      %c0_105 = arith.constant 0 : index
      %c0_106 = arith.constant 0 : index
      %99 = vector.load %arg4[%c1_104, %c0_105, %c0_106] : memref<10x16x16xf32, #tpu.memory_space<vmem>>, vector<1x16x16xf32>
      %100 = vector.shape_cast %99 : vector<1x16x16xf32> to vector<16x16xf32>
      %cst_107 = arith.constant dense<0.000000e+00> : vector<4x16xf32>
      %101 = tpu.matmul %98, %100, %cst_107 {dimension_numbers = #tpu.dot_dimension_numbers<[1], [0], [0], [1], [0, 0, 1, 1], [], []>, precision = #tpu.contract_precision<fp32>} : vector<4x16xf32>, vector<16x16xf32>, vector<4x16xf32> -> vector<4x16xf32>
      %102 = arith.addf %97, %101 : vector<4x16xf32>
      %c1_108 = arith.constant 1 : index
      %c0_109 = arith.constant 0 : index
      %103 = vector.load %arg11[%c1_108, %c0_109] : memref<8x16xf32, #tpu.memory_space<vmem>>, vector<4x16xf32>
      %c6_110 = arith.constant 6 : index
      %c0_111 = arith.constant 0 : index
      %c0_112 = arith.constant 0 : index
      %104 = vector.load %arg4[%c6_110, %c0_111, %c0_112] : memref<10x16x16xf32, #tpu.memory_space<vmem>>, vector<1x16x16xf32>
      %105 = vector.shape_cast %104 : vector<1x16x16xf32> to vector<16x16xf32>
      %cst_113 = arith.constant dense<0.000000e+00> : vector<4x16xf32>
      %106 = tpu.matmul %103, %105, %cst_113 {dimension_numbers = #tpu.dot_dimension_numbers<[1], [0], [0], [1], [0, 0, 1, 1], [], []>, precision = #tpu.contract_precision<fp32>} : vector<4x16xf32>, vector<16x16xf32>, vector<4x16xf32> -> vector<4x16xf32>
      %107 = arith.addf %102, %106 : vector<4x16xf32>
      %c2_114 = arith.constant 2 : index
      %c0_115 = arith.constant 0 : index
      %108 = vector.load %arg10[%c2_114, %c0_115] : memref<8x16xf32, #tpu.memory_space<vmem>>, vector<4x16xf32>
      %c2_116 = arith.constant 2 : index
      %c0_117 = arith.constant 0 : index
      %c0_118 = arith.constant 0 : index
      %109 = vector.load %arg4[%c2_116, %c0_117, %c0_118] : memref<10x16x16xf32, #tpu.memory_space<vmem>>, vector<1x16x16xf32>
      %110 = vector.shape_cast %109 : vector<1x16x16xf32> to vector<16x16xf32>
      %cst_119 = arith.constant dense<0.000000e+00> : vector<4x16xf32>
      %111 = tpu.matmul %108, %110, %cst_119 {dimension_numbers = #tpu.dot_dimension_numbers<[1], [0], [0], [1], [0, 0, 1, 1], [], []>, precision = #tpu.contract_precision<fp32>} : vector<4x16xf32>, vector<16x16xf32>, vector<4x16xf32> -> vector<4x16xf32>
      %112 = arith.addf %107, %111 : vector<4x16xf32>
      %c2_120 = arith.constant 2 : index
      %c0_121 = arith.constant 0 : index
      %113 = vector.load %arg11[%c2_120, %c0_121] : memref<8x16xf32, #tpu.memory_space<vmem>>, vector<4x16xf32>
      %c7_122 = arith.constant 7 : index
      %c0_123 = arith.constant 0 : index
      %c0_124 = arith.constant 0 : index
      %114 = vector.load %arg4[%c7_122, %c0_123, %c0_124] : memref<10x16x16xf32, #tpu.memory_space<vmem>>, vector<1x16x16xf32>
      %115 = vector.shape_cast %114 : vector<1x16x16xf32> to vector<16x16xf32>
      %cst_125 = arith.constant dense<0.000000e+00> : vector<4x16xf32>
      %116 = tpu.matmul %113, %115, %cst_125 {dimension_numbers = #tpu.dot_dimension_numbers<[1], [0], [0], [1], [0, 0, 1, 1], [], []>, precision = #tpu.contract_precision<fp32>} : vector<4x16xf32>, vector<16x16xf32>, vector<4x16xf32> -> vector<4x16xf32>
      %117 = arith.addf %112, %116 : vector<4x16xf32>
      %c3_126 = arith.constant 3 : index
      %c0_127 = arith.constant 0 : index
      %118 = vector.load %arg10[%c3_126, %c0_127] : memref<8x16xf32, #tpu.memory_space<vmem>>, vector<4x16xf32>
      %c3_128 = arith.constant 3 : index
      %c0_129 = arith.constant 0 : index
      %c0_130 = arith.constant 0 : index
      %119 = vector.load %arg4[%c3_128, %c0_129, %c0_130] : memref<10x16x16xf32, #tpu.memory_space<vmem>>, vector<1x16x16xf32>
      %120 = vector.shape_cast %119 : vector<1x16x16xf32> to vector<16x16xf32>
      %cst_131 = arith.constant dense<0.000000e+00> : vector<4x16xf32>
      %121 = tpu.matmul %118, %120, %cst_131 {dimension_numbers = #tpu.dot_dimension_numbers<[1], [0], [0], [1], [0, 0, 1, 1], [], []>, precision = #tpu.contract_precision<fp32>} : vector<4x16xf32>, vector<16x16xf32>, vector<4x16xf32> -> vector<4x16xf32>
      %122 = arith.addf %117, %121 : vector<4x16xf32>
      %c3_132 = arith.constant 3 : index
      %c0_133 = arith.constant 0 : index
      %123 = vector.load %arg11[%c3_132, %c0_133] : memref<8x16xf32, #tpu.memory_space<vmem>>, vector<4x16xf32>
      %c8_134 = arith.constant 8 : index
      %c0_135 = arith.constant 0 : index
      %c0_136 = arith.constant 0 : index
      %124 = vector.load %arg4[%c8_134, %c0_135, %c0_136] : memref<10x16x16xf32, #tpu.memory_space<vmem>>, vector<1x16x16xf32>
      %125 = vector.shape_cast %124 : vector<1x16x16xf32> to vector<16x16xf32>
      %cst_137 = arith.constant dense<0.000000e+00> : vector<4x16xf32>
      %126 = tpu.matmul %123, %125, %cst_137 {dimension_numbers = #tpu.dot_dimension_numbers<[1], [0], [0], [1], [0, 0, 1, 1], [], []>, precision = #tpu.contract_precision<fp32>} : vector<4x16xf32>, vector<16x16xf32>, vector<4x16xf32> -> vector<4x16xf32>
      %127 = arith.addf %122, %126 : vector<4x16xf32>
      %c4_138 = arith.constant 4 : index
      %c0_139 = arith.constant 0 : index
      %128 = vector.load %arg10[%c4_138, %c0_139] : memref<8x16xf32, #tpu.memory_space<vmem>>, vector<4x16xf32>
      %c4_140 = arith.constant 4 : index
      %c0_141 = arith.constant 0 : index
      %c0_142 = arith.constant 0 : index
      %129 = vector.load %arg4[%c4_140, %c0_141, %c0_142] : memref<10x16x16xf32, #tpu.memory_space<vmem>>, vector<1x16x16xf32>
      %130 = vector.shape_cast %129 : vector<1x16x16xf32> to vector<16x16xf32>
      %cst_143 = arith.constant dense<0.000000e+00> : vector<4x16xf32>
      %131 = tpu.matmul %128, %130, %cst_143 {dimension_numbers = #tpu.dot_dimension_numbers<[1], [0], [0], [1], [0, 0, 1, 1], [], []>, precision = #tpu.contract_precision<fp32>} : vector<4x16xf32>, vector<16x16xf32>, vector<4x16xf32> -> vector<4x16xf32>
      %132 = arith.addf %127, %131 : vector<4x16xf32>
      %c4_144 = arith.constant 4 : index
      %c0_145 = arith.constant 0 : index
      %133 = vector.load %arg11[%c4_144, %c0_145] : memref<8x16xf32, #tpu.memory_space<vmem>>, vector<4x16xf32>
      %c9_146 = arith.constant 9 : index
      %c0_147 = arith.constant 0 : index
      %c0_148 = arith.constant 0 : index
      %134 = vector.load %arg4[%c9_146, %c0_147, %c0_148] : memref<10x16x16xf32, #tpu.memory_space<vmem>>, vector<1x16x16xf32>
      %135 = vector.shape_cast %134 : vector<1x16x16xf32> to vector<16x16xf32>
      %cst_149 = arith.constant dense<0.000000e+00> : vector<4x16xf32>
      %136 = tpu.matmul %133, %135, %cst_149 {dimension_numbers = #tpu.dot_dimension_numbers<[1], [0], [0], [1], [0, 0, 1, 1], [], []>, precision = #tpu.contract_precision<fp32>} : vector<4x16xf32>, vector<16x16xf32>, vector<4x16xf32> -> vector<4x16xf32>
      %137 = arith.addf %132, %136 : vector<4x16xf32>
      %c0_150 = arith.constant 0 : index
      %138 = memref.load %arg5[%c0_150] : memref<2xf32, #tpu.memory_space<smem>>
      %139 = vector.broadcast %138 : f32 to vector<4x16xf32>
      %140 = arith.addf %86, %139 : vector<4x16xf32>
      %c0_151 = arith.constant 0 : index
      %c0_152 = arith.constant 0 : index
      %c0_153 = arith.constant 0 : index
      %141 = vector.load %arg6[%c0_151, %c0_152, %c0_153] : memref<1x4x16xf32, #tpu.memory_space<vmem>>, vector<1x4x16xf32>
      %142 = vector.shape_cast %141 : vector<1x4x16xf32> to vector<4x16xf32>
      %143 = vector.shape_cast %140 : vector<4x16xf32> to vector<1x4x16xf32>
      tpu.vector_store %arg6[%c0_151, %c0_152, %c0_153], %143 {strides = array<i32>} : memref<1x4x16xf32, #tpu.memory_space<vmem>>, vector<1x4x16xf32>,
      %c1_154 = arith.constant 1 : index
      %144 = memref.load %arg5[%c1_154] : memref<2xf32, #tpu.memory_space<smem>>
      %145 = vector.broadcast %144 : f32 to vector<4x16xf32>
      %146 = arith.addf %137, %145 : vector<4x16xf32>
      %c0_155 = arith.constant 0 : index
      %c0_156 = arith.constant 0 : index
      %c0_157 = arith.constant 0 : index
      %147 = vector.load %arg7[%c0_155, %c0_156, %c0_157] : memref<1x4x16xf32, #tpu.memory_space<vmem>>, vector<1x4x16xf32>
      %148 = vector.shape_cast %147 : vector<1x4x16xf32> to vector<4x16xf32>
      %149 = vector.shape_cast %146 : vector<4x16xf32> to vector<1x4x16xf32>
      tpu.vector_store %arg7[%c0_155, %c0_156, %c0_157], %149 {strides = array<i32>} : memref<1x4x16xf32, #tpu.memory_space<vmem>>, vector<1x4x16xf32>,
    } else {
    }
    return
  }
  func.func @transform_0(%arg0: i32, %arg1: i32) -> (i32, i32, i32, i32) {
    %c0_i32 = arith.constant 0 : i32
    %c0_i32_0 = arith.constant 0 : i32
    %c0_i32_1 = arith.constant 0 : i32
    return %arg0, %arg1, %c0_i32, %c0_i32_0 : i32, i32, i32, i32
  }
  func.func @transform_1(%arg0: i32, %arg1: i32) -> (i32, i32, i32) {
    %c0_i32 = arith.constant 0 : i32
    %c0_i32_0 = arith.constant 0 : i32
    %c0_i32_1 = arith.constant 0 : i32
    %c0_i32_2 = arith.constant 0 : i32
    return %c0_i32, %c0_i32_0, %c0_i32_1 : i32, i32, i32
  }
  func.func @transform_2(%arg0: i32, %arg1: i32) -> (i32, i32, i32) {
    %c0_i32 = arith.constant 0 : i32
    %c0_i32_0 = arith.constant 0 : i32
    %c0_i32_1 = arith.constant 0 : i32
    %c0_i32_2 = arith.constant 0 : i32
    return %c0_i32, %c0_i32_0, %c0_i32_1 : i32, i32, i32
  }
  func.func @transform_3(%arg0: i32, %arg1: i32) -> i32 {
    %c0_i32 = arith.constant 0 : i32
    %c0_i32_0 = arith.constant 0 : i32
    return %c0_i32 : i32
  }
  func.func @transform_4(%arg0: i32, %arg1: i32) -> (i32, i32, i32) {
    %c0_i32 = arith.constant 0 : i32
    %c0_i32_0 = arith.constant 0 : i32
    %c0_i32_1 = arith.constant 0 : i32
    return %arg0, %c0_i32, %c0_i32_0 : i32, i32, i32
  }
  func.func @transform_5(%arg0: i32, %arg1: i32) -> (i32, i32, i32) {
    %c0_i32 = arith.constant 0 : i32
    %c0_i32_0 = arith.constant 0 : i32
    %c0_i32_1 = arith.constant 0 : i32
    return %arg0, %c0_i32, %c0_i32_0 : i32, i32, i32
  }
}

</mosaic_0001>

<llo_original>
// kernel: tpu_custom_call.1
$region0: #{tpu_custom_call.1}
  #allocation0 [shape = 'u32[]', space=smem, size = 0x4, offset = 0x4, fixed_abs, tag = 'smem constant byte address 0x4 - core index']
  #allocation1 [shape = 'u32[72,128]{1,0:T(1,128)}', space=vmem, size = 0x9000, scoped, tag = 'internal scratch']
  #allocation2 [shape = 'f32[10,16]{1,0:T(8,128)}', space=vmem, size = 0x2000, scoped, tag = 'scratch operand']
  #allocation3 [shape = 'f32[10,16]{1,0:T(8,128)}', space=vmem, size = 0x2000, scoped, tag = 'scratch operand']
  #allocation4 [shape = 'f32[8,16]{1,0:T(8,128)}', space=vmem, size = 0x1000, scoped, tag = 'scratch operand']
  #allocation5 [shape = 'f32[8,16]{1,0:T(8,128)}', space=vmem, size = 0x1000, scoped, tag = 'scratch operand']
  %s0 = inlined_call_operand.hbm [shape: f32[2,4,16,16], index: 0, kind: input, shape index: {}]
  %s1 = inlined_call_operand.hbm [shape: f32[14,16,16], index: 1, kind: input, shape index: {}]
  %s2 = inlined_call_operand.hbm [shape: f32[10,16,16], index: 2, kind: input, shape index: {}]
  %s3 = inlined_call_operand.vmem [shape: f32[2], index: 3, kind: input, shape index: {}]
  %s4 = inlined_call_operand.hbm [shape: f32[2,4,16], index: 4, kind: output, shape index: {0}]
  %s5 = inlined_call_operand.hbm [shape: f32[2,4,16], index: 5, kind: output, shape index: {1}]
  %6 = xla_tuple %s4, %s5
  %s7 = sld [smem:[#allocation0]]
  $region81: #{tpu_custom_call.1} parent=0
    _
  %s9 = ssub.s32 1, %s7
  %s10 = scalar_select 0, %s9, %s7
  $region1: #{tpu_custom_call.1} parent=0
    #allocation6 [shape = 'u8[65536]{0}', space=vmem, size = 0x10000, scoped, tag = 'input window, operand 0']
    #allocation7 [shape = 's32[2]{0}', space=sflag, size = 0x8, scoped, tag = 'scoped memory for tpu_custom_call.1']
    #allocation8 [shape = 's32[2]{0}', space=sflag, size = 0x8, scoped, tag = 'scoped memory for tpu_custom_call.1']
    #allocation9 [shape = 's32[2]{0}', space=sflag, size = 0x8, scoped, tag = 'scoped memory for tpu_custom_call.1']
    #allocation10 [shape = 'u8[114688]{0}', space=vmem, size = 0x1c000, scoped, tag = 'input window, operand 1, single buffered']
    #allocation11 [shape = 's32[1]{0}', space=sflag, size = 0x4, scoped, tag = 'scoped memory for tpu_custom_call.1']
    #allocation12 [shape = 'u8[81920]{0}', space=vmem, size = 0x14000, scoped, tag = 'input window, operand 2, single buffered']
    #allocation13 [shape = 'u8[512]{0}', space=smem, size = 0x200, scoped, tag = 'input window, operand 3, single buffered']
    #allocation14 [shape = 'u8[4096]{0}', space=vmem, size = 0x1000, scoped, tag = 'output window, operand 0']
    #allocation15 [shape = 'u8[4096]{0}', space=vmem, size = 0x1000, scoped, tag = 'output window, operand 1']
    #allocation16 [shape = 's32[2]{0}', space=sflag, size = 0x8, scoped, tag = 'scoped memory for tpu_custom_call.1']
    %11 = vsyncpa [#allocation7], 0
    %s12 = scalar_lea.sflag [#allocation7], 1
    %13 = vsyncpa %s12, 0
    %14 = vsyncpa [#allocation11], 0
    %15 = vsyncpa [#allocation9], 0
    %16 = vsyncpa [#allocation8], 0
    %s17 = scalar_lea.sflag [#allocation8], 1
    %18 = vsyncpa %s17, 0
    %19 = vsyncpa [#allocation16], 0
    %s20 = scalar_lea.sflag [#allocation16], 1
    %21 = vsyncpa %s20, 0
    loop: start=0, step=1, limit=4
    $region2: #{tpu_custom_call.1} parent=1 // loop_pre_header
      _
    $region3: #{tpu_custom_call.1} parent=1 // loop_header
      %s23 = sphi 0, %s27
      %p24 = scmp.ge.s32.totalorder %s23, 4
      %s30 = sphi 0, %s42
      %s31 = sphi 0, %s38
      %s32 = sphi 0, %s30
      %s33 = sphi 0, %s31
      %s34 = sphi 0, %s32
      %s35 = sphi 0, %s33
      %s47 = sphi 0, %s49
      %s50 = sphi 0, %s47
      %s51 = sphi 0, %s50
      %s67 = sphi 0, %s51
      %s71 = sphi 0, %s71
      %s73 = sphi 0, %s71
      %s74 = sphi 0, %s73
      %s88 = sphi 0, %s74
      %s92 = sphi 0, %s92
      %s94 = sphi 0, %s92
      %s95 = sphi 0, %s94
      %s109 = sphi 0, %s95
      %s113 = sphi 0, %s113
      %s115 = sphi 0, %s113
      %s116 = sphi 0, %s115
      %s130 = sphi 0, %s116
      %s136 = sphi 0, %s138
      %s139 = sphi 0, %s136
      %s140 = sphi 0, %s139
      %s156 = sphi 0, %s140
      %s162 = sphi 0, %s164
      %s165 = sphi 0, %s162
      %s166 = sphi 0, %s165
      %s182 = sphi 0, %s166
    $region4: #{tpu_custom_call.1} parent=1 // loop_header_branch
      %26 = sbr.rel (%p24) target = $region8
    $region5: #{tpu_custom_call.1} parent=1 // loop_body
      %s28 = ssub.s32 %s23, 1
      %s29 = ssub.s32 %s23, 2
      %s36 = sadd.s32 1, %s31
      %p37 = scmp.ge.s32.totalorder %s36, 1
      %s38 = scalar_select %p37, 0, %s36
      %s39 = sadd.s32 1, %s30
      %s40 = scalar_select %p37, %s39, %s30
      %p41 = scmp.ge.s32.totalorder %s40, 2
      %s42 = scalar_select %p41, 0, %s40
      %s43 = ssub.s32 %s30, %s42
      %s44 = ssub.s32 %s31, %s38
      %s45 = sor.u32 %s43, %s44
      %p46 = scmp.eq.s32.totalorder %s45, 0
      %s48 = sadd.s32 %s47, 1
      %s49 = scalar_select %p46, %s47, %s48
      %p52 = pneg %p46
      %p53 = scmp.eq.s32.totalorder %s23, 1
      %p54 = por %p52, %p53
      %p55 = scmp.ne.s32.totalorder %s47, %s50
      %p56 = scmp.eq.s32.totalorder %s23, 0
      %p57 = por %p55, %p56
      %p58 = scmp.ne.s32.totalorder %s47, %s50
      %p59 = scmp.eq.s32.totalorder %s28, 1
      %p60 = por %p58, %p59
      %p61 = scmp.ne.s32.totalorder %s50, %s51
      %p62 = scmp.eq.s32.totalorder %s28, 0
      %p63 = por %p61, %p62
      %p64 = scmp.ne.s32.totalorder %s50, %s51
      %p65 = scmp.eq.s32.totalorder %s29, 1
      %p66 = por %p64, %p65
      %p68 = scmp.ne.s32.totalorder %s51, %s67
      %p69 = scmp.eq.s32.totalorder %s29, 0
      %p70 = por %p68, %p69
      %s72 = sadd.s32 %s71, 1
      %p75 = scmp.eq.s32.totalorder %s23, 1
      %p76 = scmp.ne.s32.totalorder %s71, %s73
      %p77 = scmp.eq.s32.totalorder %s23, 0
      %p78 = por %p76, %p77
      %p79 = scmp.ne.s32.totalorder %s71, %s73
      %p80 = scmp.eq.s32.totalorder %s28, 1
      %p81 = por %p79, %p80
      %p82 = scmp.ne.s32.totalorder %s73, %s74
      %p83 = scmp.eq.s32.totalorder %s28, 0
      %p84 = por %p82, %p83
      %p85 = scmp.ne.s32.totalorder %s73, %s74
      %p86 = scmp.eq.s32.totalorder %s29, 1
      %p87 = por %p85, %p86
      %p89 = scmp.ne.s32.totalorder %s74, %s88
      %p90 = scmp.eq.s32.totalorder %s29, 0
      %p91 = por %p89, %p90
      %s93 = sadd.s32 %s92, 1
      %p96 = scmp.eq.s32.totalorder %s23, 1
      %p97 = scmp.ne.s32.totalorder %s92, %s94
      %p98 = scmp.eq.s32.totalorder %s23, 0
      %p99 = por %p97, %p98
      %p100 = scmp.ne.s32.totalorder %s92, %s94
      %p101 = scmp.eq.s32.totalorder %s28, 1
      %p102 = por %p100, %p101
      %p103 = scmp.ne.s32.totalorder %s94, %s95
      %p104 = scmp.eq.s32.totalorder %s28, 0
      %p105 = por %p103, %p104
      %p106 = scmp.ne.s32.totalorder %s94, %s95
      %p107 = scmp.eq.s32.totalorder %s29, 1
      %p108 = por %p106, %p107
      %p110 = scmp.ne.s32.totalorder %s95, %s109
      %p111 = scmp.eq.s32.totalorder %s29, 0
      %p112 = por %p110, %p111
      %s114 = sadd.s32 %s113, 1
      %p117 = scmp.eq.s32.totalorder %s23, 1
      %p118 = scmp.ne.s32.totalorder %s113, %s115
      %p119 = scmp.eq.s32.totalorder %s23, 0
      %p120 = por %p118, %p119
      %p121 = scmp.ne.s32.totalorder %s113, %s115
      %p122 = scmp.eq.s32.totalorder %s28, 1
      %p123 = por %p121, %p122
      %p124 = scmp.ne.s32.totalorder %s115, %s116
      %p125 = scmp.eq.s32.totalorder %s28, 0
      %p126 = por %p124, %p125
      %p127 = scmp.ne.s32.totalorder %s115, %s116
      %p128 = scmp.eq.s32.totalorder %s29, 1
      %p129 = por %p127, %p128
      %p131 = scmp.ne.s32.totalorder %s116, %s130
      %p132 = scmp.eq.s32.totalorder %s29, 0
      %p133 = por %p131, %p132
      %s134 = ssub.s32 %s30, %s42
      %p135 = scmp.eq.s32.totalorder %s134, 0
      %s137 = sadd.s32 %s136, 1
      %s138 = scalar_select %p135, %s136, %s137
      %p141 = pneg %p135
      %p142 = scmp.eq.s32.totalorder %s23, 1
      %p143 = por %p141, %p142
      %p144 = scmp.ne.s32.totalorder %s136, %s139
      %p145 = scmp.eq.s32.totalorder %s23, 0
      %p146 = por %p144, %p145
      %p147 = scmp.ne.s32.totalorder %s136, %s139
      %p148 = scmp.eq.s32.totalorder %s28, 1
      %p149 = por %p147, %p148
      %p150 = scmp.ne.s32.totalorder %s139, %s140
      %p151 = scmp.eq.s32.totalorder %s28, 0
      %p152 = por %p150, %p151
      %p153 = scmp.ne.s32.totalorder %s139, %s140
      %p154 = scmp.eq.s32.totalorder %s29, 1
      %p155 = por %p153, %p154
      %p157 = scmp.ne.s32.totalorder %s140, %s156
      %p158 = scmp.eq.s32.totalorder %s29, 0
      %p159 = por %p157, %p158
      %s160 = ssub.s32 %s30, %s42
      %p161 = scmp.eq.s32.totalorder %s160, 0
      %s163 = sadd.s32 %s162, 1
      %s164 = scalar_select %p161, %s162, %s163
      %p167 = pneg %p161
      %p168 = scmp.eq.s32.totalorder %s23, 1
      %p169 = por %p167, %p168
      %p170 = scmp.ne.s32.totalorder %s162, %s165
      %p171 = scmp.eq.s32.totalorder %s23, 0
      %p172 = por %p170, %p171
      %p173 = scmp.ne.s32.totalorder %s162, %s165
      %p174 = scmp.eq.s32.totalorder %s28, 1
      %p175 = por %p173, %p174
      %p176 = scmp.ne.s32.totalorder %s165, %s166
      %p177 = scmp.eq.s32.totalorder %s28, 0
      %p178 = por %p176, %p177
      %p179 = scmp.ne.s32.totalorder %s165, %s166
      %p180 = scmp.eq.s32.totalorder %s29, 1
      %p181 = por %p179, %p180
      %p183 = scmp.ne.s32.totalorder %s166, %s182
      %p184 = scmp.eq.s32.totalorder %s29, 0
      %p185 = por %p183, %p184
      %p186 = scmp.le.s32.totalorder 1, %s23
      %p187 = scmp.lt.s32.totalorder %s23, 3
      %p188 = pnand %p186, %p187
      %p189 = pneg %p188
      // Predicated region
      $region9: #{tpu_custom_call.1} parent=5 // pred_check
        _
      $region10: #{tpu_custom_call.1} parent=5 // pred_check_branch
        %191 = sbr.rel (%p188) target = $region12
      $region11: #{tpu_custom_call.1} parent=5 // pred_region
        %s192 = ssub.s32 %s23, 1
        // Predicated region
        $region13: #{tpu_custom_call.1} parent=11 // pred_check
          %p193 = pneg %p84
        $region14: #{tpu_custom_call.1} parent=11 // pred_check_branch
          %195 = sbr.rel (%p193) target = $region16
        $region15: #{tpu_custom_call.1} parent=11 // pred_region
          %197 = vsyncadd [#allocation11], 0
          %s198 = sshll.u32 %s1, 4
          %s199 = int_to_ptr.hbm [resolvable:$true] %s198
          %s200 = sshll.u32 [#allocation10], 4
          %s201 = int_to_ptr.vmem [resolvable:$true] %s200
          %206 = dma.hbm_to_vmem [thread:$0]  %s199, 3584, %s201, [#allocation11], 128, 128, 8
        $region16: #{tpu_custom_call.1} parent=11 // pred_fallthru
          _
        // Predicated region
        $region17: #{tpu_custom_call.1} parent=11 // pred_check
          %p207 = pneg %p105
        $region18: #{tpu_custom_call.1} parent=11 // pred_check_branch
          %209 = sbr.rel (%p207) target = $region20
        $region19: #{tpu_custom_call.1} parent=11 // pred_region
          %211 = vsyncadd [#allocation11], 0
          %s212 = sshll.u32 %s2, 4
          %s213 = int_to_ptr.hbm [resolvable:$true] %s212
          %s214 = sshll.u32 [#allocation12], 4
          %s215 = int_to_ptr.vmem [resolvable:$true] %s214
          %220 = dma.hbm_to_vmem [thread:$0]  %s213, 2560, %s215, [#allocation11], 128, 128, 8
        $region20: #{tpu_custom_call.1} parent=11 // pred_fallthru
          _
        // Predicated region
        $region21: #{tpu_custom_call.1} parent=11 // pred_check
          %p221 = pneg %p126
        $region22: #{tpu_custom_call.1} parent=11 // pred_check_branch
          %223 = sbr.rel (%p221) target = $region24
        $region23: #{tpu_custom_call.1} parent=11 // pred_region
          %225 = vsyncadd [#allocation9], 0
          %s227 = sshll.u32 %s3, 4
          %s228 = int_to_ptr.vmem [resolvable:$true] %s227
          %230 = dma.vmem_to_smem %s228, 16, [#allocation13], [#allocation9]
        $region24: #{tpu_custom_call.1} parent=11 // pred_fallthru
          _
      $region12: #{tpu_custom_call.1} parent=5 // pred_fallthru
        _
      %p231 = scmp.lt.s32.totalorder %s23, 2
      // Predicated region
      $region25: #{tpu_custom_call.1} parent=5 // pred_check
        %p232 = pneg %p231
      $region26: #{tpu_custom_call.1} parent=5 // pred_check_branch
        %234 = sbr.rel (%p232) target = $region28
      $region27: #{tpu_custom_call.1} parent=5 // pred_region
        // Predicated region
        $region29: #{tpu_custom_call.1} parent=27 // pred_check
          %p235 = pneg %p57
        $region30: #{tpu_custom_call.1} parent=27 // pred_check_branch
          %237 = sbr.rel (%p235) target = $region32
        $region31: #{tpu_custom_call.1} parent=27 // pred_region
          %s238 = sand.u32 %s47, 1
          %s239 = scalar_lea.sflag [#allocation7], %s238
          %s240 = sand.u32 %s47, 1
          %s241 = smul.addr %s240, 64
          %s242 = scalar_lea.vmem [#allocation6], %s241
          %s243 = smul.u32 4, %s31
          %245 = vsyncadd %s239, 0
          %s246 = smul.addr %s243, 2
          %s247 = smul.addr %s30, 8
          %s248 = sadd.s32 %s246, %s247
          %s249 = smul.addr %s248, 8
          %s250 = scalar_lea.hbm %s0, %s249
          %s251 = sshll.u32 %s250, 4
          %s252 = int_to_ptr.hbm [resolvable:$true] %s251
          %s253 = sshll.u32 %s242, 4
          %s254 = int_to_ptr.vmem [resolvable:$true] %s253
          %259 = dma.hbm_to_vmem [thread:$0]  %s252, 1024, %s254, %s239, 128, 128, 8
        $region32: #{tpu_custom_call.1} parent=27 // pred_fallthru
          _
      $region28: #{tpu_custom_call.1} parent=5 // pred_fallthru
        _
      %p260 = scmp.le.s32.totalorder 1, %s23
      %p261 = scmp.lt.s32.totalorder %s23, 3
      %p262 = pnand %p260, %p261
      %p263 = pneg %p262
      // Predicated region
      $region33: #{tpu_custom_call.1} parent=5 // pred_check
        _
      $region34: #{tpu_custom_call.1} parent=5 // pred_check_branch
        %265 = sbr.rel (%p262) target = $region36
      $region35: #{tpu_custom_call.1} parent=5 // pred_region
        %s266 = ssub.s32 %s23, 1
        %s267 = sand.u32 %s50, 1
        %s268 = scalar_lea.sflag [#allocation7], %s267
        %s269 = sand.u32 %s50, 1
        %s270 = smul.addr %s269, 64
        %s271 = scalar_lea.vmem [#allocation6], %s270
        // Predicated region
        $region37: #{tpu_custom_call.1} parent=35 // pred_check
          %p272 = pneg %p63
        $region38: #{tpu_custom_call.1} parent=35 // pred_check_branch
          %274 = sbr.rel (%p272) target = $region40
        $region39: #{tpu_custom_call.1} parent=35 // pred_region
          %276 = dma.done %s268, 1024
        $region40: #{tpu_custom_call.1} parent=35 // pred_fallthru
          _
        // Predicated region
        $region41: #{tpu_custom_call.1} parent=35 // pred_check
          %p277 = pneg %p84
        $region42: #{tpu_custom_call.1} parent=35 // pred_check_branch
          %279 = sbr.rel (%p277) target = $region44
        $region43: #{tpu_custom_call.1} parent=35 // pred_region
          %281 = dma.done [#allocation11], 3584
        $region44: #{tpu_custom_call.1} parent=35 // pred_fallthru
          _
        // Predicated region
        $region45: #{tpu_custom_call.1} parent=35 // pred_check
          %p282 = pneg %p105
        $region46: #{tpu_custom_call.1} parent=35 // pred_check_branch
          %284 = sbr.rel (%p282) target = $region48
        $region47: #{tpu_custom_call.1} parent=35 // pred_region
          %286 = dma.done [#allocation11], 2560
        $region48: #{tpu_custom_call.1} parent=35 // pred_fallthru
          _
        // Predicated region
        $region49: #{tpu_custom_call.1} parent=35 // pred_check
          %p287 = pneg %p126
        $region50: #{tpu_custom_call.1} parent=35 // pred_check_branch
          %289 = sbr.rel (%p287) target = $region52
        $region51: #{tpu_custom_call.1} parent=35 // pred_region
          %291 = dma.done [#allocation9], 16
        $region52: #{tpu_custom_call.1} parent=35 // pred_fallthru
          _
        %292 = sfence
        %s293 = sand.u32 %s50, 1
        %s294 = scalar_lea.sflag [#allocation7], %s293
        %s295 = sand.u32 %s50, 1
        %s296 = smul.addr %s295, 64
        %s297 = scalar_lea.vmem [#allocation6], %s296
        %p298 = pneg %p63
        %p299 = pneg %p60
        %p300 = pneg %p84
        %p301 = pneg %p81
        %p302 = pneg %p105
        %p303 = pneg %p102
        %p304 = pneg %p126
        %p305 = pneg %p123
        %p306 = pneg %p152
        %p307 = pneg %p149
        %s308 = sand.u32 %s139, 1
        %s309 = scalar_lea.sflag [#allocation8], %s308
        %s310 = sand.u32 %s139, 1
        %s311 = smul.addr %s310, 4
        %s312 = scalar_lea.vmem [#allocation14], %s311
        %p313 = pneg %p178
        %p314 = pneg %p175
        %s315 = sand.u32 %s165, 1
        %s316 = scalar_lea.sflag [#allocation16], %s315
        %s317 = sand.u32 %s165, 1
        %s318 = smul.addr %s317, 4
        %s319 = scalar_lea.vmem [#allocation15], %s318
        %s320 = smul.u32 4, %s33
        %p321 = scmp.eq.s32.totalorder %s33, 0
        // Predicated region
        $region53: #{tpu_custom_call.1} parent=35 // pred_check
          %p322 = pneg %p321
        $region54: #{tpu_custom_call.1} parent=35 // pred_check_branch
          %324 = sbr.rel (%p322) target = $region56
        $region55: #{tpu_custom_call.1} parent=35 // pred_region
          %vm325 = vcmask 124928
          %326 = vst.msk [vmem:[#allocation2] sm:$0x7] %vm325, 0.0
          %327 = vst.msk [vmem:[#allocation2 + $0x7] sm:$0x7] %vm325, 0.0
          %328 = vst.msk [vmem:[#allocation3] sm:$0x7] %vm325, 0.0
          %329 = vst.msk [vmem:[#allocation3 + $0x7] sm:$0x7] %vm325, 0.0
          %vm330 = vcmask 123904
          %331 = vst.msk [vmem:[#allocation4] sm:$0x3] %vm330, 0.0
          %332 = vst.msk [vmem:[#allocation4 + $0x6] sm:$0x3] %vm330, 0.0
          %333 = vst.msk [vmem:[#allocation5] sm:$0x3] %vm330, 0.0
          %334 = vst.msk [vmem:[#allocation5 + $0x6] sm:$0x3] %vm330, 0.0
        $region56: #{tpu_custom_call.1} parent=35 // pred_fallthru
          _
        %v335 = vld [vmem:[%s271] sm:$0xff]
        %v336 = vld [vmem:[%s271 + $0x8] sm:$0xff]
        %v337 = vld [vmem:[%s271 + $0x10] sm:$0xff]
        %v338 = vld [vmem:[%s271 + $0x18] sm:$0xff]
        %v339 = vld [vmem:[%s271 + $0x20] sm:$0xff]
        %v340 = vld [vmem:[%s271 + $0x28] sm:$0xff]
        %v341 = vld [vmem:[%s271 + $0x30] sm:$0xff]
        %v342 = vld [vmem:[%s271 + $0x38] sm:$0xff]
        %vm343 = vcmask 130048
        %v344 = vsel %vm343, %v335, -inf
        %345 = vmax.xlane.f32.xlu0 %v344
        %v346 = vpop.xlane.xlu0 %345
        %v347 = vsel %vm343, %v336, -inf
        %348 = vmax.xlane.f32.xlu0 %v347
        %v349 = vpop.xlane.xlu0 %348
        %v350 = vsel %vm343, %v337, -inf
        %351 = vmax.xlane.f32.xlu0 %v350
        %v352 = vpop.xlane.xlu0 %351
        %v353 = vsel %vm343, %v338, -inf
        %354 = vmax.xlane.f32.xlu0 %v353
        %v355 = vpop.xlane.xlu0 %354
        %v356 = vsel %vm343, %v339, -inf
        %357 = vmax.xlane.f32.xlu0 %v356
        %v358 = vpop.xlane.xlu0 %357
        %v359 = vsel %vm343, %v340, -inf
        %360 = vmax.xlane.f32.xlu0 %v359
        %v361 = vpop.xlane.xlu0 %360
        %v362 = vsel %vm343, %v341, -inf
        %363 = vmax.xlane.f32.xlu0 %v362
        %v364 = vpop.xlane.xlu0 %363
        %v365 = vsel %vm343, %v342, -inf
        %366 = vmax.xlane.f32.xlu0 %v365
        %v367 = vpop.xlane.xlu0 %366
        %v368 = vsel %vm343, %v335, 0.0
        %369 = vadd.xlane.f32.xlu0 %v368
        %v370 = vpop.xlane.xlu0 %369
        %v371 = vsel %vm343, %v336, 0.0
        %372 = vadd.xlane.f32.xlu0 %v371
        %v373 = vpop.xlane.xlu0 %372
        %v374 = vsel %vm343, %v337, 0.0
        %375 = vadd.xlane.f32.xlu0 %v374
        %v376 = vpop.xlane.xlu0 %375
        %v377 = vsel %vm343, %v338, 0.0
        %378 = vadd.xlane.f32.xlu0 %v377
        %v379 = vpop.xlane.xlu0 %378
        %v380 = vsel %vm343, %v339, 0.0
        %381 = vadd.xlane.f32.xlu0 %v380
        %v382 = vpop.xlane.xlu0 %381
        %v383 = vsel %vm343, %v340, 0.0
        %384 = vadd.xlane.f32.xlu0 %v383
        %v385 = vpop.xlane.xlu0 %384
        %v386 = vsel %vm343, %v341, 0.0
        %387 = vadd.xlane.f32.xlu0 %v386
        %v388 = vpop.xlane.xlu0 %387
        %v389 = vsel %vm343, %v342, 0.0
        %390 = vadd.xlane.f32.xlu0 %v389
        %v391 = vpop.xlane.xlu0 %390
        %v392 = vmax.f32 %v344, %v347
        %v393 = vrot.slane %v392, 4
        %v394 = vmax.f32 %v392, %v393
        %v395 = vrot.slane %v394, 2
        %v396 = vmax.f32 %v394, %v395
        %v397 = vrot.slane %v396, 1
        %v398 = vmax.f32 %v396, %v397
        %v399 = vmax.f32 %v350, %v353
        %v400 = vrot.slane %v399, 4
        %v401 = vmax.f32 %v399, %v400
        %v402 = vrot.slane %v401, 2
        %v403 = vmax.f32 %v401, %v402
        %v404 = vrot.slane %v403, 1
        %v405 = vmax.f32 %v403, %v404
        %v406 = vmax.f32 %v356, %v359
        %v407 = vrot.slane %v406, 4
        %v408 = vmax.f32 %v406, %v407
        %v409 = vrot.slane %v408, 2
        %v410 = vmax.f32 %v408, %v409
        %v411 = vrot.slane %v410, 1
        %v412 = vmax.f32 %v410, %v411
        %v413 = vmax.f32 %v362, %v365
        %v414 = vrot.slane %v413, 4
        %v415 = vmax.f32 %v413, %v414
        %v416 = vrot.slane %v415, 2
        %v417 = vmax.f32 %v415, %v416
        %v418 = vrot.slane %v417, 1
        %v419 = vmax.f32 %v417, %v418
        %v420 = vadd.f32 %v368, %v371
        %v421 = vrot.slane %v420, 4
        %v422 = vadd.f32 %v420, %v421
        %v423 = vrot.slane %v422, 2
        %v424 = vadd.f32 %v422, %v423
        %v425 = vrot.slane %v424, 1
        %v426 = vadd.f32 %v424, %v425
        %v427 = vadd.f32 %v374, %v377
        %v428 = vrot.slane %v427, 4
        %v429 = vadd.f32 %v427, %v428
        %v430 = vrot.slane %v429, 2
        %v431 = vadd.f32 %v429, %v430
        %v432 = vrot.slane %v431, 1
        %v433 = vadd.f32 %v431, %v432
        %v434 = vadd.f32 %v380, %v383
        %v435 = vrot.slane %v434, 4
        %v436 = vadd.f32 %v434, %v435
        %v437 = vrot.slane %v436, 2
        %v438 = vadd.f32 %v436, %v437
        %v439 = vrot.slane %v438, 1
        %v440 = vadd.f32 %v438, %v439
        %v441 = vadd.f32 %v386, %v389
        %v442 = vrot.slane %v441, 4
        %v443 = vadd.f32 %v441, %v442
        %v444 = vrot.slane %v443, 2
        %v445 = vadd.f32 %v443, %v444
        %v446 = vrot.slane %v445, 1
        %v447 = vadd.f32 %v445, %v446
        %v456 = vlaneseq
        %v457 = vand.u32 %v456, 127
        %v458 = vperm.slane %v346, %v457
        %v459 = vadd.s32 %v457, 4294967288
        %v460 = vperm.slane %v349, %v459
        %vm461 = vcmask 130112
        %v462 = vsel %vm461, %v460, %v458
        %v463 = vperm.slane %v352, %v457
        %v464 = vperm.slane %v355, %v459
        %v465 = vsel %vm461, %v464, %v463
        %v466 = vperm.slane %v358, %v457
        %v467 = vperm.slane %v361, %v459
        %v468 = vsel %vm461, %v467, %v466
        %v469 = vperm.slane %v364, %v457
        %v470 = vperm.slane %v367, %v459
        %v471 = vsel %vm461, %v470, %v469
        %vm472 = vcmask 1041409
        %v473 = vsel %vm472, %v465, %v462
        %vm474 = vcmask 1042434
        %v475 = vsel %vm474, %v468, %v473
        %vm476 = vcmask 1043459
        %v477 = vsel %vm476, %v471, %v475
        %vm479 = vcmask 125952
        %480 = vst.msk [vmem:[#allocation2 + $0x3] sm:$0xf] %vm479, %v477
        %v489 = vperm.slane %v370, %v457
        %v490 = vperm.slane %v373, %v459
        %v491 = vsel %vm461, %v490, %v489
        %v492 = vperm.slane %v376, %v457
        %v493 = vperm.slane %v379, %v459
        %v494 = vsel %vm461, %v493, %v492
        %v495 = vperm.slane %v382, %v457
        %v496 = vperm.slane %v385, %v459
        %v497 = vsel %vm461, %v496, %v495
        %v498 = vperm.slane %v388, %v457
        %v499 = vperm.slane %v391, %v459
        %v500 = vsel %vm461, %v499, %v498
        %v501 = vsel %vm472, %v494, %v491
        %v502 = vsel %vm474, %v497, %v501
        %v503 = vsel %vm476, %v500, %v502
        %505 = vst.msk [vmem:[#allocation3 + $0x3] sm:$0xf] %vm479, %v503
        %v510 = vsel %vm472, %v405, %v398
        %v511 = vsel %vm474, %v412, %v510
        %v512 = vsel %vm476, %v419, %v511
        %514 = vst.msk [vmem:[#allocation4 + $0x2] sm:$0xf] %vm479, %v512
        %v519 = vsel %vm472, %v433, %v426
        %v520 = vsel %vm474, %v440, %v519
        %v521 = vsel %vm476, %v447, %v520
        %523 = vst.msk [vmem:[#allocation5 + $0x2] sm:$0xf] %vm479, %v521
        // Predicated region
        $region57: #{tpu_custom_call.1} parent=35 // pred_check
          %p524 = pneg %p321
        $region58: #{tpu_custom_call.1} parent=35 // pred_check_branch
          %526 = sbr.rel (%p524) target = $region60
        $region59: #{tpu_custom_call.1} parent=35 // pred_region
          %v527 = vld [vmem:[#allocation2] sm:$0xf]
          %v528 = vld [vmem:[#allocation10] sm:$0xff]
          %v529 = vld [vmem:[#allocation10 + $0x8] sm:$0xff]
          %v530 = vld [vmem:[#allocation3] sm:$0xf]
          %s531 = scalar_lea.vmem [#allocation10], 112
          %v532 = vld [vmem:[%s531] sm:$0xff]
          %v533 = vld [vmem:[%s531 + $0x8] sm:$0xff]
          %v535 = vsel %vm343, %v530, 0
          %537 = vmatpush.msra.mxu0 0.0
          %538 = vmatpush.msra.mxu0 0.0
          %539 = vmatpush.msra.mxu0 0.0
          %540 = vmatpush.msra.mxu0 0.0
          %541 = vmatpush.msra.mxu0 0.0
          %542 = vmatpush.msra.mxu0 0.0
          %543 = vmatpush.msra.mxu0 0.0
          %544 = vmatpush.msra.mxu0 0.0
          %545 = vmatpush.msra.mxu0 0.0
          %546 = vmatpush.msra.mxu0 0.0
          %547 = vmatpush.msra.mxu0 0.0
          %548 = vmatpush.msra.mxu0 0.0
          %549 = vmatpush.msra.mxu0 0.0
          %550 = vmatpush.msra.mxu0 0.0
          %v551 = vand.u32 %v533, 4294901760
          %552 = vmatpush.msra.mxu0 %v551
          %v553 = vand.u32 %v532, 4294901760
          %554 = vmatpush.msra.mxu0 %v553
          %v555 = vand.u32 %v535, 4294901760
          %v556 = vsub.f32 %v535, %v555
          %v557 = vand.u32 %v556, 4294901760
          %v558 = vsub.f32 %v556, %v557
          %v559 = vand.u32 %v558, 4294901760
          %560 = vmatmul.f32.gmra.mxu0 %v559
          %v561 = vpop.f32.mrf.mxu0
          %v562 = vadd.f32 0.0, %v561
          %563 = vdwg.mxu0
          %564 = vmatpush.msra.mxu0 0.0
          %565 = vmatpush.msra.mxu0 0.0
          %566 = vmatpush.msra.mxu0 0.0
          %567 = vmatpush.msra.mxu0 0.0
          %568 = vmatpush.msra.mxu0 0.0
          %569 = vmatpush.msra.mxu0 0.0
          %570 = vmatpush.msra.mxu0 0.0
          %571 = vmatpush.msra.mxu0 0.0
          %572 = vmatpush.msra.mxu0 0.0
          %573 = vmatpush.msra.mxu0 0.0
          %574 = vmatpush.msra.mxu0 0.0
          %575 = vmatpush.msra.mxu0 0.0
          %576 = vmatpush.msra.mxu0 0.0
          %577 = vmatpush.msra.mxu0 0.0
          %v578 = vand.u32 %v533, 4294901760
          %v579 = vsub.f32 %v533, %v578
          %v580 = vand.u32 %v579, 4294901760
          %v581 = vsub.f32 %v579, %v580
          %v582 = vand.u32 %v581, 4294901760
          %583 = vmatpush.msra.mxu0 %v582
          %v584 = vand.u32 %v532, 4294901760
          %v585 = vsub.f32 %v532, %v584
          %v586 = vand.u32 %v585, 4294901760
          %v587 = vsub.f32 %v585, %v586
          %v588 = vand.u32 %v587, 4294901760
          %589 = vmatpush.msra.mxu0 %v588
          %v590 = vand.u32 %v535, 4294901760
          %591 = vmatmul.f32.gmra.mxu0 %v590
          %v592 = vpop.f32.mrf.mxu0
          %v593 = vadd.f32 %v562, %v592
          %594 = vdwg.mxu0
          %595 = vmatpush.msra.mxu0 0.0
          %596 = vmatpush.msra.mxu0 0.0
          %597 = vmatpush.msra.mxu0 0.0
          %598 = vmatpush.msra.mxu0 0.0
          %599 = vmatpush.msra.mxu0 0.0
          %600 = vmatpush.msra.mxu0 0.0
          %601 = vmatpush.msra.mxu0 0.0
          %602 = vmatpush.msra.mxu0 0.0
          %603 = vmatpush.msra.mxu0 0.0
          %604 = vmatpush.msra.mxu0 0.0
          %605 = vmatpush.msra.mxu0 0.0
          %606 = vmatpush.msra.mxu0 0.0
          %607 = vmatpush.msra.mxu0 0.0
          %608 = vmatpush.msra.mxu0 0.0
          %v609 = vand.u32 %v533, 4294901760
          %v610 = vsub.f32 %v533, %v609
          %611 = vmatpush.msra.mxu0 %v610
          %v612 = vand.u32 %v532, 4294901760
          %v613 = vsub.f32 %v532, %v612
          %614 = vmatpush.msra.mxu0 %v613
          %v615 = vand.u32 %v535, 4294901760
          %v616 = vsub.f32 %v535, %v615
          %617 = vmatmul.f32.gmra.mxu0 %v616
          %v618 = vpop.f32.mrf.mxu0
          %v619 = vadd.f32 %v593, %v618
          %620 = vdwg.mxu0
          %621 = vmatpush.msra.mxu0 0.0
          %622 = vmatpush.msra.mxu0 0.0
          %623 = vmatpush.msra.mxu0 0.0
          %624 = vmatpush.msra.mxu0 0.0
          %625 = vmatpush.msra.mxu0 0.0
          %626 = vmatpush.msra.mxu0 0.0
          %627 = vmatpush.msra.mxu0 0.0
          %628 = vmatpush.msra.mxu0 0.0
          %629 = vmatpush.msra.mxu0 0.0
          %630 = vmatpush.msra.mxu0 0.0
          %631 = vmatpush.msra.mxu0 0.0
          %632 = vmatpush.msra.mxu0 0.0
          %633 = vmatpush.msra.mxu0 0.0
          %634 = vmatpush.msra.mxu0 0.0
          %v635 = vand.u32 %v533, 4294901760
          %636 = vmatpush.msra.mxu0 %v635
          %v637 = vand.u32 %v532, 4294901760
          %638 = vmatpush.msra.mxu0 %v637
          %v639 = vand.u32 %v535, 4294901760
          %v640 = vsub.f32 %v535, %v639
          %v641 = vand.u32 %v640, 4294901760
          %642 = vmatmul.f32.gmra.mxu0 %v641
          %v643 = vpop.f32.mrf.mxu0
          %v644 = vadd.f32 %v619, %v643
          %645 = vdwg.mxu0
          %646 = vmatpush.msra.mxu0 0.0
          %647 = vmatpush.msra.mxu0 0.0
          %648 = vmatpush.msra.mxu0 0.0
          %649 = vmatpush.msra.mxu0 0.0
          %650 = vmatpush.msra.mxu0 0.0
          %651 = vmatpush.msra.mxu0 0.0
          %652 = vmatpush.msra.mxu0 0.0
          %653 = vmatpush.msra.mxu0 0.0
          %654 = vmatpush.msra.mxu0 0.0
          %655 = vmatpush.msra.mxu0 0.0
          %656 = vmatpush.msra.mxu0 0.0
          %657 = vmatpush.msra.mxu0 0.0
          %658 = vmatpush.msra.mxu0 0.0
          %659 = vmatpush.msra.mxu0 0.0
          %v660 = vand.u32 %v533, 4294901760
          %v661 = vsub.f32 %v533, %v660
          %v662 = vand.u32 %v661, 4294901760
          %663 = vmatpush.msra.mxu0 %v662
          %v664 = vand.u32 %v532, 4294901760
          %v665 = vsub.f32 %v532, %v664
          %v666 = vand.u32 %v665, 4294901760
          %667 = vmatpush.msra.mxu0 %v666
          %v668 = vand.u32 %v535, 4294901760
          %669 = vmatmul.f32.gmra.mxu0 %v668
          %v670 = vpop.f32.mrf.mxu0
          %v671 = vadd.f32 %v644, %v670
          %672 = vdwg.mxu0
          %673 = vmatpush.msra.mxu0 0.0
          %674 = vmatpush.msra.mxu0 0.0
          %675 = vmatpush.msra.mxu0 0.0
          %676 = vmatpush.msra.mxu0 0.0
          %677 = vmatpush.msra.mxu0 0.0
          %678 = vmatpush.msra.mxu0 0.0
          %679 = vmatpush.msra.mxu0 0.0
          %680 = vmatpush.msra.mxu0 0.0
          %681 = vmatpush.msra.mxu0 0.0
          %682 = vmatpush.msra.mxu0 0.0
          %683 = vmatpush.msra.mxu0 0.0
          %684 = vmatpush.msra.mxu0 0.0
          %685 = vmatpush.msra.mxu0 0.0
          %686 = vmatpush.msra.mxu0 0.0
          %v687 = vand.u32 %v533, 4294901760
          %688 = vmatpush.msra.mxu0 %v687
          %v689 = vand.u32 %v532, 4294901760
          %690 = vmatpush.msra.mxu0 %v689
          %v691 = vand.u32 %v535, 4294901760
          %692 = vmatmul.f32.gmra.mxu0 %v691
          %v693 = vpop.f32.mrf.mxu0
          %v694 = vadd.f32 %v671, %v693
          %695 = vdwg.mxu0
          %v697 = vsel %vm343, %v527, 0
          %699 = vmatpush.msra.mxu0 0.0
          %700 = vmatpush.msra.mxu0 0.0
          %701 = vmatpush.msra.mxu0 0.0
          %702 = vmatpush.msra.mxu0 0.0
          %703 = vmatpush.msra.mxu0 0.0
          %704 = vmatpush.msra.mxu0 0.0
          %705 = vmatpush.msra.mxu0 0.0
          %706 = vmatpush.msra.mxu0 0.0
          %707 = vmatpush.msra.mxu0 0.0
          %708 = vmatpush.msra.mxu0 0.0
          %709 = vmatpush.msra.mxu0 0.0
          %710 = vmatpush.msra.mxu0 0.0
          %711 = vmatpush.msra.mxu0 0.0
          %712 = vmatpush.msra.mxu0 0.0
          %v713 = vand.u32 %v529, 4294901760
          %714 = vmatpush.msra.mxu0 %v713
          %v715 = vand.u32 %v528, 4294901760
          %716 = vmatpush.msra.mxu0 %v715
          %v717 = vand.u32 %v697, 4294901760
          %v718 = vsub.f32 %v697, %v717
          %v719 = vand.u32 %v718, 4294901760
          %v720 = vsub.f32 %v718, %v719
          %v721 = vand.u32 %v720, 4294901760
          %722 = vmatmul.f32.gmra.mxu0 %v721
          %v723 = vpop.f32.mrf.mxu0
          %v724 = vadd.f32 %v694, %v723
          %725 = vdwg.mxu0
          %726 = vmatpush.msra.mxu0 0.0
          %727 = vmatpush.msra.mxu0 0.0
          %728 = vmatpush.msra.mxu0 0.0
          %729 = vmatpush.msra.mxu0 0.0
          %730 = vmatpush.msra.mxu0 0.0
          %731 = vmatpush.msra.mxu0 0.0
          %732 = vmatpush.msra.mxu0 0.0
          %733 = vmatpush.msra.mxu0 0.0
          %734 = vmatpush.msra.mxu0 0.0
          %735 = vmatpush.msra.mxu0 0.0
          %736 = vmatpush.msra.mxu0 0.0
          %737 = vmatpush.msra.mxu0 0.0
          %738 = vmatpush.msra.mxu0 0.0
          %739 = vmatpush.msra.mxu0 0.0
          %v740 = vand.u32 %v529, 4294901760
          %v741 = vsub.f32 %v529, %v740
          %v742 = vand.u32 %v741, 4294901760
          %v743 = vsub.f32 %v741, %v742
          %v744 = vand.u32 %v743, 4294901760
          %745 = vmatpush.msra.mxu0 %v744
          %v746 = vand.u32 %v528, 4294901760
          %v747 = vsub.f32 %v528, %v746
          %v748 = vand.u32 %v747, 4294901760
          %v749 = vsub.f32 %v747, %v748
          %v750 = vand.u32 %v749, 4294901760
          %751 = vmatpush.msra.mxu0 %v750
          %v752 = vand.u32 %v697, 4294901760
          %753 = vmatmul.f32.gmra.mxu0 %v752
          %v754 = vpop.f32.mrf.mxu0
          %v755 = vadd.f32 %v724, %v754
          %756 = vdwg.mxu0
          %757 = vmatpush.msra.mxu0 0.0
          %758 = vmatpush.msra.mxu0 0.0
          %759 = vmatpush.msra.mxu0 0.0
          %760 = vmatpush.msra.mxu0 0.0
          %761 = vmatpush.msra.mxu0 0.0
          %762 = vmatpush.msra.mxu0 0.0
          %763 = vmatpush.msra.mxu0 0.0
          %764 = vmatpush.msra.mxu0 0.0
          %765 = vmatpush.msra.mxu0 0.0
          %766 = vmatpush.msra.mxu0 0.0
          %767 = vmatpush.msra.mxu0 0.0
          %768 = vmatpush.msra.mxu0 0.0
          %769 = vmatpush.msra.mxu0 0.0
          %770 = vmatpush.msra.mxu0 0.0
          %v771 = vand.u32 %v529, 4294901760
          %v772 = vsub.f32 %v529, %v771
          %773 = vmatpush.msra.mxu0 %v772
          %v774 = vand.u32 %v528, 4294901760
          %v775 = vsub.f32 %v528, %v774
          %776 = vmatpush.msra.mxu0 %v775
          %v777 = vand.u32 %v697, 4294901760
          %v778 = vsub.f32 %v697, %v777
          %779 = vmatmul.f32.gmra.mxu0 %v778
          %v780 = vpop.f32.mrf.mxu0
          %v781 = vadd.f32 %v755, %v780
          %782 = vdwg.mxu0
          %783 = vmatpush.msra.mxu0 0.0
          %784 = vmatpush.msra.mxu0 0.0
          %785 = vmatpush.msra.mxu0 0.0
          %786 = vmatpush.msra.mxu0 0.0
          %787 = vmatpush.msra.mxu0 0.0
          %788 = vmatpush.msra.mxu0 0.0
          %789 = vmatpush.msra.mxu0 0.0
          %790 = vmatpush.msra.mxu0 0.0
          %791 = vmatpush.msra.mxu0 0.0
          %792 = vmatpush.msra.mxu0 0.0
          %793 = vmatpush.msra.mxu0 0.0
          %794 = vmatpush.msra.mxu0 0.0
          %795 = vmatpush.msra.mxu0 0.0
          %796 = vmatpush.msra.mxu0 0.0
          %v797 = vand.u32 %v529, 4294901760
          %798 = vmatpush.msra.mxu0 %v797
          %v799 = vand.u32 %v528, 4294901760
          %800 = vmatpush.msra.mxu0 %v799
          %v801 = vand.u32 %v697, 4294901760
          %v802 = vsub.f32 %v697, %v801
          %v803 = vand.u32 %v802, 4294901760
          %804 = vmatmul.f32.gmra.mxu0 %v803
          %v805 = vpop.f32.mrf.mxu0
          %v806 = vadd.f32 %v781, %v805
          %807 = vdwg.mxu0
          %808 = vmatpush.msra.mxu0 0.0
          %809 = vmatpush.msra.mxu0 0.0
          %810 = vmatpush.msra.mxu0 0.0
          %811 = vmatpush.msra.mxu0 0.0
          %812 = vmatpush.msra.mxu0 0.0
          %813 = vmatpush.msra.mxu0 0.0
          %814 = vmatpush.msra.mxu0 0.0
          %815 = vmatpush.msra.mxu0 0.0
          %816 = vmatpush.msra.mxu0 0.0
          %817 = vmatpush.msra.mxu0 0.0
          %818 = vmatpush.msra.mxu0 0.0
          %819 = vmatpush.msra.mxu0 0.0
          %820 = vmatpush.msra.mxu0 0.0
          %821 = vmatpush.msra.mxu0 0.0
          %v822 = vand.u32 %v529, 4294901760
          %v823 = vsub.f32 %v529, %v822
          %v824 = vand.u32 %v823, 4294901760
          %825 = vmatpush.msra.mxu0 %v824
          %v826 = vand.u32 %v528, 4294901760
          %v827 = vsub.f32 %v528, %v826
          %v828 = vand.u32 %v827, 4294901760
          %829 = vmatpush.msra.mxu0 %v828
          %v830 = vand.u32 %v697, 4294901760
          %831 = vmatmul.f32.gmra.mxu0 %v830
          %v832 = vpop.f32.mrf.mxu0
          %v833 = vadd.f32 %v806, %v832
          %834 = vdwg.mxu0
          %835 = vmatpush.msra.mxu0 0.0
          %836 = vmatpush.msra.mxu0 0.0
          %837 = vmatpush.msra.mxu0 0.0
          %838 = vmatpush.msra.mxu0 0.0
          %839 = vmatpush.msra.mxu0 0.0
          %840 = vmatpush.msra.mxu0 0.0
          %841 = vmatpush.msra.mxu0 0.0
          %842 = vmatpush.msra.mxu0 0.0
          %843 = vmatpush.msra.mxu0 0.0
          %844 = vmatpush.msra.mxu0 0.0
          %845 = vmatpush.msra.mxu0 0.0
          %846 = vmatpush.msra.mxu0 0.0
          %847 = vmatpush.msra.mxu0 0.0
          %848 = vmatpush.msra.mxu0 0.0
          %v849 = vand.u32 %v529, 4294901760
          %850 = vmatpush.msra.mxu0 %v849
          %v851 = vand.u32 %v528, 4294901760
          %852 = vmatpush.msra.mxu0 %v851
          %v853 = vand.u32 %v697, 4294901760
          %854 = vmatmul.f32.gmra.mxu0 %v853
          %v855 = vpop.f32.mrf.mxu0
          %v856 = vadd.f32 %v833, %v855
          %857 = vdwg.mxu0
          %v858 = vld [vmem:[#allocation2 + $0x1] sm:$0xf]
          %s859 = scalar_lea.vmem [#allocation10], 16
          %v860 = vld [vmem:[%s859] sm:$0xff]
          %v861 = vld [vmem:[%s859 + $0x8] sm:$0xff]
          %v863 = vsel %vm343, %v858, 0
          %865 = vmatpush.msra.mxu0 0.0
          %866 = vmatpush.msra.mxu0 0.0
          %867 = vmatpush.msra.mxu0 0.0
          %868 = vmatpush.msra.mxu0 0.0
          %869 = vmatpush.msra.mxu0 0.0
          %870 = vmatpush.msra.mxu0 0.0
          %871 = vmatpush.msra.mxu0 0.0
          %872 = vmatpush.msra.mxu0 0.0
          %873 = vmatpush.msra.mxu0 0.0
          %874 = vmatpush.msra.mxu0 0.0
          %875 = vmatpush.msra.mxu0 0.0
          %876 = vmatpush.msra.mxu0 0.0
          %877 = vmatpush.msra.mxu0 0.0
          %878 = vmatpush.msra.mxu0 0.0
          %v879 = vand.u32 %v861, 4294901760
          %880 = vmatpush.msra.mxu0 %v879
          %v881 = vand.u32 %v860, 4294901760
          %882 = vmatpush.msra.mxu0 %v881
          %v883 = vand.u32 %v863, 4294901760
          %v884 = vsub.f32 %v863, %v883
          %v885 = vand.u32 %v884, 4294901760
          %v886 = vsub.f32 %v884, %v885
          %v887 = vand.u32 %v886, 4294901760
          %888 = vmatmul.f32.gmra.mxu0 %v887
          %v889 = vpop.f32.mrf.mxu0
          %v890 = vadd.f32 0.0, %v889
          %891 = vdwg.mxu0
          %892 = vmatpush.msra.mxu0 0.0
          %893 = vmatpush.msra.mxu0 0.0
          %894 = vmatpush.msra.mxu0 0.0
          %895 = vmatpush.msra.mxu0 0.0
          %896 = vmatpush.msra.mxu0 0.0
          %897 = vmatpush.msra.mxu0 0.0
          %898 = vmatpush.msra.mxu0 0.0
          %899 = vmatpush.msra.mxu0 0.0
          %900 = vmatpush.msra.mxu0 0.0
          %901 = vmatpush.msra.mxu0 0.0
          %902 = vmatpush.msra.mxu0 0.0
          %903 = vmatpush.msra.mxu0 0.0
          %904 = vmatpush.msra.mxu0 0.0
          %905 = vmatpush.msra.mxu0 0.0
          %v906 = vand.u32 %v861, 4294901760
          %v907 = vsub.f32 %v861, %v906
          %v908 = vand.u32 %v907, 4294901760
          %v909 = vsub.f32 %v907, %v908
          %v910 = vand.u32 %v909, 4294901760
          %911 = vmatpush.msra.mxu0 %v910
          %v912 = vand.u32 %v860, 4294901760
          %v913 = vsub.f32 %v860, %v912
          %v914 = vand.u32 %v913, 4294901760
          %v915 = vsub.f32 %v913, %v914
          %v916 = vand.u32 %v915, 4294901760
          %917 = vmatpush.msra.mxu0 %v916
          %v918 = vand.u32 %v863, 4294901760
          %919 = vmatmul.f32.gmra.mxu0 %v918
          %v920 = vpop.f32.mrf.mxu0
          %v921 = vadd.f32 %v890, %v920
          %922 = vdwg.mxu0
          %923 = vmatpush.msra.mxu0 0.0
          %924 = vmatpush.msra.mxu0 0.0
          %925 = vmatpush.msra.mxu0 0.0
          %926 = vmatpush.msra.mxu0 0.0
          %927 = vmatpush.msra.mxu0 0.0
          %928 = vmatpush.msra.mxu0 0.0
          %929 = vmatpush.msra.mxu0 0.0
          %930 = vmatpush.msra.mxu0 0.0
          %931 = vmatpush.msra.mxu0 0.0
          %932 = vmatpush.msra.mxu0 0.0
          %933 = vmatpush.msra.mxu0 0.0
          %934 = vmatpush.msra.mxu0 0.0
          %935 = vmatpush.msra.mxu0 0.0
          %936 = vmatpush.msra.mxu0 0.0
          %v937 = vand.u32 %v861, 4294901760
          %v938 = vsub.f32 %v861, %v937
          %939 = vmatpush.msra.mxu0 %v938
          %v940 = vand.u32 %v860, 4294901760
          %v941 = vsub.f32 %v860, %v940
          %942 = vmatpush.msra.mxu0 %v941
          %v943 = vand.u32 %v863, 4294901760
          %v944 = vsub.f32 %v863, %v943
          %945 = vmatmul.f32.gmra.mxu0 %v944
          %v946 = vpop.f32.mrf.mxu0
          %v947 = vadd.f32 %v921, %v946
          %948 = vdwg.mxu0
          %949 = vmatpush.msra.mxu0 0.0
          %950 = vmatpush.msra.mxu0 0.0
          %951 = vmatpush.msra.mxu0 0.0
          %952 = vmatpush.msra.mxu0 0.0
          %953 = vmatpush.msra.mxu0 0.0
          %954 = vmatpush.msra.mxu0 0.0
          %955 = vmatpush.msra.mxu0 0.0
          %956 = vmatpush.msra.mxu0 0.0
          %957 = vmatpush.msra.mxu0 0.0
          %958 = vmatpush.msra.mxu0 0.0
          %959 = vmatpush.msra.mxu0 0.0
          %960 = vmatpush.msra.mxu0 0.0
          %961 = vmatpush.msra.mxu0 0.0
          %962 = vmatpush.msra.mxu0 0.0
          %v963 = vand.u32 %v861, 4294901760
          %964 = vmatpush.msra.mxu0 %v963
          %v965 = vand.u32 %v860, 4294901760
          %966 = vmatpush.msra.mxu0 %v965
          %v967 = vand.u32 %v863, 4294901760
          %v968 = vsub.f32 %v863, %v967
          %v969 = vand.u32 %v968, 4294901760
          %970 = vmatmul.f32.gmra.mxu0 %v969
          %v971 = vpop.f32.mrf.mxu0
          %v972 = vadd.f32 %v947, %v971
          %973 = vdwg.mxu0
          %974 = vmatpush.msra.mxu0 0.0
          %975 = vmatpush.msra.mxu0 0.0
          %976 = vmatpush.msra.mxu0 0.0
          %977 = vmatpush.msra.mxu0 0.0
          %978 = vmatpush.msra.mxu0 0.0
          %979 = vmatpush.msra.mxu0 0.0
          %980 = vmatpush.msra.mxu0 0.0
          %981 = vmatpush.msra.mxu0 0.0
          %982 = vmatpush.msra.mxu0 0.0
          %983 = vmatpush.msra.mxu0 0.0
          %984 = vmatpush.msra.mxu0 0.0
          %985 = vmatpush.msra.mxu0 0.0
          %986 = vmatpush.msra.mxu0 0.0
          %987 = vmatpush.msra.mxu0 0.0
          %v988 = vand.u32 %v861, 4294901760
          %v989 = vsub.f32 %v861, %v988
          %v990 = vand.u32 %v989, 4294901760
          %991 = vmatpush.msra.mxu0 %v990
          %v992 = vand.u32 %v860, 4294901760
          %v993 = vsub.f32 %v860, %v992
          %v994 = vand.u32 %v993, 4294901760
          %995 = vmatpush.msra.mxu0 %v994
          %v996 = vand.u32 %v863, 4294901760
          %997 = vmatmul.f32.gmra.mxu0 %v996
          %v998 = vpop.f32.mrf.mxu0
          %v999 = vadd.f32 %v972, %v998
          %1000 = vdwg.mxu0
          %1001 = vmatpush.msra.mxu0 0.0
          %1002 = vmatpush.msra.mxu0 0.0
          %1003 = vmatpush.msra.mxu0 0.0
          %1004 = vmatpush.msra.mxu0 0.0
          %1005 = vmatpush.msra.mxu0 0.0
          %1006 = vmatpush.msra.mxu0 0.0
          %1007 = vmatpush.msra.mxu0 0.0
          %1008 = vmatpush.msra.mxu0 0.0
          %1009 = vmatpush.msra.mxu0 0.0
          %1010 = vmatpush.msra.mxu0 0.0
          %1011 = vmatpush.msra.mxu0 0.0
          %1012 = vmatpush.msra.mxu0 0.0
          %1013 = vmatpush.msra.mxu0 0.0
          %1014 = vmatpush.msra.mxu0 0.0
          %v1015 = vand.u32 %v861, 4294901760
          %1016 = vmatpush.msra.mxu0 %v1015
          %v1017 = vand.u32 %v860, 4294901760
          %1018 = vmatpush.msra.mxu0 %v1017
          %v1019 = vand.u32 %v863, 4294901760
          %1020 = vmatmul.f32.gmra.mxu0 %v1019
          %v1021 = vpop.f32.mrf.mxu0
          %v1022 = vadd.f32 %v999, %v1021
          %1023 = vdwg.mxu0
          %v1024 = vadd.f32 %v856, %v1022
          %v1025 = vld [vmem:[#allocation3 + $0x1] sm:$0xf]
          %s1026 = scalar_lea.vmem [#allocation10], 128
          %v1027 = vld [vmem:[%s1026] sm:$0xff]
          %v1028 = vld [vmem:[%s1026 + $0x8] sm:$0xff]
          %v1030 = vsel %vm343, %v1025, 0
          %1032 = vmatpush.msra.mxu0 0.0
          %1033 = vmatpush.msra.mxu0 0.0
          %1034 = vmatpush.msra.mxu0 0.0
          %1035 = vmatpush.msra.mxu0 0.0
          %1036 = vmatpush.msra.mxu0 0.0
          %1037 = vmatpush.msra.mxu0 0.0
          %1038 = vmatpush.msra.mxu0 0.0
          %1039 = vmatpush.msra.mxu0 0.0
          %1040 = vmatpush.msra.mxu0 0.0
          %1041 = vmatpush.msra.mxu0 0.0
          %1042 = vmatpush.msra.mxu0 0.0
          %1043 = vmatpush.msra.mxu0 0.0
          %1044 = vmatpush.msra.mxu0 0.0
          %1045 = vmatpush.msra.mxu0 0.0
          %v1046 = vand.u32 %v1028, 4294901760
          %1047 = vmatpush.msra.mxu0 %v1046
          %v1048 = vand.u32 %v1027, 4294901760
          %1049 = vmatpush.msra.mxu0 %v1048
          %v1050 = vand.u32 %v1030, 4294901760
          %v1051 = vsub.f32 %v1030, %v1050
          %v1052 = vand.u32 %v1051, 4294901760
          %v1053 = vsub.f32 %v1051, %v1052
          %v1054 = vand.u32 %v1053, 4294901760
          %1055 = vmatmul.f32.gmra.mxu0 %v1054
          %v1056 = vpop.f32.mrf.mxu0
          %v1057 = vadd.f32 0.0, %v1056
          %1058 = vdwg.mxu0
          %1059 = vmatpush.msra.mxu0 0.0
          %1060 = vmatpush.msra.mxu0 0.0
          %1061 = vmatpush.msra.mxu0 0.0
          %1062 = vmatpush.msra.mxu0 0.0
          %1063 = vmatpush.msra.mxu0 0.0
          %1064 = vmatpush.msra.mxu0 0.0
          %1065 = vmatpush.msra.mxu0 0.0
          %1066 = vmatpush.msra.mxu0 0.0
          %1067 = vmatpush.msra.mxu0 0.0
          %1068 = vmatpush.msra.mxu0 0.0
          %1069 = vmatpush.msra.mxu0 0.0
          %1070 = vmatpush.msra.mxu0 0.0
          %1071 = vmatpush.msra.mxu0 0.0
          %1072 = vmatpush.msra.mxu0 0.0
          %v1073 = vand.u32 %v1028, 4294901760
          %v1074 = vsub.f32 %v1028, %v1073
          %v1075 = vand.u32 %v1074, 4294901760
          %v1076 = vsub.f32 %v1074, %v1075
          %v1077 = vand.u32 %v1076, 4294901760
          %1078 = vmatpush.msra.mxu0 %v1077
          %v1079 = vand.u32 %v1027, 4294901760
          %v1080 = vsub.f32 %v1027, %v1079
          %v1081 = vand.u32 %v1080, 4294901760
          %v1082 = vsub.f32 %v1080, %v1081
          %v1083 = vand.u32 %v1082, 4294901760
          %1084 = vmatpush.msra.mxu0 %v1083
          %v1085 = vand.u32 %v1030, 4294901760
          %1086 = vmatmul.f32.gmra.mxu0 %v1085
          %v1087 = vpop.f32.mrf.mxu0
          %v1088 = vadd.f32 %v1057, %v1087
          %1089 = vdwg.mxu0
          %1090 = vmatpush.msra.mxu0 0.0
          %1091 = vmatpush.msra.mxu0 0.0
          %1092 = vmatpush.msra.mxu0 0.0
          %1093 = vmatpush.msra.mxu0 0.0
          %1094 = vmatpush.msra.mxu0 0.0
          %1095 = vmatpush.msra.mxu0 0.0
          %1096 = vmatpush.msra.mxu0 0.0
          %1097 = vmatpush.msra.mxu0 0.0
          %1098 = vmatpush.msra.mxu0 0.0
          %1099 = vmatpush.msra.mxu0 0.0
          %1100 = vmatpush.msra.mxu0 0.0
          %1101 = vmatpush.msra.mxu0 0.0
          %1102 = vmatpush.msra.mxu0 0.0
          %1103 = vmatpush.msra.mxu0 0.0
          %v1104 = vand.u32 %v1028, 4294901760
          %v1105 = vsub.f32 %v1028, %v1104
          %1106 = vmatpush.msra.mxu0 %v1105
          %v1107 = vand.u32 %v1027, 4294901760
          %v1108 = vsub.f32 %v1027, %v1107
          %1109 = vmatpush.msra.mxu0 %v1108
          %v1110 = vand.u32 %v1030, 4294901760
          %v1111 = vsub.f32 %v1030, %v1110
          %1112 = vmatmul.f32.gmra.mxu0 %v1111
          %v1113 = vpop.f32.mrf.mxu0
          %v1114 = vadd.f32 %v1088, %v1113
          %1115 = vdwg.mxu0
          %1116 = vmatpush.msra.mxu0 0.0
          %1117 = vmatpush.msra.mxu0 0.0
          %1118 = vmatpush.msra.mxu0 0.0
          %1119 = vmatpush.msra.mxu0 0.0
          %1120 = vmatpush.msra.mxu0 0.0
          %1121 = vmatpush.msra.mxu0 0.0
          %1122 = vmatpush.msra.mxu0 0.0
          %1123 = vmatpush.msra.mxu0 0.0
          %1124 = vmatpush.msra.mxu0 0.0
          %1125 = vmatpush.msra.mxu0 0.0
          %1126 = vmatpush.msra.mxu0 0.0
          %1127 = vmatpush.msra.mxu0 0.0
          %1128 = vmatpush.msra.mxu0 0.0
          %1129 = vmatpush.msra.mxu0 0.0
          %v1130 = vand.u32 %v1028, 4294901760
          %1131 = vmatpush.msra.mxu0 %v1130
          %v1132 = vand.u32 %v1027, 4294901760
          %1133 = vmatpush.msra.mxu0 %v1132
          %v1134 = vand.u32 %v1030, 4294901760
          %v1135 = vsub.f32 %v1030, %v1134
          %v1136 = vand.u32 %v1135, 4294901760
          %1137 = vmatmul.f32.gmra.mxu0 %v1136
          %v1138 = vpop.f32.mrf.mxu0
          %v1139 = vadd.f32 %v1114, %v1138
          %1140 = vdwg.mxu0
          %1141 = vmatpush.msra.mxu0 0.0
          %1142 = vmatpush.msra.mxu0 0.0
          %1143 = vmatpush.msra.mxu0 0.0
          %1144 = vmatpush.msra.mxu0 0.0
          %1145 = vmatpush.msra.mxu0 0.0
          %1146 = vmatpush.msra.mxu0 0.0
          %1147 = vmatpush.msra.mxu0 0.0
          %1148 = vmatpush.msra.mxu0 0.0
          %1149 = vmatpush.msra.mxu0 0.0
          %1150 = vmatpush.msra.mxu0 0.0
          %1151 = vmatpush.msra.mxu0 0.0
          %1152 = vmatpush.msra.mxu0 0.0
          %1153 = vmatpush.msra.mxu0 0.0
          %1154 = vmatpush.msra.mxu0 0.0
          %v1155 = vand.u32 %v1028, 4294901760
          %v1156 = vsub.f32 %v1028, %v1155
          %v1157 = vand.u32 %v1156, 4294901760
          %1158 = vmatpush.msra.mxu0 %v1157
          %v1159 = vand.u32 %v1027, 4294901760
          %v1160 = vsub.f32 %v1027, %v1159
          %v1161 = vand.u32 %v1160, 4294901760
          %1162 = vmatpush.msra.mxu0 %v1161
          %v1163 = vand.u32 %v1030, 4294901760
          %1164 = vmatmul.f32.gmra.mxu0 %v1163
          %v1165 = vpop.f32.mrf.mxu0
          %v1166 = vadd.f32 %v1139, %v1165
          %1167 = vdwg.mxu0
          %1168 = vmatpush.msra.mxu0 0.0
          %1169 = vmatpush.msra.mxu0 0.0
          %1170 = vmatpush.msra.mxu0 0.0
          %1171 = vmatpush.msra.mxu0 0.0
          %1172 = vmatpush.msra.mxu0 0.0
          %1173 = vmatpush.msra.mxu0 0.0
          %1174 = vmatpush.msra.mxu0 0.0
          %1175 = vmatpush.msra.mxu0 0.0
          %1176 = vmatpush.msra.mxu0 0.0
          %1177 = vmatpush.msra.mxu0 0.0
          %1178 = vmatpush.msra.mxu0 0.0
          %1179 = vmatpush.msra.mxu0 0.0
          %1180 = vmatpush.msra.mxu0 0.0
          %1181 = vmatpush.msra.mxu0 0.0
          %v1182 = vand.u32 %v1028, 4294901760
          %1183 = vmatpush.msra.mxu0 %v1182
          %v1184 = vand.u32 %v1027, 4294901760
          %1185 = vmatpush.msra.mxu0 %v1184
          %v1186 = vand.u32 %v1030, 4294901760
          %1187 = vmatmul.f32.gmra.mxu0 %v1186
          %v1188 = vpop.f32.mrf.mxu0
          %v1189 = vadd.f32 %v1166, %v1188
          %1190 = vdwg.mxu0
          %v1191 = vadd.f32 %v1024, %v1189
          %v1192 = vld [vmem:[#allocation2 + $0x2] sm:$0xf]
          %s1193 = scalar_lea.vmem [#allocation10], 32
          %v1194 = vld [vmem:[%s1193] sm:$0xff]
          %v1195 = vld [vmem:[%s1193 + $0x8] sm:$0xff]
          %v1197 = vsel %vm343, %v1192, 0
          %1199 = vmatpush.msra.mxu0 0.0
          %1200 = vmatpush.msra.mxu0 0.0
          %1201 = vmatpush.msra.mxu0 0.0
          %1202 = vmatpush.msra.mxu0 0.0
          %1203 = vmatpush.msra.mxu0 0.0
          %1204 = vmatpush.msra.mxu0 0.0
          %1205 = vmatpush.msra.mxu0 0.0
          %1206 = vmatpush.msra.mxu0 0.0
          %1207 = vmatpush.msra.mxu0 0.0
          %1208 = vmatpush.msra.mxu0 0.0
          %1209 = vmatpush.msra.mxu0 0.0
          %1210 = vmatpush.msra.mxu0 0.0
          %1211 = vmatpush.msra.mxu0 0.0
          %1212 = vmatpush.msra.mxu0 0.0
          %v1213 = vand.u32 %v1195, 4294901760
          %1214 = vmatpush.msra.mxu0 %v1213
          %v1215 = vand.u32 %v1194, 4294901760
          %1216 = vmatpush.msra.mxu0 %v1215
          %v1217 = vand.u32 %v1197, 4294901760
          %v1218 = vsub.f32 %v1197, %v1217
          %v1219 = vand.u32 %v1218, 4294901760
          %v1220 = vsub.f32 %v1218, %v1219
          %v1221 = vand.u32 %v1220, 4294901760
          %1222 = vmatmul.f32.gmra.mxu0 %v1221
          %v1223 = vpop.f32.mrf.mxu0
          %v1224 = vadd.f32 0.0, %v1223
          %1225 = vdwg.mxu0
          %1226 = vmatpush.msra.mxu0 0.0
          %1227 = vmatpush.msra.mxu0 0.0
          %1228 = vmatpush.msra.mxu0 0.0
          %1229 = vmatpush.msra.mxu0 0.0
          %1230 = vmatpush.msra.mxu0 0.0
          %1231 = vmatpush.msra.mxu0 0.0
          %1232 = vmatpush.msra.mxu0 0.0
          %1233 = vmatpush.msra.mxu0 0.0
          %1234 = vmatpush.msra.mxu0 0.0
          %1235 = vmatpush.msra.mxu0 0.0
          %1236 = vmatpush.msra.mxu0 0.0
          %1237 = vmatpush.msra.mxu0 0.0
          %1238 = vmatpush.msra.mxu0 0.0
          %1239 = vmatpush.msra.mxu0 0.0
          %v1240 = vand.u32 %v1195, 4294901760
          %v1241 = vsub.f32 %v1195, %v1240
          %v1242 = vand.u32 %v1241, 4294901760
          %v1243 = vsub.f32 %v1241, %v1242
          %v1244 = vand.u32 %v1243, 4294901760
          %1245 = vmatpush.msra.mxu0 %v1244
          %v1246 = vand.u32 %v1194, 4294901760
          %v1247 = vsub.f32 %v1194, %v1246
          %v1248 = vand.u32 %v1247, 4294901760
          %v1249 = vsub.f32 %v1247, %v1248
          %v1250 = vand.u32 %v1249, 4294901760
          %1251 = vmatpush.msra.mxu0 %v1250
          %v1252 = vand.u32 %v1197, 4294901760
          %1253 = vmatmul.f32.gmra.mxu0 %v1252
          %v1254 = vpop.f32.mrf.mxu0
          %v1255 = vadd.f32 %v1224, %v1254
          %1256 = vdwg.mxu0
          %1257 = vmatpush.msra.mxu0 0.0
          %1258 = vmatpush.msra.mxu0 0.0
          %1259 = vmatpush.msra.mxu0 0.0
          %1260 = vmatpush.msra.mxu0 0.0
          %1261 = vmatpush.msra.mxu0 0.0
          %1262 = vmatpush.msra.mxu0 0.0
          %1263 = vmatpush.msra.mxu0 0.0
          %1264 = vmatpush.msra.mxu0 0.0
          %1265 = vmatpush.msra.mxu0 0.0
          %1266 = vmatpush.msra.mxu0 0.0
          %1267 = vmatpush.msra.mxu0 0.0
          %1268 = vmatpush.msra.mxu0 0.0
          %1269 = vmatpush.msra.mxu0 0.0
          %1270 = vmatpush.msra.mxu0 0.0
          %v1271 = vand.u32 %v1195, 4294901760
          %v1272 = vsub.f32 %v1195, %v1271
          %1273 = vmatpush.msra.mxu0 %v1272
          %v1274 = vand.u32 %v1194, 4294901760
          %v1275 = vsub.f32 %v1194, %v1274
          %1276 = vmatpush.msra.mxu0 %v1275
          %v1277 = vand.u32 %v1197, 4294901760
          %v1278 = vsub.f32 %v1197, %v1277
          %1279 = vmatmul.f32.gmra.mxu0 %v1278
          %v1280 = vpop.f32.mrf.mxu0
          %v1281 = vadd.f32 %v1255, %v1280
          %1282 = vdwg.mxu0
          %1283 = vmatpush.msra.mxu0 0.0
          %1284 = vmatpush.msra.mxu0 0.0
          %1285 = vmatpush.msra.mxu0 0.0
          %1286 = vmatpush.msra.mxu0 0.0
          %1287 = vmatpush.msra.mxu0 0.0
          %1288 = vmatpush.msra.mxu0 0.0
          %1289 = vmatpush.msra.mxu0 0.0
          %1290 = vmatpush.msra.mxu0 0.0
          %1291 = vmatpush.msra.mxu0 0.0
          %1292 = vmatpush.msra.mxu0 0.0
          %1293 = vmatpush.msra.mxu0 0.0
          %1294 = vmatpush.msra.mxu0 0.0
          %1295 = vmatpush.msra.mxu0 0.0
          %1296 = vmatpush.msra.mxu0 0.0
          %v1297 = vand.u32 %v1195, 4294901760
          %1298 = vmatpush.msra.mxu0 %v1297
          %v1299 = vand.u32 %v1194, 4294901760
          %1300 = vmatpush.msra.mxu0 %v1299
          %v1301 = vand.u32 %v1197, 4294901760
          %v1302 = vsub.f32 %v1197, %v1301
          %v1303 = vand.u32 %v1302, 4294901760
          %1304 = vmatmul.f32.gmra.mxu0 %v1303
          %v1305 = vpop.f32.mrf.mxu0
          %v1306 = vadd.f32 %v1281, %v1305
          %1307 = vdwg.mxu0
          %1308 = vmatpush.msra.mxu0 0.0
          %1309 = vmatpush.msra.mxu0 0.0
          %1310 = vmatpush.msra.mxu0 0.0
          %1311 = vmatpush.msra.mxu0 0.0
          %1312 = vmatpush.msra.mxu0 0.0
          %1313 = vmatpush.msra.mxu0 0.0
          %1314 = vmatpush.msra.mxu0 0.0
          %1315 = vmatpush.msra.mxu0 0.0
          %1316 = vmatpush.msra.mxu0 0.0
          %1317 = vmatpush.msra.mxu0 0.0
          %1318 = vmatpush.msra.mxu0 0.0
          %1319 = vmatpush.msra.mxu0 0.0
          %1320 = vmatpush.msra.mxu0 0.0
          %1321 = vmatpush.msra.mxu0 0.0
          %v1322 = vand.u32 %v1195, 4294901760
          %v1323 = vsub.f32 %v1195, %v1322
          %v1324 = vand.u32 %v1323, 4294901760
          %1325 = vmatpush.msra.mxu0 %v1324
          %v1326 = vand.u32 %v1194, 4294901760
          %v1327 = vsub.f32 %v1194, %v1326
          %v1328 = vand.u32 %v1327, 4294901760
          %1329 = vmatpush.msra.mxu0 %v1328
          %v1330 = vand.u32 %v1197, 4294901760
          %1331 = vmatmul.f32.gmra.mxu0 %v1330
          %v1332 = vpop.f32.mrf.mxu0
          %v1333 = vadd.f32 %v1306, %v1332
          %1334 = vdwg.mxu0
          %1335 = vmatpush.msra.mxu0 0.0
          %1336 = vmatpush.msra.mxu0 0.0
          %1337 = vmatpush.msra.mxu0 0.0
          %1338 = vmatpush.msra.mxu0 0.0
          %1339 = vmatpush.msra.mxu0 0.0
          %1340 = vmatpush.msra.mxu0 0.0
          %1341 = vmatpush.msra.mxu0 0.0
          %1342 = vmatpush.msra.mxu0 0.0
          %1343 = vmatpush.msra.mxu0 0.0
          %1344 = vmatpush.msra.mxu0 0.0
          %1345 = vmatpush.msra.mxu0 0.0
          %1346 = vmatpush.msra.mxu0 0.0
          %1347 = vmatpush.msra.mxu0 0.0
          %1348 = vmatpush.msra.mxu0 0.0
          %v1349 = vand.u32 %v1195, 4294901760
          %1350 = vmatpush.msra.mxu0 %v1349
          %v1351 = vand.u32 %v1194, 4294901760
          %1352 = vmatpush.msra.mxu0 %v1351
          %v1353 = vand.u32 %v1197, 4294901760
          %1354 = vmatmul.f32.gmra.mxu0 %v1353
          %v1355 = vpop.f32.mrf.mxu0
          %v1356 = vadd.f32 %v1333, %v1355
          %1357 = vdwg.mxu0
          %v1358 = vadd.f32 %v1191, %v1356
          %v1359 = vld [vmem:[#allocation3 + $0x2] sm:$0xf]
          %s1360 = scalar_lea.vmem [#allocation10], 144
          %v1361 = vld [vmem:[%s1360] sm:$0xff]
          %v1362 = vld [vmem:[%s1360 + $0x8] sm:$0xff]
          %v1364 = vsel %vm343, %v1359, 0
          %1366 = vmatpush.msra.mxu0 0.0
          %1367 = vmatpush.msra.mxu0 0.0
          %1368 = vmatpush.msra.mxu0 0.0
          %1369 = vmatpush.msra.mxu0 0.0
          %1370 = vmatpush.msra.mxu0 0.0
          %1371 = vmatpush.msra.mxu0 0.0
          %1372 = vmatpush.msra.mxu0 0.0
          %1373 = vmatpush.msra.mxu0 0.0
          %1374 = vmatpush.msra.mxu0 0.0
          %1375 = vmatpush.msra.mxu0 0.0
          %1376 = vmatpush.msra.mxu0 0.0
          %1377 = vmatpush.msra.mxu0 0.0
          %1378 = vmatpush.msra.mxu0 0.0
          %1379 = vmatpush.msra.mxu0 0.0
          %v1380 = vand.u32 %v1362, 4294901760
          %1381 = vmatpush.msra.mxu0 %v1380
          %v1382 = vand.u32 %v1361, 4294901760
          %1383 = vmatpush.msra.mxu0 %v1382
          %v1384 = vand.u32 %v1364, 4294901760
          %v1385 = vsub.f32 %v1364, %v1384
          %v1386 = vand.u32 %v1385, 4294901760
          %v1387 = vsub.f32 %v1385, %v1386
          %v1388 = vand.u32 %v1387, 4294901760
          %1389 = vmatmul.f32.gmra.mxu0 %v1388
          %v1390 = vpop.f32.mrf.mxu0
          %v1391 = vadd.f32 0.0, %v1390
          %1392 = vdwg.mxu0
          %1393 = vmatpush.msra.mxu0 0.0
          %1394 = vmatpush.msra.mxu0 0.0
          %1395 = vmatpush.msra.mxu0 0.0
          %1396 = vmatpush.msra.mxu0 0.0
          %1397 = vmatpush.msra.mxu0 0.0
          %1398 = vmatpush.msra.mxu0 0.0
          %1399 = vmatpush.msra.mxu0 0.0
          %1400 = vmatpush.msra.mxu0 0.0
          %1401 = vmatpush.msra.mxu0 0.0
          %1402 = vmatpush.msra.mxu0 0.0
          %1403 = vmatpush.msra.mxu0 0.0
          %1404 = vmatpush.msra.mxu0 0.0
          %1405 = vmatpush.msra.mxu0 0.0
          %1406 = vmatpush.msra.mxu0 0.0
          %v1407 = vand.u32 %v1362, 4294901760
          %v1408 = vsub.f32 %v1362, %v1407
          %v1409 = vand.u32 %v1408, 4294901760
          %v1410 = vsub.f32 %v1408, %v1409
          %v1411 = vand.u32 %v1410, 4294901760
          %1412 = vmatpush.msra.mxu0 %v1411
          %v1413 = vand.u32 %v1361, 4294901760
          %v1414 = vsub.f32 %v1361, %v1413
          %v1415 = vand.u32 %v1414, 4294901760
          %v1416 = vsub.f32 %v1414, %v1415
          %v1417 = vand.u32 %v1416, 4294901760
          %1418 = vmatpush.msra.mxu0 %v1417
          %v1419 = vand.u32 %v1364, 4294901760
          %1420 = vmatmul.f32.gmra.mxu0 %v1419
          %v1421 = vpop.f32.mrf.mxu0
          %v1422 = vadd.f32 %v1391, %v1421
          %1423 = vdwg.mxu0
          %1424 = vmatpush.msra.mxu0 0.0
          %1425 = vmatpush.msra.mxu0 0.0
          %1426 = vmatpush.msra.mxu0 0.0
          %1427 = vmatpush.msra.mxu0 0.0
          %1428 = vmatpush.msra.mxu0 0.0
          %1429 = vmatpush.msra.mxu0 0.0
          %1430 = vmatpush.msra.mxu0 0.0
          %1431 = vmatpush.msra.mxu0 0.0
          %1432 = vmatpush.msra.mxu0 0.0
          %1433 = vmatpush.msra.mxu0 0.0
          %1434 = vmatpush.msra.mxu0 0.0
          %1435 = vmatpush.msra.mxu0 0.0
          %1436 = vmatpush.msra.mxu0 0.0
          %1437 = vmatpush.msra.mxu0 0.0
          %v1438 = vand.u32 %v1362, 4294901760
          %v1439 = vsub.f32 %v1362, %v1438
          %1440 = vmatpush.msra.mxu0 %v1439
          %v1441 = vand.u32 %v1361, 4294901760
          %v1442 = vsub.f32 %v1361, %v1441
          %1443 = vmatpush.msra.mxu0 %v1442
          %v1444 = vand.u32 %v1364, 4294901760
          %v1445 = vsub.f32 %v1364, %v1444
          %1446 = vmatmul.f32.gmra.mxu0 %v1445
          %v1447 = vpop.f32.mrf.mxu0
          %v1448 = vadd.f32 %v1422, %v1447
          %1449 = vdwg.mxu0
          %1450 = vmatpush.msra.mxu0 0.0
          %1451 = vmatpush.msra.mxu0 0.0
          %1452 = vmatpush.msra.mxu0 0.0
          %1453 = vmatpush.msra.mxu0 0.0
          %1454 = vmatpush.msra.mxu0 0.0
          %1455 = vmatpush.msra.mxu0 0.0
          %1456 = vmatpush.msra.mxu0 0.0
          %1457 = vmatpush.msra.mxu0 0.0
          %1458 = vmatpush.msra.mxu0 0.0
          %1459 = vmatpush.msra.mxu0 0.0
          %1460 = vmatpush.msra.mxu0 0.0
          %1461 = vmatpush.msra.mxu0 0.0
          %1462 = vmatpush.msra.mxu0 0.0
          %1463 = vmatpush.msra.mxu0 0.0
          %v1464 = vand.u32 %v1362, 4294901760
          %1465 = vmatpush.msra.mxu0 %v1464
          %v1466 = vand.u32 %v1361, 4294901760
          %1467 = vmatpush.msra.mxu0 %v1466
          %v1468 = vand.u32 %v1364, 4294901760
          %v1469 = vsub.f32 %v1364, %v1468
          %v1470 = vand.u32 %v1469, 4294901760
          %1471 = vmatmul.f32.gmra.mxu0 %v1470
          %v1472 = vpop.f32.mrf.mxu0
          %v1473 = vadd.f32 %v1448, %v1472
          %1474 = vdwg.mxu0
          %1475 = vmatpush.msra.mxu0 0.0
          %1476 = vmatpush.msra.mxu0 0.0
          %1477 = vmatpush.msra.mxu0 0.0
          %1478 = vmatpush.msra.mxu0 0.0
          %1479 = vmatpush.msra.mxu0 0.0
          %1480 = vmatpush.msra.mxu0 0.0
          %1481 = vmatpush.msra.mxu0 0.0
          %1482 = vmatpush.msra.mxu0 0.0
          %1483 = vmatpush.msra.mxu0 0.0
          %1484 = vmatpush.msra.mxu0 0.0
          %1485 = vmatpush.msra.mxu0 0.0
          %1486 = vmatpush.msra.mxu0 0.0
          %1487 = vmatpush.msra.mxu0 0.0
          %1488 = vmatpush.msra.mxu0 0.0
          %v1489 = vand.u32 %v1362, 4294901760
          %v1490 = vsub.f32 %v1362, %v1489
          %v1491 = vand.u32 %v1490, 4294901760
          %1492 = vmatpush.msra.mxu0 %v1491
          %v1493 = vand.u32 %v1361, 4294901760
          %v1494 = vsub.f32 %v1361, %v1493
          %v1495 = vand.u32 %v1494, 4294901760
          %1496 = vmatpush.msra.mxu0 %v1495
          %v1497 = vand.u32 %v1364, 4294901760
          %1498 = vmatmul.f32.gmra.mxu0 %v1497
          %v1499 = vpop.f32.mrf.mxu0
          %v1500 = vadd.f32 %v1473, %v1499
          %1501 = vdwg.mxu0
          %1502 = vmatpush.msra.mxu0 0.0
          %1503 = vmatpush.msra.mxu0 0.0
          %1504 = vmatpush.msra.mxu0 0.0
          %1505 = vmatpush.msra.mxu0 0.0
          %1506 = vmatpush.msra.mxu0 0.0
          %1507 = vmatpush.msra.mxu0 0.0
          %1508 = vmatpush.msra.mxu0 0.0
          %1509 = vmatpush.msra.mxu0 0.0
          %1510 = vmatpush.msra.mxu0 0.0
          %1511 = vmatpush.msra.mxu0 0.0
          %1512 = vmatpush.msra.mxu0 0.0
          %1513 = vmatpush.msra.mxu0 0.0
          %1514 = vmatpush.msra.mxu0 0.0
          %1515 = vmatpush.msra.mxu0 0.0
          %v1516 = vand.u32 %v1362, 4294901760
          %1517 = vmatpush.msra.mxu0 %v1516
          %v1518 = vand.u32 %v1361, 4294901760
          %1519 = vmatpush.msra.mxu0 %v1518
          %v1520 = vand.u32 %v1364, 4294901760
          %1521 = vmatmul.f32.gmra.mxu0 %v1520
          %v1522 = vpop.f32.mrf.mxu0
          %v1523 = vadd.f32 %v1500, %v1522
          %1524 = vdwg.mxu0
          %v1525 = vadd.f32 %v1358, %v1523
          %v1526 = vld [vmem:[#allocation2 + $0x3] sm:$0xf]
          %s1527 = scalar_lea.vmem [#allocation10], 48
          %v1528 = vld [vmem:[%s1527] sm:$0xff]
          %v1529 = vld [vmem:[%s1527 + $0x8] sm:$0xff]
          %v1531 = vsel %vm343, %v1526, 0
          %1533 = vmatpush.msra.mxu0 0.0
          %1534 = vmatpush.msra.mxu0 0.0
          %1535 = vmatpush.msra.mxu0 0.0
          %1536 = vmatpush.msra.mxu0 0.0
          %1537 = vmatpush.msra.mxu0 0.0
          %1538 = vmatpush.msra.mxu0 0.0
          %1539 = vmatpush.msra.mxu0 0.0
          %1540 = vmatpush.msra.mxu0 0.0
          %1541 = vmatpush.msra.mxu0 0.0
          %1542 = vmatpush.msra.mxu0 0.0
          %1543 = vmatpush.msra.mxu0 0.0
          %1544 = vmatpush.msra.mxu0 0.0
          %1545 = vmatpush.msra.mxu0 0.0
          %1546 = vmatpush.msra.mxu0 0.0
          %v1547 = vand.u32 %v1529, 4294901760
          %1548 = vmatpush.msra.mxu0 %v1547
          %v1549 = vand.u32 %v1528, 4294901760
          %1550 = vmatpush.msra.mxu0 %v1549
          %v1551 = vand.u32 %v1531, 4294901760
          %v1552 = vsub.f32 %v1531, %v1551
          %v1553 = vand.u32 %v1552, 4294901760
          %v1554 = vsub.f32 %v1552, %v1553
          %v1555 = vand.u32 %v1554, 4294901760
          %1556 = vmatmul.f32.gmra.mxu0 %v1555
          %v1557 = vpop.f32.mrf.mxu0
          %v1558 = vadd.f32 0.0, %v1557
          %1559 = vdwg.mxu0
          %1560 = vmatpush.msra.mxu0 0.0
          %1561 = vmatpush.msra.mxu0 0.0
          %1562 = vmatpush.msra.mxu0 0.0
          %1563 = vmatpush.msra.mxu0 0.0
          %1564 = vmatpush.msra.mxu0 0.0
          %1565 = vmatpush.msra.mxu0 0.0
          %1566 = vmatpush.msra.mxu0 0.0
          %1567 = vmatpush.msra.mxu0 0.0
          %1568 = vmatpush.msra.mxu0 0.0
          %1569 = vmatpush.msra.mxu0 0.0
          %1570 = vmatpush.msra.mxu0 0.0
          %1571 = vmatpush.msra.mxu0 0.0
          %1572 = vmatpush.msra.mxu0 0.0
          %1573 = vmatpush.msra.mxu0 0.0
          %v1574 = vand.u32 %v1529, 4294901760
          %v1575 = vsub.f32 %v1529, %v1574
          %v1576 = vand.u32 %v1575, 4294901760
          %v1577 = vsub.f32 %v1575, %v1576
          %v1578 = vand.u32 %v1577, 4294901760
          %1579 = vmatpush.msra.mxu0 %v1578
          %v1580 = vand.u32 %v1528, 4294901760
          %v1581 = vsub.f32 %v1528, %v1580
          %v1582 = vand.u32 %v1581, 4294901760
          %v1583 = vsub.f32 %v1581, %v1582
          %v1584 = vand.u32 %v1583, 4294901760
          %1585 = vmatpush.msra.mxu0 %v1584
          %v1586 = vand.u32 %v1531, 4294901760
          %1587 = vmatmul.f32.gmra.mxu0 %v1586
          %v1588 = vpop.f32.mrf.mxu0
          %v1589 = vadd.f32 %v1558, %v1588
          %1590 = vdwg.mxu0
          %1591 = vmatpush.msra.mxu0 0.0
          %1592 = vmatpush.msra.mxu0 0.0
          %1593 = vmatpush.msra.mxu0 0.0
          %1594 = vmatpush.msra.mxu0 0.0
          %1595 = vmatpush.msra.mxu0 0.0
          %1596 = vmatpush.msra.mxu0 0.0
          %1597 = vmatpush.msra.mxu0 0.0
          %1598 = vmatpush.msra.mxu0 0.0
          %1599 = vmatpush.msra.mxu0 0.0
          %1600 = vmatpush.msra.mxu0 0.0
          %1601 = vmatpush.msra.mxu0 0.0
          %1602 = vmatpush.msra.mxu0 0.0
          %1603 = vmatpush.msra.mxu0 0.0
          %1604 = vmatpush.msra.mxu0 0.0
          %v1605 = vand.u32 %v1529, 4294901760
          %v1606 = vsub.f32 %v1529, %v1605
          %1607 = vmatpush.msra.mxu0 %v1606
          %v1608 = vand.u32 %v1528, 4294901760
          %v1609 = vsub.f32 %v1528, %v1608
          %1610 = vmatpush.msra.mxu0 %v1609
          %v1611 = vand.u32 %v1531, 4294901760
          %v1612 = vsub.f32 %v1531, %v1611
          %1613 = vmatmul.f32.gmra.mxu0 %v1612
          %v1614 = vpop.f32.mrf.mxu0
          %v1615 = vadd.f32 %v1589, %v1614
          %1616 = vdwg.mxu0
          %1617 = vmatpush.msra.mxu0 0.0
          %1618 = vmatpush.msra.mxu0 0.0
          %1619 = vmatpush.msra.mxu0 0.0
          %1620 = vmatpush.msra.mxu0 0.0
          %1621 = vmatpush.msra.mxu0 0.0
          %1622 = vmatpush.msra.mxu0 0.0
          %1623 = vmatpush.msra.mxu0 0.0
          %1624 = vmatpush.msra.mxu0 0.0
          %1625 = vmatpush.msra.mxu0 0.0
          %1626 = vmatpush.msra.mxu0 0.0
          %1627 = vmatpush.msra.mxu0 0.0
          %1628 = vmatpush.msra.mxu0 0.0
          %1629 = vmatpush.msra.mxu0 0.0
          %1630 = vmatpush.msra.mxu0 0.0
          %v1631 = vand.u32 %v1529, 4294901760
          %1632 = vmatpush.msra.mxu0 %v1631
          %v1633 = vand.u32 %v1528, 4294901760
          %1634 = vmatpush.msra.mxu0 %v1633
          %v1635 = vand.u32 %v1531, 4294901760
          %v1636 = vsub.f32 %v1531, %v1635
          %v1637 = vand.u32 %v1636, 4294901760
          %1638 = vmatmul.f32.gmra.mxu0 %v1637
          %v1639 = vpop.f32.mrf.mxu0
          %v1640 = vadd.f32 %v1615, %v1639
          %1641 = vdwg.mxu0
          %1642 = vmatpush.msra.mxu0 0.0
          %1643 = vmatpush.msra.mxu0 0.0
          %1644 = vmatpush.msra.mxu0 0.0
          %1645 = vmatpush.msra.mxu0 0.0
          %1646 = vmatpush.msra.mxu0 0.0
          %1647 = vmatpush.msra.mxu0 0.0
          %1648 = vmatpush.msra.mxu0 0.0
          %1649 = vmatpush.msra.mxu0 0.0
          %1650 = vmatpush.msra.mxu0 0.0
          %1651 = vmatpush.msra.mxu0 0.0
          %1652 = vmatpush.msra.mxu0 0.0
          %1653 = vmatpush.msra.mxu0 0.0
          %1654 = vmatpush.msra.mxu0 0.0
          %1655 = vmatpush.msra.mxu0 0.0
          %v1656 = vand.u32 %v1529, 4294901760
          %v1657 = vsub.f32 %v1529, %v1656
          %v1658 = vand.u32 %v1657, 4294901760
          %1659 = vmatpush.msra.mxu0 %v1658
          %v1660 = vand.u32 %v1528, 4294901760
          %v1661 = vsub.f32 %v1528, %v1660
          %v1662 = vand.u32 %v1661, 4294901760
          %1663 = vmatpush.msra.mxu0 %v1662
          %v1664 = vand.u32 %v1531, 4294901760
          %1665 = vmatmul.f32.gmra.mxu0 %v1664
          %v1666 = vpop.f32.mrf.mxu0
          %v1667 = vadd.f32 %v1640, %v1666
          %1668 = vdwg.mxu0
          %1669 = vmatpush.msra.mxu0 0.0
          %1670 = vmatpush.msra.mxu0 0.0
          %1671 = vmatpush.msra.mxu0 0.0
          %1672 = vmatpush.msra.mxu0 0.0
          %1673 = vmatpush.msra.mxu0 0.0
          %1674 = vmatpush.msra.mxu0 0.0
          %1675 = vmatpush.msra.mxu0 0.0
          %1676 = vmatpush.msra.mxu0 0.0
          %1677 = vmatpush.msra.mxu0 0.0
          %1678 = vmatpush.msra.mxu0 0.0
          %1679 = vmatpush.msra.mxu0 0.0
          %1680 = vmatpush.msra.mxu0 0.0
          %1681 = vmatpush.msra.mxu0 0.0
          %1682 = vmatpush.msra.mxu0 0.0
          %v1683 = vand.u32 %v1529, 4294901760
          %1684 = vmatpush.msra.mxu0 %v1683
          %v1685 = vand.u32 %v1528, 4294901760
          %1686 = vmatpush.msra.mxu0 %v1685
          %v1687 = vand.u32 %v1531, 4294901760
          %1688 = vmatmul.f32.gmra.mxu0 %v1687
          %v1689 = vpop.f32.mrf.mxu0
          %v1690 = vadd.f32 %v1667, %v1689
          %1691 = vdwg.mxu0
          %v1692 = vadd.f32 %v1525, %v1690
          %v1693 = vld [vmem:[#allocation3 + $0x3] sm:$0xf]
          %s1694 = scalar_lea.vmem [#allocation10], 160
          %v1695 = vld [vmem:[%s1694] sm:$0xff]
          %v1696 = vld [vmem:[%s1694 + $0x8] sm:$0xff]
          %v1698 = vsel %vm343, %v1693, 0
          %1700 = vmatpush.msra.mxu0 0.0
          %1701 = vmatpush.msra.mxu0 0.0
          %1702 = vmatpush.msra.mxu0 0.0
          %1703 = vmatpush.msra.mxu0 0.0
          %1704 = vmatpush.msra.mxu0 0.0
          %1705 = vmatpush.msra.mxu0 0.0
          %1706 = vmatpush.msra.mxu0 0.0
          %1707 = vmatpush.msra.mxu0 0.0
          %1708 = vmatpush.msra.mxu0 0.0
          %1709 = vmatpush.msra.mxu0 0.0
          %1710 = vmatpush.msra.mxu0 0.0
          %1711 = vmatpush.msra.mxu0 0.0
          %1712 = vmatpush.msra.mxu0 0.0
          %1713 = vmatpush.msra.mxu0 0.0
          %v1714 = vand.u32 %v1696, 4294901760
          %1715 = vmatpush.msra.mxu0 %v1714
          %v1716 = vand.u32 %v1695, 4294901760
          %1717 = vmatpush.msra.mxu0 %v1716
          %v1718 = vand.u32 %v1698, 4294901760
          %v1719 = vsub.f32 %v1698, %v1718
          %v1720 = vand.u32 %v1719, 4294901760
          %v1721 = vsub.f32 %v1719, %v1720
          %v1722 = vand.u32 %v1721, 4294901760
          %1723 = vmatmul.f32.gmra.mxu0 %v1722
          %v1724 = vpop.f32.mrf.mxu0
          %v1725 = vadd.f32 0.0, %v1724
          %1726 = vdwg.mxu0
          %1727 = vmatpush.msra.mxu0 0.0
          %1728 = vmatpush.msra.mxu0 0.0
          %1729 = vmatpush.msra.mxu0 0.0
          %1730 = vmatpush.msra.mxu0 0.0
          %1731 = vmatpush.msra.mxu0 0.0
          %1732 = vmatpush.msra.mxu0 0.0
          %1733 = vmatpush.msra.mxu0 0.0
          %1734 = vmatpush.msra.mxu0 0.0
          %1735 = vmatpush.msra.mxu0 0.0
          %1736 = vmatpush.msra.mxu0 0.0
          %1737 = vmatpush.msra.mxu0 0.0
          %1738 = vmatpush.msra.mxu0 0.0
          %1739 = vmatpush.msra.mxu0 0.0
          %1740 = vmatpush.msra.mxu0 0.0
          %v1741 = vand.u32 %v1696, 4294901760
          %v1742 = vsub.f32 %v1696, %v1741
          %v1743 = vand.u32 %v1742, 4294901760
          %v1744 = vsub.f32 %v1742, %v1743
          %v1745 = vand.u32 %v1744, 4294901760
          %1746 = vmatpush.msra.mxu0 %v1745
          %v1747 = vand.u32 %v1695, 4294901760
          %v1748 = vsub.f32 %v1695, %v1747
          %v1749 = vand.u32 %v1748, 4294901760
          %v1750 = vsub.f32 %v1748, %v1749
          %v1751 = vand.u32 %v1750, 4294901760
          %1752 = vmatpush.msra.mxu0 %v1751
          %v1753 = vand.u32 %v1698, 4294901760
          %1754 = vmatmul.f32.gmra.mxu0 %v1753
          %v1755 = vpop.f32.mrf.mxu0
          %v1756 = vadd.f32 %v1725, %v1755
          %1757 = vdwg.mxu0
          %1758 = vmatpush.msra.mxu0 0.0
          %1759 = vmatpush.msra.mxu0 0.0
          %1760 = vmatpush.msra.mxu0 0.0
          %1761 = vmatpush.msra.mxu0 0.0
          %1762 = vmatpush.msra.mxu0 0.0
          %1763 = vmatpush.msra.mxu0 0.0
          %1764 = vmatpush.msra.mxu0 0.0
          %1765 = vmatpush.msra.mxu0 0.0
          %1766 = vmatpush.msra.mxu0 0.0
          %1767 = vmatpush.msra.mxu0 0.0
          %1768 = vmatpush.msra.mxu0 0.0
          %1769 = vmatpush.msra.mxu0 0.0
          %1770 = vmatpush.msra.mxu0 0.0
          %1771 = vmatpush.msra.mxu0 0.0
          %v1772 = vand.u32 %v1696, 4294901760
          %v1773 = vsub.f32 %v1696, %v1772
          %1774 = vmatpush.msra.mxu0 %v1773
          %v1775 = vand.u32 %v1695, 4294901760
          %v1776 = vsub.f32 %v1695, %v1775
          %1777 = vmatpush.msra.mxu0 %v1776
          %v1778 = vand.u32 %v1698, 4294901760
          %v1779 = vsub.f32 %v1698, %v1778
          %1780 = vmatmul.f32.gmra.mxu0 %v1779
          %v1781 = vpop.f32.mrf.mxu0
          %v1782 = vadd.f32 %v1756, %v1781
          %1783 = vdwg.mxu0
          %1784 = vmatpush.msra.mxu0 0.0
          %1785 = vmatpush.msra.mxu0 0.0
          %1786 = vmatpush.msra.mxu0 0.0
          %1787 = vmatpush.msra.mxu0 0.0
          %1788 = vmatpush.msra.mxu0 0.0
          %1789 = vmatpush.msra.mxu0 0.0
          %1790 = vmatpush.msra.mxu0 0.0
          %1791 = vmatpush.msra.mxu0 0.0
          %1792 = vmatpush.msra.mxu0 0.0
          %1793 = vmatpush.msra.mxu0 0.0
          %1794 = vmatpush.msra.mxu0 0.0
          %1795 = vmatpush.msra.mxu0 0.0
          %1796 = vmatpush.msra.mxu0 0.0
          %1797 = vmatpush.msra.mxu0 0.0
          %v1798 = vand.u32 %v1696, 4294901760
          %1799 = vmatpush.msra.mxu0 %v1798
          %v1800 = vand.u32 %v1695, 4294901760
          %1801 = vmatpush.msra.mxu0 %v1800
          %v1802 = vand.u32 %v1698, 4294901760
          %v1803 = vsub.f32 %v1698, %v1802
          %v1804 = vand.u32 %v1803, 4294901760
          %1805 = vmatmul.f32.gmra.mxu0 %v1804
          %v1806 = vpop.f32.mrf.mxu0
          %v1807 = vadd.f32 %v1782, %v1806
          %1808 = vdwg.mxu0
          %1809 = vmatpush.msra.mxu0 0.0
          %1810 = vmatpush.msra.mxu0 0.0
          %1811 = vmatpush.msra.mxu0 0.0
          %1812 = vmatpush.msra.mxu0 0.0
          %1813 = vmatpush.msra.mxu0 0.0
          %1814 = vmatpush.msra.mxu0 0.0
          %1815 = vmatpush.msra.mxu0 0.0
          %1816 = vmatpush.msra.mxu0 0.0
          %1817 = vmatpush.msra.mxu0 0.0
          %1818 = vmatpush.msra.mxu0 0.0
          %1819 = vmatpush.msra.mxu0 0.0
          %1820 = vmatpush.msra.mxu0 0.0
          %1821 = vmatpush.msra.mxu0 0.0
          %1822 = vmatpush.msra.mxu0 0.0
          %v1823 = vand.u32 %v1696, 4294901760
          %v1824 = vsub.f32 %v1696, %v1823
          %v1825 = vand.u32 %v1824, 4294901760
          %1826 = vmatpush.msra.mxu0 %v1825
          %v1827 = vand.u32 %v1695, 4294901760
          %v1828 = vsub.f32 %v1695, %v1827
          %v1829 = vand.u32 %v1828, 4294901760
          %1830 = vmatpush.msra.mxu0 %v1829
          %v1831 = vand.u32 %v1698, 4294901760
          %1832 = vmatmul.f32.gmra.mxu0 %v1831
          %v1833 = vpop.f32.mrf.mxu0
          %v1834 = vadd.f32 %v1807, %v1833
          %1835 = vdwg.mxu0
          %1836 = vmatpush.msra.mxu0 0.0
          %1837 = vmatpush.msra.mxu0 0.0
          %1838 = vmatpush.msra.mxu0 0.0
          %1839 = vmatpush.msra.mxu0 0.0
          %1840 = vmatpush.msra.mxu0 0.0
          %1841 = vmatpush.msra.mxu0 0.0
          %1842 = vmatpush.msra.mxu0 0.0
          %1843 = vmatpush.msra.mxu0 0.0
          %1844 = vmatpush.msra.mxu0 0.0
          %1845 = vmatpush.msra.mxu0 0.0
          %1846 = vmatpush.msra.mxu0 0.0
          %1847 = vmatpush.msra.mxu0 0.0
          %1848 = vmatpush.msra.mxu0 0.0
          %1849 = vmatpush.msra.mxu0 0.0
          %v1850 = vand.u32 %v1696, 4294901760
          %1851 = vmatpush.msra.mxu0 %v1850
          %v1852 = vand.u32 %v1695, 4294901760
          %1853 = vmatpush.msra.mxu0 %v1852
          %v1854 = vand.u32 %v1698, 4294901760
          %1855 = vmatmul.f32.gmra.mxu0 %v1854
          %v1856 = vpop.f32.mrf.mxu0
          %v1857 = vadd.f32 %v1834, %v1856
          %1858 = vdwg.mxu0
          %v1859 = vadd.f32 %v1692, %v1857
          %v1860 = vld [vmem:[#allocation2 + $0x4] sm:$0xf]
          %s1861 = scalar_lea.vmem [#allocation10], 64
          %v1862 = vld [vmem:[%s1861] sm:$0xff]
          %v1863 = vld [vmem:[%s1861 + $0x8] sm:$0xff]
          %v1865 = vsel %vm343, %v1860, 0
          %1867 = vmatpush.msra.mxu0 0.0
          %1868 = vmatpush.msra.mxu0 0.0
          %1869 = vmatpush.msra.mxu0 0.0
          %1870 = vmatpush.msra.mxu0 0.0
          %1871 = vmatpush.msra.mxu0 0.0
          %1872 = vmatpush.msra.mxu0 0.0
          %1873 = vmatpush.msra.mxu0 0.0
          %1874 = vmatpush.msra.mxu0 0.0
          %1875 = vmatpush.msra.mxu0 0.0
          %1876 = vmatpush.msra.mxu0 0.0
          %1877 = vmatpush.msra.mxu0 0.0
          %1878 = vmatpush.msra.mxu0 0.0
          %1879 = vmatpush.msra.mxu0 0.0
          %1880 = vmatpush.msra.mxu0 0.0
          %v1881 = vand.u32 %v1863, 4294901760
          %1882 = vmatpush.msra.mxu0 %v1881
          %v1883 = vand.u32 %v1862, 4294901760
          %1884 = vmatpush.msra.mxu0 %v1883
          %v1885 = vand.u32 %v1865, 4294901760
          %v1886 = vsub.f32 %v1865, %v1885
          %v1887 = vand.u32 %v1886, 4294901760
          %v1888 = vsub.f32 %v1886, %v1887
          %v1889 = vand.u32 %v1888, 4294901760
          %1890 = vmatmul.f32.gmra.mxu0 %v1889
          %v1891 = vpop.f32.mrf.mxu0
          %v1892 = vadd.f32 0.0, %v1891
          %1893 = vdwg.mxu0
          %1894 = vmatpush.msra.mxu0 0.0
          %1895 = vmatpush.msra.mxu0 0.0
          %1896 = vmatpush.msra.mxu0 0.0
          %1897 = vmatpush.msra.mxu0 0.0
          %1898 = vmatpush.msra.mxu0 0.0
          %1899 = vmatpush.msra.mxu0 0.0
          %1900 = vmatpush.msra.mxu0 0.0
          %1901 = vmatpush.msra.mxu0 0.0
          %1902 = vmatpush.msra.mxu0 0.0
          %1903 = vmatpush.msra.mxu0 0.0
          %1904 = vmatpush.msra.mxu0 0.0
          %1905 = vmatpush.msra.mxu0 0.0
          %1906 = vmatpush.msra.mxu0 0.0
          %1907 = vmatpush.msra.mxu0 0.0
          %v1908 = vand.u32 %v1863, 4294901760
          %v1909 = vsub.f32 %v1863, %v1908
          %v1910 = vand.u32 %v1909, 4294901760
          %v1911 = vsub.f32 %v1909, %v1910
          %v1912 = vand.u32 %v1911, 4294901760
          %1913 = vmatpush.msra.mxu0 %v1912
          %v1914 = vand.u32 %v1862, 4294901760
          %v1915 = vsub.f32 %v1862, %v1914
          %v1916 = vand.u32 %v1915, 4294901760
          %v1917 = vsub.f32 %v1915, %v1916
          %v1918 = vand.u32 %v1917, 4294901760
          %1919 = vmatpush.msra.mxu0 %v1918
          %v1920 = vand.u32 %v1865, 4294901760
          %1921 = vmatmul.f32.gmra.mxu0 %v1920
          %v1922 = vpop.f32.mrf.mxu0
          %v1923 = vadd.f32 %v1892, %v1922
          %1924 = vdwg.mxu0
          %1925 = vmatpush.msra.mxu0 0.0
          %1926 = vmatpush.msra.mxu0 0.0
          %1927 = vmatpush.msra.mxu0 0.0
          %1928 = vmatpush.msra.mxu0 0.0
          %1929 = vmatpush.msra.mxu0 0.0
          %1930 = vmatpush.msra.mxu0 0.0
          %1931 = vmatpush.msra.mxu0 0.0
          %1932 = vmatpush.msra.mxu0 0.0
          %1933 = vmatpush.msra.mxu0 0.0
          %1934 = vmatpush.msra.mxu0 0.0
          %1935 = vmatpush.msra.mxu0 0.0
          %1936 = vmatpush.msra.mxu0 0.0
          %1937 = vmatpush.msra.mxu0 0.0
          %1938 = vmatpush.msra.mxu0 0.0
          %v1939 = vand.u32 %v1863, 4294901760
          %v1940 = vsub.f32 %v1863, %v1939
          %1941 = vmatpush.msra.mxu0 %v1940
          %v1942 = vand.u32 %v1862, 4294901760
          %v1943 = vsub.f32 %v1862, %v1942
          %1944 = vmatpush.msra.mxu0 %v1943
          %v1945 = vand.u32 %v1865, 4294901760
          %v1946 = vsub.f32 %v1865, %v1945
          %1947 = vmatmul.f32.gmra.mxu0 %v1946
          %v1948 = vpop.f32.mrf.mxu0
          %v1949 = vadd.f32 %v1923, %v1948
          %1950 = vdwg.mxu0
          %1951 = vmatpush.msra.mxu0 0.0
          %1952 = vmatpush.msra.mxu0 0.0
          %1953 = vmatpush.msra.mxu0 0.0
          %1954 = vmatpush.msra.mxu0 0.0
          %1955 = vmatpush.msra.mxu0 0.0
          %1956 = vmatpush.msra.mxu0 0.0
          %1957 = vmatpush.msra.mxu0 0.0
          %1958 = vmatpush.msra.mxu0 0.0
          %1959 = vmatpush.msra.mxu0 0.0
          %1960 = vmatpush.msra.mxu0 0.0
          %1961 = vmatpush.msra.mxu0 0.0
          %1962 = vmatpush.msra.mxu0 0.0
          %1963 = vmatpush.msra.mxu0 0.0
          %1964 = vmatpush.msra.mxu0 0.0
          %v1965 = vand.u32 %v1863, 4294901760
          %1966 = vmatpush.msra.mxu0 %v1965
          %v1967 = vand.u32 %v1862, 4294901760
          %1968 = vmatpush.msra.mxu0 %v1967
          %v1969 = vand.u32 %v1865, 4294901760
          %v1970 = vsub.f32 %v1865, %v1969
          %v1971 = vand.u32 %v1970, 4294901760
          %1972 = vmatmul.f32.gmra.mxu0 %v1971
          %v1973 = vpop.f32.mrf.mxu0
          %v1974 = vadd.f32 %v1949, %v1973
          %1975 = vdwg.mxu0
          %1976 = vmatpush.msra.mxu0 0.0
          %1977 = vmatpush.msra.mxu0 0.0
          %1978 = vmatpush.msra.mxu0 0.0
          %1979 = vmatpush.msra.mxu0 0.0
          %1980 = vmatpush.msra.mxu0 0.0
          %1981 = vmatpush.msra.mxu0 0.0
          %1982 = vmatpush.msra.mxu0 0.0
          %1983 = vmatpush.msra.mxu0 0.0
          %1984 = vmatpush.msra.mxu0 0.0
          %1985 = vmatpush.msra.mxu0 0.0
          %1986 = vmatpush.msra.mxu0 0.0
          %1987 = vmatpush.msra.mxu0 0.0
          %1988 = vmatpush.msra.mxu0 0.0
          %1989 = vmatpush.msra.mxu0 0.0
          %v1990 = vand.u32 %v1863, 4294901760
          %v1991 = vsub.f32 %v1863, %v1990
          %v1992 = vand.u32 %v1991, 4294901760
          %1993 = vmatpush.msra.mxu0 %v1992
          %v1994 = vand.u32 %v1862, 4294901760
          %v1995 = vsub.f32 %v1862, %v1994
          %v1996 = vand.u32 %v1995, 4294901760
          %1997 = vmatpush.msra.mxu0 %v1996
          %v1998 = vand.u32 %v1865, 4294901760
          %1999 = vmatmul.f32.gmra.mxu0 %v1998
          %v2000 = vpop.f32.mrf.mxu0
          %v2001 = vadd.f32 %v1974, %v2000
          %2002 = vdwg.mxu0
          %2003 = vmatpush.msra.mxu0 0.0
          %2004 = vmatpush.msra.mxu0 0.0
          %2005 = vmatpush.msra.mxu0 0.0
          %2006 = vmatpush.msra.mxu0 0.0
          %2007 = vmatpush.msra.mxu0 0.0
          %2008 = vmatpush.msra.mxu0 0.0
          %2009 = vmatpush.msra.mxu0 0.0
          %2010 = vmatpush.msra.mxu0 0.0
          %2011 = vmatpush.msra.mxu0 0.0
          %2012 = vmatpush.msra.mxu0 0.0
          %2013 = vmatpush.msra.mxu0 0.0
          %2014 = vmatpush.msra.mxu0 0.0
          %2015 = vmatpush.msra.mxu0 0.0
          %2016 = vmatpush.msra.mxu0 0.0
          %v2017 = vand.u32 %v1863, 4294901760
          %2018 = vmatpush.msra.mxu0 %v2017
          %v2019 = vand.u32 %v1862, 4294901760
          %2020 = vmatpush.msra.mxu0 %v2019
          %v2021 = vand.u32 %v1865, 4294901760
          %2022 = vmatmul.f32.gmra.mxu0 %v2021
          %v2023 = vpop.f32.mrf.mxu0
          %v2024 = vadd.f32 %v2001, %v2023
          %2025 = vdwg.mxu0
          %v2026 = vadd.f32 %v1859, %v2024
          %v2027 = vld [vmem:[#allocation3 + $0x4] sm:$0xf]
          %s2028 = scalar_lea.vmem [#allocation10], 176
          %v2029 = vld [vmem:[%s2028] sm:$0xff]
          %v2030 = vld [vmem:[%s2028 + $0x8] sm:$0xff]
          %v2032 = vsel %vm343, %v2027, 0
          %2034 = vmatpush.msra.mxu0 0.0
          %2035 = vmatpush.msra.mxu0 0.0
          %2036 = vmatpush.msra.mxu0 0.0
          %2037 = vmatpush.msra.mxu0 0.0
          %2038 = vmatpush.msra.mxu0 0.0
          %2039 = vmatpush.msra.mxu0 0.0
          %2040 = vmatpush.msra.mxu0 0.0
          %2041 = vmatpush.msra.mxu0 0.0
          %2042 = vmatpush.msra.mxu0 0.0
          %2043 = vmatpush.msra.mxu0 0.0
          %2044 = vmatpush.msra.mxu0 0.0
          %2045 = vmatpush.msra.mxu0 0.0
          %2046 = vmatpush.msra.mxu0 0.0
          %2047 = vmatpush.msra.mxu0 0.0
          %v2048 = vand.u32 %v2030, 4294901760
          %2049 = vmatpush.msra.mxu0 %v2048
          %v2050 = vand.u32 %v2029, 4294901760
          %2051 = vmatpush.msra.mxu0 %v2050
          %v2052 = vand.u32 %v2032, 4294901760
          %v2053 = vsub.f32 %v2032, %v2052
          %v2054 = vand.u32 %v2053, 4294901760
          %v2055 = vsub.f32 %v2053, %v2054
          %v2056 = vand.u32 %v2055, 4294901760
          %2057 = vmatmul.f32.gmra.mxu0 %v2056
          %v2058 = vpop.f32.mrf.mxu0
          %v2059 = vadd.f32 0.0, %v2058
          %2060 = vdwg.mxu0
          %2061 = vmatpush.msra.mxu0 0.0
          %2062 = vmatpush.msra.mxu0 0.0
          %2063 = vmatpush.msra.mxu0 0.0
          %2064 = vmatpush.msra.mxu0 0.0
          %2065 = vmatpush.msra.mxu0 0.0
          %2066 = vmatpush.msra.mxu0 0.0
          %2067 = vmatpush.msra.mxu0 0.0
          %2068 = vmatpush.msra.mxu0 0.0
          %2069 = vmatpush.msra.mxu0 0.0
          %2070 = vmatpush.msra.mxu0 0.0
          %2071 = vmatpush.msra.mxu0 0.0
          %2072 = vmatpush.msra.mxu0 0.0
          %2073 = vmatpush.msra.mxu0 0.0
          %2074 = vmatpush.msra.mxu0 0.0
          %v2075 = vand.u32 %v2030, 4294901760
          %v2076 = vsub.f32 %v2030, %v2075
          %v2077 = vand.u32 %v2076, 4294901760
          %v2078 = vsub.f32 %v2076, %v2077
          %v2079 = vand.u32 %v2078, 4294901760
          %2080 = vmatpush.msra.mxu0 %v2079
          %v2081 = vand.u32 %v2029, 4294901760
          %v2082 = vsub.f32 %v2029, %v2081
          %v2083 = vand.u32 %v2082, 4294901760
          %v2084 = vsub.f32 %v2082, %v2083
          %v2085 = vand.u32 %v2084, 4294901760
          %2086 = vmatpush.msra.mxu0 %v2085
          %v2087 = vand.u32 %v2032, 4294901760
          %2088 = vmatmul.f32.gmra.mxu0 %v2087
          %v2089 = vpop.f32.mrf.mxu0
          %v2090 = vadd.f32 %v2059, %v2089
          %2091 = vdwg.mxu0
          %2092 = vmatpush.msra.mxu0 0.0
          %2093 = vmatpush.msra.mxu0 0.0
          %2094 = vmatpush.msra.mxu0 0.0
          %2095 = vmatpush.msra.mxu0 0.0
          %2096 = vmatpush.msra.mxu0 0.0
          %2097 = vmatpush.msra.mxu0 0.0
          %2098 = vmatpush.msra.mxu0 0.0
          %2099 = vmatpush.msra.mxu0 0.0
          %2100 = vmatpush.msra.mxu0 0.0
          %2101 = vmatpush.msra.mxu0 0.0
          %2102 = vmatpush.msra.mxu0 0.0
          %2103 = vmatpush.msra.mxu0 0.0
          %2104 = vmatpush.msra.mxu0 0.0
          %2105 = vmatpush.msra.mxu0 0.0
          %v2106 = vand.u32 %v2030, 4294901760
          %v2107 = vsub.f32 %v2030, %v2106
          %2108 = vmatpush.msra.mxu0 %v2107
          %v2109 = vand.u32 %v2029, 4294901760
          %v2110 = vsub.f32 %v2029, %v2109
          %2111 = vmatpush.msra.mxu0 %v2110
          %v2112 = vand.u32 %v2032, 4294901760
          %v2113 = vsub.f32 %v2032, %v2112
          %2114 = vmatmul.f32.gmra.mxu0 %v2113
          %v2115 = vpop.f32.mrf.mxu0
          %v2116 = vadd.f32 %v2090, %v2115
          %2117 = vdwg.mxu0
          %2118 = vmatpush.msra.mxu0 0.0
          %2119 = vmatpush.msra.mxu0 0.0
          %2120 = vmatpush.msra.mxu0 0.0
          %2121 = vmatpush.msra.mxu0 0.0
          %2122 = vmatpush.msra.mxu0 0.0
          %2123 = vmatpush.msra.mxu0 0.0
          %2124 = vmatpush.msra.mxu0 0.0
          %2125 = vmatpush.msra.mxu0 0.0
          %2126 = vmatpush.msra.mxu0 0.0
          %2127 = vmatpush.msra.mxu0 0.0
          %2128 = vmatpush.msra.mxu0 0.0
          %2129 = vmatpush.msra.mxu0 0.0
          %2130 = vmatpush.msra.mxu0 0.0
          %2131 = vmatpush.msra.mxu0 0.0
          %v2132 = vand.u32 %v2030, 4294901760
          %2133 = vmatpush.msra.mxu0 %v2132
          %v2134 = vand.u32 %v2029, 4294901760
          %2135 = vmatpush.msra.mxu0 %v2134
          %v2136 = vand.u32 %v2032, 4294901760
          %v2137 = vsub.f32 %v2032, %v2136
          %v2138 = vand.u32 %v2137, 4294901760
          %2139 = vmatmul.f32.gmra.mxu0 %v2138
          %v2140 = vpop.f32.mrf.mxu0
          %v2141 = vadd.f32 %v2116, %v2140
          %2142 = vdwg.mxu0
          %2143 = vmatpush.msra.mxu0 0.0
          %2144 = vmatpush.msra.mxu0 0.0
          %2145 = vmatpush.msra.mxu0 0.0
          %2146 = vmatpush.msra.mxu0 0.0
          %2147 = vmatpush.msra.mxu0 0.0
          %2148 = vmatpush.msra.mxu0 0.0
          %2149 = vmatpush.msra.mxu0 0.0
          %2150 = vmatpush.msra.mxu0 0.0
          %2151 = vmatpush.msra.mxu0 0.0
          %2152 = vmatpush.msra.mxu0 0.0
          %2153 = vmatpush.msra.mxu0 0.0
          %2154 = vmatpush.msra.mxu0 0.0
          %2155 = vmatpush.msra.mxu0 0.0
          %2156 = vmatpush.msra.mxu0 0.0
          %v2157 = vand.u32 %v2030, 4294901760
          %v2158 = vsub.f32 %v2030, %v2157
          %v2159 = vand.u32 %v2158, 4294901760
          %2160 = vmatpush.msra.mxu0 %v2159
          %v2161 = vand.u32 %v2029, 4294901760
          %v2162 = vsub.f32 %v2029, %v2161
          %v2163 = vand.u32 %v2162, 4294901760
          %2164 = vmatpush.msra.mxu0 %v2163
          %v2165 = vand.u32 %v2032, 4294901760
          %2166 = vmatmul.f32.gmra.mxu0 %v2165
          %v2167 = vpop.f32.mrf.mxu0
          %v2168 = vadd.f32 %v2141, %v2167
          %2169 = vdwg.mxu0
          %2170 = vmatpush.msra.mxu0 0.0
          %2171 = vmatpush.msra.mxu0 0.0
          %2172 = vmatpush.msra.mxu0 0.0
          %2173 = vmatpush.msra.mxu0 0.0
          %2174 = vmatpush.msra.mxu0 0.0
          %2175 = vmatpush.msra.mxu0 0.0
          %2176 = vmatpush.msra.mxu0 0.0
          %2177 = vmatpush.msra.mxu0 0.0
          %2178 = vmatpush.msra.mxu0 0.0
          %2179 = vmatpush.msra.mxu0 0.0
          %2180 = vmatpush.msra.mxu0 0.0
          %2181 = vmatpush.msra.mxu0 0.0
          %2182 = vmatpush.msra.mxu0 0.0
          %2183 = vmatpush.msra.mxu0 0.0
          %v2184 = vand.u32 %v2030, 4294901760
          %2185 = vmatpush.msra.mxu0 %v2184
          %v2186 = vand.u32 %v2029, 4294901760
          %2187 = vmatpush.msra.mxu0 %v2186
          %v2188 = vand.u32 %v2032, 4294901760
          %2189 = vmatmul.f32.gmra.mxu0 %v2188
          %v2190 = vpop.f32.mrf.mxu0
          %v2191 = vadd.f32 %v2168, %v2190
          %2192 = vdwg.mxu0
          %v2193 = vadd.f32 %v2026, %v2191
          %v2194 = vld [vmem:[#allocation2 + $0x5] sm:$0xf]
          %s2195 = scalar_lea.vmem [#allocation10], 80
          %v2196 = vld [vmem:[%s2195] sm:$0xff]
          %v2197 = vld [vmem:[%s2195 + $0x8] sm:$0xff]
          %v2199 = vsel %vm343, %v2194, 0
          %2201 = vmatpush.msra.mxu0 0.0
          %2202 = vmatpush.msra.mxu0 0.0
          %2203 = vmatpush.msra.mxu0 0.0
          %2204 = vmatpush.msra.mxu0 0.0
          %2205 = vmatpush.msra.mxu0 0.0
          %2206 = vmatpush.msra.mxu0 0.0
          %2207 = vmatpush.msra.mxu0 0.0
          %2208 = vmatpush.msra.mxu0 0.0
          %2209 = vmatpush.msra.mxu0 0.0
          %2210 = vmatpush.msra.mxu0 0.0
          %2211 = vmatpush.msra.mxu0 0.0
          %2212 = vmatpush.msra.mxu0 0.0
          %2213 = vmatpush.msra.mxu0 0.0
          %2214 = vmatpush.msra.mxu0 0.0
          %v2215 = vand.u32 %v2197, 4294901760
          %2216 = vmatpush.msra.mxu0 %v2215
          %v2217 = vand.u32 %v2196, 4294901760
          %2218 = vmatpush.msra.mxu0 %v2217
          %v2219 = vand.u32 %v2199, 4294901760
          %v2220 = vsub.f32 %v2199, %v2219
          %v2221 = vand.u32 %v2220, 4294901760
          %v2222 = vsub.f32 %v2220, %v2221
          %v2223 = vand.u32 %v2222, 4294901760
          %2224 = vmatmul.f32.gmra.mxu0 %v2223
          %v2225 = vpop.f32.mrf.mxu0
          %v2226 = vadd.f32 0.0, %v2225
          %2227 = vdwg.mxu0
          %2228 = vmatpush.msra.mxu0 0.0
          %2229 = vmatpush.msra.mxu0 0.0
          %2230 = vmatpush.msra.mxu0 0.0
          %2231 = vmatpush.msra.mxu0 0.0
          %2232 = vmatpush.msra.mxu0 0.0
          %2233 = vmatpush.msra.mxu0 0.0
          %2234 = vmatpush.msra.mxu0 0.0
          %2235 = vmatpush.msra.mxu0 0.0
          %2236 = vmatpush.msra.mxu0 0.0
          %2237 = vmatpush.msra.mxu0 0.0
          %2238 = vmatpush.msra.mxu0 0.0
          %2239 = vmatpush.msra.mxu0 0.0
          %2240 = vmatpush.msra.mxu0 0.0
          %2241 = vmatpush.msra.mxu0 0.0
          %v2242 = vand.u32 %v2197, 4294901760
          %v2243 = vsub.f32 %v2197, %v2242
          %v2244 = vand.u32 %v2243, 4294901760
          %v2245 = vsub.f32 %v2243, %v2244
          %v2246 = vand.u32 %v2245, 4294901760
          %2247 = vmatpush.msra.mxu0 %v2246
          %v2248 = vand.u32 %v2196, 4294901760
          %v2249 = vsub.f32 %v2196, %v2248
          %v2250 = vand.u32 %v2249, 4294901760
          %v2251 = vsub.f32 %v2249, %v2250
          %v2252 = vand.u32 %v2251, 4294901760
          %2253 = vmatpush.msra.mxu0 %v2252
          %v2254 = vand.u32 %v2199, 4294901760
          %2255 = vmatmul.f32.gmra.mxu0 %v2254
          %v2256 = vpop.f32.mrf.mxu0
          %v2257 = vadd.f32 %v2226, %v2256
          %2258 = vdwg.mxu0
          %2259 = vmatpush.msra.mxu0 0.0
          %2260 = vmatpush.msra.mxu0 0.0
          %2261 = vmatpush.msra.mxu0 0.0
          %2262 = vmatpush.msra.mxu0 0.0
          %2263 = vmatpush.msra.mxu0 0.0
          %2264 = vmatpush.msra.mxu0 0.0
          %2265 = vmatpush.msra.mxu0 0.0
          %2266 = vmatpush.msra.mxu0 0.0
          %2267 = vmatpush.msra.mxu0 0.0
          %2268 = vmatpush.msra.mxu0 0.0
          %2269 = vmatpush.msra.mxu0 0.0
          %2270 = vmatpush.msra.mxu0 0.0
          %2271 = vmatpush.msra.mxu0 0.0
          %2272 = vmatpush.msra.mxu0 0.0
          %v2273 = vand.u32 %v2197, 4294901760
          %v2274 = vsub.f32 %v2197, %v2273
          %2275 = vmatpush.msra.mxu0 %v2274
          %v2276 = vand.u32 %v2196, 4294901760
          %v2277 = vsub.f32 %v2196, %v2276
          %2278 = vmatpush.msra.mxu0 %v2277
          %v2279 = vand.u32 %v2199, 4294901760
          %v2280 = vsub.f32 %v2199, %v2279
          %2281 = vmatmul.f32.gmra.mxu0 %v2280
          %v2282 = vpop.f32.mrf.mxu0
          %v2283 = vadd.f32 %v2257, %v2282
          %2284 = vdwg.mxu0
          %2285 = vmatpush.msra.mxu0 0.0
          %2286 = vmatpush.msra.mxu0 0.0
          %2287 = vmatpush.msra.mxu0 0.0
          %2288 = vmatpush.msra.mxu0 0.0
          %2289 = vmatpush.msra.mxu0 0.0
          %2290 = vmatpush.msra.mxu0 0.0
          %2291 = vmatpush.msra.mxu0 0.0
          %2292 = vmatpush.msra.mxu0 0.0
          %2293 = vmatpush.msra.mxu0 0.0
          %2294 = vmatpush.msra.mxu0 0.0
          %2295 = vmatpush.msra.mxu0 0.0
          %2296 = vmatpush.msra.mxu0 0.0
          %2297 = vmatpush.msra.mxu0 0.0
          %2298 = vmatpush.msra.mxu0 0.0
          %v2299 = vand.u32 %v2197, 4294901760
          %2300 = vmatpush.msra.mxu0 %v2299
          %v2301 = vand.u32 %v2196, 4294901760
          %2302 = vmatpush.msra.mxu0 %v2301
          %v2303 = vand.u32 %v2199, 4294901760
          %v2304 = vsub.f32 %v2199, %v2303
          %v2305 = vand.u32 %v2304, 4294901760
          %2306 = vmatmul.f32.gmra.mxu0 %v2305
          %v2307 = vpop.f32.mrf.mxu0
          %v2308 = vadd.f32 %v2283, %v2307
          %2309 = vdwg.mxu0
          %2310 = vmatpush.msra.mxu0 0.0
          %2311 = vmatpush.msra.mxu0 0.0
          %2312 = vmatpush.msra.mxu0 0.0
          %2313 = vmatpush.msra.mxu0 0.0
          %2314 = vmatpush.msra.mxu0 0.0
          %2315 = vmatpush.msra.mxu0 0.0
          %2316 = vmatpush.msra.mxu0 0.0
          %2317 = vmatpush.msra.mxu0 0.0
          %2318 = vmatpush.msra.mxu0 0.0
          %2319 = vmatpush.msra.mxu0 0.0
          %2320 = vmatpush.msra.mxu0 0.0
          %2321 = vmatpush.msra.mxu0 0.0
          %2322 = vmatpush.msra.mxu0 0.0
          %2323 = vmatpush.msra.mxu0 0.0
          %v2324 = vand.u32 %v2197, 4294901760
          %v2325 = vsub.f32 %v2197, %v2324
          %v2326 = vand.u32 %v2325, 4294901760
          %2327 = vmatpush.msra.mxu0 %v2326
          %v2328 = vand.u32 %v2196, 4294901760
          %v2329 = vsub.f32 %v2196, %v2328
          %v2330 = vand.u32 %v2329, 4294901760
          %2331 = vmatpush.msra.mxu0 %v2330
          %v2332 = vand.u32 %v2199, 4294901760
          %2333 = vmatmul.f32.gmra.mxu0 %v2332
          %v2334 = vpop.f32.mrf.mxu0
          %v2335 = vadd.f32 %v2308, %v2334
          %2336 = vdwg.mxu0
          %2337 = vmatpush.msra.mxu0 0.0
          %2338 = vmatpush.msra.mxu0 0.0
          %2339 = vmatpush.msra.mxu0 0.0
          %2340 = vmatpush.msra.mxu0 0.0
          %2341 = vmatpush.msra.mxu0 0.0
          %2342 = vmatpush.msra.mxu0 0.0
          %2343 = vmatpush.msra.mxu0 0.0
          %2344 = vmatpush.msra.mxu0 0.0
          %2345 = vmatpush.msra.mxu0 0.0
          %2346 = vmatpush.msra.mxu0 0.0
          %2347 = vmatpush.msra.mxu0 0.0
          %2348 = vmatpush.msra.mxu0 0.0
          %2349 = vmatpush.msra.mxu0 0.0
          %2350 = vmatpush.msra.mxu0 0.0
          %v2351 = vand.u32 %v2197, 4294901760
          %2352 = vmatpush.msra.mxu0 %v2351
          %v2353 = vand.u32 %v2196, 4294901760
          %2354 = vmatpush.msra.mxu0 %v2353
          %v2355 = vand.u32 %v2199, 4294901760
          %2356 = vmatmul.f32.gmra.mxu0 %v2355
          %v2357 = vpop.f32.mrf.mxu0
          %v2358 = vadd.f32 %v2335, %v2357
          %2359 = vdwg.mxu0
          %v2360 = vadd.f32 %v2193, %v2358
          %v2361 = vld [vmem:[#allocation3 + $0x5] sm:$0xf]
          %s2362 = scalar_lea.vmem [#allocation10], 192
          %v2363 = vld [vmem:[%s2362] sm:$0xff]
          %v2364 = vld [vmem:[%s2362 + $0x8] sm:$0xff]
          %v2366 = vsel %vm343, %v2361, 0
          %2368 = vmatpush.msra.mxu0 0.0
          %2369 = vmatpush.msra.mxu0 0.0
          %2370 = vmatpush.msra.mxu0 0.0
          %2371 = vmatpush.msra.mxu0 0.0
          %2372 = vmatpush.msra.mxu0 0.0
          %2373 = vmatpush.msra.mxu0 0.0
          %2374 = vmatpush.msra.mxu0 0.0
          %2375 = vmatpush.msra.mxu0 0.0
          %2376 = vmatpush.msra.mxu0 0.0
          %2377 = vmatpush.msra.mxu0 0.0
          %2378 = vmatpush.msra.mxu0 0.0
          %2379 = vmatpush.msra.mxu0 0.0
          %2380 = vmatpush.msra.mxu0 0.0
          %2381 = vmatpush.msra.mxu0 0.0
          %v2382 = vand.u32 %v2364, 4294901760
          %2383 = vmatpush.msra.mxu0 %v2382
          %v2384 = vand.u32 %v2363, 4294901760
          %2385 = vmatpush.msra.mxu0 %v2384
          %v2386 = vand.u32 %v2366, 4294901760
          %v2387 = vsub.f32 %v2366, %v2386
          %v2388 = vand.u32 %v2387, 4294901760
          %v2389 = vsub.f32 %v2387, %v2388
          %v2390 = vand.u32 %v2389, 4294901760
          %2391 = vmatmul.f32.gmra.mxu0 %v2390
          %v2392 = vpop.f32.mrf.mxu0
          %v2393 = vadd.f32 0.0, %v2392
          %2394 = vdwg.mxu0
          %2395 = vmatpush.msra.mxu0 0.0
          %2396 = vmatpush.msra.mxu0 0.0
          %2397 = vmatpush.msra.mxu0 0.0
          %2398 = vmatpush.msra.mxu0 0.0
          %2399 = vmatpush.msra.mxu0 0.0
          %2400 = vmatpush.msra.mxu0 0.0
          %2401 = vmatpush.msra.mxu0 0.0
          %2402 = vmatpush.msra.mxu0 0.0
          %2403 = vmatpush.msra.mxu0 0.0
          %2404 = vmatpush.msra.mxu0 0.0
          %2405 = vmatpush.msra.mxu0 0.0
          %2406 = vmatpush.msra.mxu0 0.0
          %2407 = vmatpush.msra.mxu0 0.0
          %2408 = vmatpush.msra.mxu0 0.0
          %v2409 = vand.u32 %v2364, 4294901760
          %v2410 = vsub.f32 %v2364, %v2409
          %v2411 = vand.u32 %v2410, 4294901760
          %v2412 = vsub.f32 %v2410, %v2411
          %v2413 = vand.u32 %v2412, 4294901760
          %2414 = vmatpush.msra.mxu0 %v2413
          %v2415 = vand.u32 %v2363, 4294901760
          %v2416 = vsub.f32 %v2363, %v2415
          %v2417 = vand.u32 %v2416, 4294901760
          %v2418 = vsub.f32 %v2416, %v2417
          %v2419 = vand.u32 %v2418, 4294901760
          %2420 = vmatpush.msra.mxu0 %v2419
          %v2421 = vand.u32 %v2366, 4294901760
          %2422 = vmatmul.f32.gmra.mxu0 %v2421
          %v2423 = vpop.f32.mrf.mxu0
          %v2424 = vadd.f32 %v2393, %v2423
          %2425 = vdwg.mxu0
          %2426 = vmatpush.msra.mxu0 0.0
          %2427 = vmatpush.msra.mxu0 0.0
          %2428 = vmatpush.msra.mxu0 0.0
          %2429 = vmatpush.msra.mxu0 0.0
          %2430 = vmatpush.msra.mxu0 0.0
          %2431 = vmatpush.msra.mxu0 0.0
          %2432 = vmatpush.msra.mxu0 0.0
          %2433 = vmatpush.msra.mxu0 0.0
          %2434 = vmatpush.msra.mxu0 0.0
          %2435 = vmatpush.msra.mxu0 0.0
          %2436 = vmatpush.msra.mxu0 0.0
          %2437 = vmatpush.msra.mxu0 0.0
          %2438 = vmatpush.msra.mxu0 0.0
          %2439 = vmatpush.msra.mxu0 0.0
          %v2440 = vand.u32 %v2364, 4294901760
          %v2441 = vsub.f32 %v2364, %v2440
          %2442 = vmatpush.msra.mxu0 %v2441
          %v2443 = vand.u32 %v2363, 4294901760
          %v2444 = vsub.f32 %v2363, %v2443
          %2445 = vmatpush.msra.mxu0 %v2444
          %v2446 = vand.u32 %v2366, 4294901760
          %v2447 = vsub.f32 %v2366, %v2446
          %2448 = vmatmul.f32.gmra.mxu0 %v2447
          %v2449 = vpop.f32.mrf.mxu0
          %v2450 = vadd.f32 %v2424, %v2449
          %2451 = vdwg.mxu0
          %2452 = vmatpush.msra.mxu0 0.0
          %2453 = vmatpush.msra.mxu0 0.0
          %2454 = vmatpush.msra.mxu0 0.0
          %2455 = vmatpush.msra.mxu0 0.0
          %2456 = vmatpush.msra.mxu0 0.0
          %2457 = vmatpush.msra.mxu0 0.0
          %2458 = vmatpush.msra.mxu0 0.0
          %2459 = vmatpush.msra.mxu0 0.0
          %2460 = vmatpush.msra.mxu0 0.0
          %2461 = vmatpush.msra.mxu0 0.0
          %2462 = vmatpush.msra.mxu0 0.0
          %2463 = vmatpush.msra.mxu0 0.0
          %2464 = vmatpush.msra.mxu0 0.0
          %2465 = vmatpush.msra.mxu0 0.0
          %v2466 = vand.u32 %v2364, 4294901760
          %2467 = vmatpush.msra.mxu0 %v2466
          %v2468 = vand.u32 %v2363, 4294901760
          %2469 = vmatpush.msra.mxu0 %v2468
          %v2470 = vand.u32 %v2366, 4294901760
          %v2471 = vsub.f32 %v2366, %v2470
          %v2472 = vand.u32 %v2471, 4294901760
          %2473 = vmatmul.f32.gmra.mxu0 %v2472
          %v2474 = vpop.f32.mrf.mxu0
          %v2475 = vadd.f32 %v2450, %v2474
          %2476 = vdwg.mxu0
          %2477 = vmatpush.msra.mxu0 0.0
          %2478 = vmatpush.msra.mxu0 0.0
          %2479 = vmatpush.msra.mxu0 0.0
          %2480 = vmatpush.msra.mxu0 0.0
          %2481 = vmatpush.msra.mxu0 0.0
          %2482 = vmatpush.msra.mxu0 0.0
          %2483 = vmatpush.msra.mxu0 0.0
          %2484 = vmatpush.msra.mxu0 0.0
          %2485 = vmatpush.msra.mxu0 0.0
          %2486 = vmatpush.msra.mxu0 0.0
          %2487 = vmatpush.msra.mxu0 0.0
          %2488 = vmatpush.msra.mxu0 0.0
          %2489 = vmatpush.msra.mxu0 0.0
          %2490 = vmatpush.msra.mxu0 0.0
          %v2491 = vand.u32 %v2364, 4294901760
          %v2492 = vsub.f32 %v2364, %v2491
          %v2493 = vand.u32 %v2492, 4294901760
          %2494 = vmatpush.msra.mxu0 %v2493
          %v2495 = vand.u32 %v2363, 4294901760
          %v2496 = vsub.f32 %v2363, %v2495
          %v2497 = vand.u32 %v2496, 4294901760
          %2498 = vmatpush.msra.mxu0 %v2497
          %v2499 = vand.u32 %v2366, 4294901760
          %2500 = vmatmul.f32.gmra.mxu0 %v2499
          %v2501 = vpop.f32.mrf.mxu0
          %v2502 = vadd.f32 %v2475, %v2501
          %2503 = vdwg.mxu0
          %2504 = vmatpush.msra.mxu0 0.0
          %2505 = vmatpush.msra.mxu0 0.0
          %2506 = vmatpush.msra.mxu0 0.0
          %2507 = vmatpush.msra.mxu0 0.0
          %2508 = vmatpush.msra.mxu0 0.0
          %2509 = vmatpush.msra.mxu0 0.0
          %2510 = vmatpush.msra.mxu0 0.0
          %2511 = vmatpush.msra.mxu0 0.0
          %2512 = vmatpush.msra.mxu0 0.0
          %2513 = vmatpush.msra.mxu0 0.0
          %2514 = vmatpush.msra.mxu0 0.0
          %2515 = vmatpush.msra.mxu0 0.0
          %2516 = vmatpush.msra.mxu0 0.0
          %2517 = vmatpush.msra.mxu0 0.0
          %v2518 = vand.u32 %v2364, 4294901760
          %2519 = vmatpush.msra.mxu0 %v2518
          %v2520 = vand.u32 %v2363, 4294901760
          %2521 = vmatpush.msra.mxu0 %v2520
          %v2522 = vand.u32 %v2366, 4294901760
          %2523 = vmatmul.f32.gmra.mxu0 %v2522
          %v2524 = vpop.f32.mrf.mxu0
          %v2525 = vadd.f32 %v2502, %v2524
          %2526 = vdwg.mxu0
          %v2527 = vadd.f32 %v2360, %v2525
          %v2528 = vld [vmem:[#allocation2 + $0x6] sm:$0xf]
          %s2529 = scalar_lea.vmem [#allocation10], 96
          %v2530 = vld [vmem:[%s2529] sm:$0xff]
          %v2531 = vld [vmem:[%s2529 + $0x8] sm:$0xff]
          %v2533 = vsel %vm343, %v2528, 0
          %2535 = vmatpush.msra.mxu0 0.0
          %2536 = vmatpush.msra.mxu0 0.0
          %2537 = vmatpush.msra.mxu0 0.0
          %2538 = vmatpush.msra.mxu0 0.0
          %2539 = vmatpush.msra.mxu0 0.0
          %2540 = vmatpush.msra.mxu0 0.0
          %2541 = vmatpush.msra.mxu0 0.0
          %2542 = vmatpush.msra.mxu0 0.0
          %2543 = vmatpush.msra.mxu0 0.0
          %2544 = vmatpush.msra.mxu0 0.0
          %2545 = vmatpush.msra.mxu0 0.0
          %2546 = vmatpush.msra.mxu0 0.0
          %2547 = vmatpush.msra.mxu0 0.0
          %2548 = vmatpush.msra.mxu0 0.0
          %v2549 = vand.u32 %v2531, 4294901760
          %2550 = vmatpush.msra.mxu0 %v2549
          %v2551 = vand.u32 %v2530, 4294901760
          %2552 = vmatpush.msra.mxu0 %v2551
          %v2553 = vand.u32 %v2533, 4294901760
          %v2554 = vsub.f32 %v2533, %v2553
          %v2555 = vand.u32 %v2554, 4294901760
          %v2556 = vsub.f32 %v2554, %v2555
          %v2557 = vand.u32 %v2556, 4294901760
          %2558 = vmatmul.f32.gmra.mxu0 %v2557
          %v2559 = vpop.f32.mrf.mxu0
          %v2560 = vadd.f32 0.0, %v2559
          %2561 = vdwg.mxu0
          %2562 = vmatpush.msra.mxu0 0.0
          %2563 = vmatpush.msra.mxu0 0.0
          %2564 = vmatpush.msra.mxu0 0.0
          %2565 = vmatpush.msra.mxu0 0.0
          %2566 = vmatpush.msra.mxu0 0.0
          %2567 = vmatpush.msra.mxu0 0.0
          %2568 = vmatpush.msra.mxu0 0.0
          %2569 = vmatpush.msra.mxu0 0.0
          %2570 = vmatpush.msra.mxu0 0.0
          %2571 = vmatpush.msra.mxu0 0.0
          %2572 = vmatpush.msra.mxu0 0.0
          %2573 = vmatpush.msra.mxu0 0.0
          %2574 = vmatpush.msra.mxu0 0.0
          %2575 = vmatpush.msra.mxu0 0.0
          %v2576 = vand.u32 %v2531, 4294901760
          %v2577 = vsub.f32 %v2531, %v2576
          %v2578 = vand.u32 %v2577, 4294901760
          %v2579 = vsub.f32 %v2577, %v2578
          %v2580 = vand.u32 %v2579, 4294901760
          %2581 = vmatpush.msra.mxu0 %v2580
          %v2582 = vand.u32 %v2530, 4294901760
          %v2583 = vsub.f32 %v2530, %v2582
          %v2584 = vand.u32 %v2583, 4294901760
          %v2585 = vsub.f32 %v2583, %v2584
          %v2586 = vand.u32 %v2585, 4294901760
          %2587 = vmatpush.msra.mxu0 %v2586
          %v2588 = vand.u32 %v2533, 4294901760
          %2589 = vmatmul.f32.gmra.mxu0 %v2588
          %v2590 = vpop.f32.mrf.mxu0
          %v2591 = vadd.f32 %v2560, %v2590
          %2592 = vdwg.mxu0
          %2593 = vmatpush.msra.mxu0 0.0
          %2594 = vmatpush.msra.mxu0 0.0
          %2595 = vmatpush.msra.mxu0 0.0
          %2596 = vmatpush.msra.mxu0 0.0
          %2597 = vmatpush.msra.mxu0 0.0
          %2598 = vmatpush.msra.mxu0 0.0
          %2599 = vmatpush.msra.mxu0 0.0
          %2600 = vmatpush.msra.mxu0 0.0
          %2601 = vmatpush.msra.mxu0 0.0
          %2602 = vmatpush.msra.mxu0 0.0
          %2603 = vmatpush.msra.mxu0 0.0
          %2604 = vmatpush.msra.mxu0 0.0
          %2605 = vmatpush.msra.mxu0 0.0
          %2606 = vmatpush.msra.mxu0 0.0
          %v2607 = vand.u32 %v2531, 4294901760
          %v2608 = vsub.f32 %v2531, %v2607
          %2609 = vmatpush.msra.mxu0 %v2608
          %v2610 = vand.u32 %v2530, 4294901760
          %v2611 = vsub.f32 %v2530, %v2610
          %2612 = vmatpush.msra.mxu0 %v2611
          %v2613 = vand.u32 %v2533, 4294901760
          %v2614 = vsub.f32 %v2533, %v2613
          %2615 = vmatmul.f32.gmra.mxu0 %v2614
          %v2616 = vpop.f32.mrf.mxu0
          %v2617 = vadd.f32 %v2591, %v2616
          %2618 = vdwg.mxu0
          %2619 = vmatpush.msra.mxu0 0.0
          %2620 = vmatpush.msra.mxu0 0.0
          %2621 = vmatpush.msra.mxu0 0.0
          %2622 = vmatpush.msra.mxu0 0.0
          %2623 = vmatpush.msra.mxu0 0.0
          %2624 = vmatpush.msra.mxu0 0.0
          %2625 = vmatpush.msra.mxu0 0.0
          %2626 = vmatpush.msra.mxu0 0.0
          %2627 = vmatpush.msra.mxu0 0.0
          %2628 = vmatpush.msra.mxu0 0.0
          %2629 = vmatpush.msra.mxu0 0.0
          %2630 = vmatpush.msra.mxu0 0.0
          %2631 = vmatpush.msra.mxu0 0.0
          %2632 = vmatpush.msra.mxu0 0.0
          %v2633 = vand.u32 %v2531, 4294901760
          %2634 = vmatpush.msra.mxu0 %v2633
          %v2635 = vand.u32 %v2530, 4294901760
          %2636 = vmatpush.msra.mxu0 %v2635
          %v2637 = vand.u32 %v2533, 4294901760
          %v2638 = vsub.f32 %v2533, %v2637
          %v2639 = vand.u32 %v2638, 4294901760
          %2640 = vmatmul.f32.gmra.mxu0 %v2639
          %v2641 = vpop.f32.mrf.mxu0
          %v2642 = vadd.f32 %v2617, %v2641
          %2643 = vdwg.mxu0
          %2644 = vmatpush.msra.mxu0 0.0
          %2645 = vmatpush.msra.mxu0 0.0
          %2646 = vmatpush.msra.mxu0 0.0
          %2647 = vmatpush.msra.mxu0 0.0
          %2648 = vmatpush.msra.mxu0 0.0
          %2649 = vmatpush.msra.mxu0 0.0
          %2650 = vmatpush.msra.mxu0 0.0
          %2651 = vmatpush.msra.mxu0 0.0
          %2652 = vmatpush.msra.mxu0 0.0
          %2653 = vmatpush.msra.mxu0 0.0
          %2654 = vmatpush.msra.mxu0 0.0
          %2655 = vmatpush.msra.mxu0 0.0
          %2656 = vmatpush.msra.mxu0 0.0
          %2657 = vmatpush.msra.mxu0 0.0
          %v2658 = vand.u32 %v2531, 4294901760
          %v2659 = vsub.f32 %v2531, %v2658
          %v2660 = vand.u32 %v2659, 4294901760
          %2661 = vmatpush.msra.mxu0 %v2660
          %v2662 = vand.u32 %v2530, 4294901760
          %v2663 = vsub.f32 %v2530, %v2662
          %v2664 = vand.u32 %v2663, 4294901760
          %2665 = vmatpush.msra.mxu0 %v2664
          %v2666 = vand.u32 %v2533, 4294901760
          %2667 = vmatmul.f32.gmra.mxu0 %v2666
          %v2668 = vpop.f32.mrf.mxu0
          %v2669 = vadd.f32 %v2642, %v2668
          %2670 = vdwg.mxu0
          %2671 = vmatpush.msra.mxu0 0.0
          %2672 = vmatpush.msra.mxu0 0.0
          %2673 = vmatpush.msra.mxu0 0.0
          %2674 = vmatpush.msra.mxu0 0.0
          %2675 = vmatpush.msra.mxu0 0.0
          %2676 = vmatpush.msra.mxu0 0.0
          %2677 = vmatpush.msra.mxu0 0.0
          %2678 = vmatpush.msra.mxu0 0.0
          %2679 = vmatpush.msra.mxu0 0.0
          %2680 = vmatpush.msra.mxu0 0.0
          %2681 = vmatpush.msra.mxu0 0.0
          %2682 = vmatpush.msra.mxu0 0.0
          %2683 = vmatpush.msra.mxu0 0.0
          %2684 = vmatpush.msra.mxu0 0.0
          %v2685 = vand.u32 %v2531, 4294901760
          %2686 = vmatpush.msra.mxu0 %v2685
          %v2687 = vand.u32 %v2530, 4294901760
          %2688 = vmatpush.msra.mxu0 %v2687
          %v2689 = vand.u32 %v2533, 4294901760
          %2690 = vmatmul.f32.gmra.mxu0 %v2689
          %v2691 = vpop.f32.mrf.mxu0
          %v2692 = vadd.f32 %v2669, %v2691
          %2693 = vdwg.mxu0
          %v2694 = vadd.f32 %v2527, %v2692
          %v2695 = vld [vmem:[#allocation3 + $0x6] sm:$0xf]
          %s2696 = scalar_lea.vmem [#allocation10], 208
          %v2697 = vld [vmem:[%s2696] sm:$0xff]
          %v2698 = vld [vmem:[%s2696 + $0x8] sm:$0xff]
          %v2700 = vsel %vm343, %v2695, 0
          %2702 = vmatpush.msra.mxu0 0.0
          %2703 = vmatpush.msra.mxu0 0.0
          %2704 = vmatpush.msra.mxu0 0.0
          %2705 = vmatpush.msra.mxu0 0.0
          %2706 = vmatpush.msra.mxu0 0.0
          %2707 = vmatpush.msra.mxu0 0.0
          %2708 = vmatpush.msra.mxu0 0.0
          %2709 = vmatpush.msra.mxu0 0.0
          %2710 = vmatpush.msra.mxu0 0.0
          %2711 = vmatpush.msra.mxu0 0.0
          %2712 = vmatpush.msra.mxu0 0.0
          %2713 = vmatpush.msra.mxu0 0.0
          %2714 = vmatpush.msra.mxu0 0.0
          %2715 = vmatpush.msra.mxu0 0.0
          %v2716 = vand.u32 %v2698, 4294901760
          %2717 = vmatpush.msra.mxu0 %v2716
          %v2718 = vand.u32 %v2697, 4294901760
          %2719 = vmatpush.msra.mxu0 %v2718
          %v2720 = vand.u32 %v2700, 4294901760
          %v2721 = vsub.f32 %v2700, %v2720
          %v2722 = vand.u32 %v2721, 4294901760
          %v2723 = vsub.f32 %v2721, %v2722
          %v2724 = vand.u32 %v2723, 4294901760
          %2725 = vmatmul.f32.gmra.mxu0 %v2724
          %v2726 = vpop.f32.mrf.mxu0
          %v2727 = vadd.f32 0.0, %v2726
          %2728 = vdwg.mxu0
          %2729 = vmatpush.msra.mxu0 0.0
          %2730 = vmatpush.msra.mxu0 0.0
          %2731 = vmatpush.msra.mxu0 0.0
          %2732 = vmatpush.msra.mxu0 0.0
          %2733 = vmatpush.msra.mxu0 0.0
          %2734 = vmatpush.msra.mxu0 0.0
          %2735 = vmatpush.msra.mxu0 0.0
          %2736 = vmatpush.msra.mxu0 0.0
          %2737 = vmatpush.msra.mxu0 0.0
          %2738 = vmatpush.msra.mxu0 0.0
          %2739 = vmatpush.msra.mxu0 0.0
          %2740 = vmatpush.msra.mxu0 0.0
          %2741 = vmatpush.msra.mxu0 0.0
          %2742 = vmatpush.msra.mxu0 0.0
          %v2743 = vand.u32 %v2698, 4294901760
          %v2744 = vsub.f32 %v2698, %v2743
          %v2745 = vand.u32 %v2744, 4294901760
          %v2746 = vsub.f32 %v2744, %v2745
          %v2747 = vand.u32 %v2746, 4294901760
          %2748 = vmatpush.msra.mxu0 %v2747
          %v2749 = vand.u32 %v2697, 4294901760
          %v2750 = vsub.f32 %v2697, %v2749
          %v2751 = vand.u32 %v2750, 4294901760
          %v2752 = vsub.f32 %v2750, %v2751
          %v2753 = vand.u32 %v2752, 4294901760
          %2754 = vmatpush.msra.mxu0 %v2753
          %v2755 = vand.u32 %v2700, 4294901760
          %2756 = vmatmul.f32.gmra.mxu0 %v2755
          %v2757 = vpop.f32.mrf.mxu0
          %v2758 = vadd.f32 %v2727, %v2757
          %2759 = vdwg.mxu0
          %2760 = vmatpush.msra.mxu0 0.0
          %2761 = vmatpush.msra.mxu0 0.0
          %2762 = vmatpush.msra.mxu0 0.0
          %2763 = vmatpush.msra.mxu0 0.0
          %2764 = vmatpush.msra.mxu0 0.0
          %2765 = vmatpush.msra.mxu0 0.0
          %2766 = vmatpush.msra.mxu0 0.0
          %2767 = vmatpush.msra.mxu0 0.0
          %2768 = vmatpush.msra.mxu0 0.0
          %2769 = vmatpush.msra.mxu0 0.0
          %2770 = vmatpush.msra.mxu0 0.0
          %2771 = vmatpush.msra.mxu0 0.0
          %2772 = vmatpush.msra.mxu0 0.0
          %2773 = vmatpush.msra.mxu0 0.0
          %v2774 = vand.u32 %v2698, 4294901760
          %v2775 = vsub.f32 %v2698, %v2774
          %2776 = vmatpush.msra.mxu0 %v2775
          %v2777 = vand.u32 %v2697, 4294901760
          %v2778 = vsub.f32 %v2697, %v2777
          %2779 = vmatpush.msra.mxu0 %v2778
          %v2780 = vand.u32 %v2700, 4294901760
          %v2781 = vsub.f32 %v2700, %v2780
          %2782 = vmatmul.f32.gmra.mxu0 %v2781
          %v2783 = vpop.f32.mrf.mxu0
          %v2784 = vadd.f32 %v2758, %v2783
          %2785 = vdwg.mxu0
          %2786 = vmatpush.msra.mxu0 0.0
          %2787 = vmatpush.msra.mxu0 0.0
          %2788 = vmatpush.msra.mxu0 0.0
          %2789 = vmatpush.msra.mxu0 0.0
          %2790 = vmatpush.msra.mxu0 0.0
          %2791 = vmatpush.msra.mxu0 0.0
          %2792 = vmatpush.msra.mxu0 0.0
          %2793 = vmatpush.msra.mxu0 0.0
          %2794 = vmatpush.msra.mxu0 0.0
          %2795 = vmatpush.msra.mxu0 0.0
          %2796 = vmatpush.msra.mxu0 0.0
          %2797 = vmatpush.msra.mxu0 0.0
          %2798 = vmatpush.msra.mxu0 0.0
          %2799 = vmatpush.msra.mxu0 0.0
          %v2800 = vand.u32 %v2698, 4294901760
          %2801 = vmatpush.msra.mxu0 %v2800
          %v2802 = vand.u32 %v2697, 4294901760
          %2803 = vmatpush.msra.mxu0 %v2802
          %v2804 = vand.u32 %v2700, 4294901760
          %v2805 = vsub.f32 %v2700, %v2804
          %v2806 = vand.u32 %v2805, 4294901760
          %2807 = vmatmul.f32.gmra.mxu0 %v2806
          %v2808 = vpop.f32.mrf.mxu0
          %v2809 = vadd.f32 %v2784, %v2808
          %2810 = vdwg.mxu0
          %2811 = vmatpush.msra.mxu0 0.0
          %2812 = vmatpush.msra.mxu0 0.0
          %2813 = vmatpush.msra.mxu0 0.0
          %2814 = vmatpush.msra.mxu0 0.0
          %2815 = vmatpush.msra.mxu0 0.0
          %2816 = vmatpush.msra.mxu0 0.0
          %2817 = vmatpush.msra.mxu0 0.0
          %2818 = vmatpush.msra.mxu0 0.0
          %2819 = vmatpush.msra.mxu0 0.0
          %2820 = vmatpush.msra.mxu0 0.0
          %2821 = vmatpush.msra.mxu0 0.0
          %2822 = vmatpush.msra.mxu0 0.0
          %2823 = vmatpush.msra.mxu0 0.0
          %2824 = vmatpush.msra.mxu0 0.0
          %v2825 = vand.u32 %v2698, 4294901760
          %v2826 = vsub.f32 %v2698, %v2825
          %v2827 = vand.u32 %v2826, 4294901760
          %2828 = vmatpush.msra.mxu0 %v2827
          %v2829 = vand.u32 %v2697, 4294901760
          %v2830 = vsub.f32 %v2697, %v2829
          %v2831 = vand.u32 %v2830, 4294901760
          %2832 = vmatpush.msra.mxu0 %v2831
          %v2833 = vand.u32 %v2700, 4294901760
          %2834 = vmatmul.f32.gmra.mxu0 %v2833
          %v2835 = vpop.f32.mrf.mxu0
          %v2836 = vadd.f32 %v2809, %v2835
          %2837 = vdwg.mxu0
          %2838 = vmatpush.msra.mxu0 0.0
          %2839 = vmatpush.msra.mxu0 0.0
          %2840 = vmatpush.msra.mxu0 0.0
          %2841 = vmatpush.msra.mxu0 0.0
          %2842 = vmatpush.msra.mxu0 0.0
          %2843 = vmatpush.msra.mxu0 0.0
          %2844 = vmatpush.msra.mxu0 0.0
          %2845 = vmatpush.msra.mxu0 0.0
          %2846 = vmatpush.msra.mxu0 0.0
          %2847 = vmatpush.msra.mxu0 0.0
          %2848 = vmatpush.msra.mxu0 0.0
          %2849 = vmatpush.msra.mxu0 0.0
          %2850 = vmatpush.msra.mxu0 0.0
          %2851 = vmatpush.msra.mxu0 0.0
          %v2852 = vand.u32 %v2698, 4294901760
          %2853 = vmatpush.msra.mxu0 %v2852
          %v2854 = vand.u32 %v2697, 4294901760
          %2855 = vmatpush.msra.mxu0 %v2854
          %v2856 = vand.u32 %v2700, 4294901760
          %2857 = vmatmul.f32.gmra.mxu0 %v2856
          %v2858 = vpop.f32.mrf.mxu0
          %v2859 = vadd.f32 %v2836, %v2858
          %2860 = vdwg.mxu0
          %v2861 = vadd.f32 %v2694, %v2859
          %v2862 = vld [vmem:[#allocation4] sm:$0xf]
          %v2863 = vld [vmem:[#allocation12] sm:$0xff]
          %v2864 = vld [vmem:[#allocation12 + $0x8] sm:$0xff]
          %v2865 = vld [vmem:[#allocation5] sm:$0xf]
          %s2866 = scalar_lea.vmem [#allocation12], 80
          %v2867 = vld [vmem:[%s2866] sm:$0xff]
          %v2868 = vld [vmem:[%s2866 + $0x8] sm:$0xff]
          %v2870 = vsel %vm343, %v2865, 0
          %2872 = vmatpush.msra.mxu0 0.0
          %2873 = vmatpush.msra.mxu0 0.0
          %2874 = vmatpush.msra.mxu0 0.0
          %2875 = vmatpush.msra.mxu0 0.0
          %2876 = vmatpush.msra.mxu0 0.0
          %2877 = vmatpush.msra.mxu0 0.0
          %2878 = vmatpush.msra.mxu0 0.0
          %2879 = vmatpush.msra.mxu0 0.0
          %2880 = vmatpush.msra.mxu0 0.0
          %2881 = vmatpush.msra.mxu0 0.0
          %2882 = vmatpush.msra.mxu0 0.0
          %2883 = vmatpush.msra.mxu0 0.0
          %2884 = vmatpush.msra.mxu0 0.0
          %2885 = vmatpush.msra.mxu0 0.0
          %v2886 = vand.u32 %v2868, 4294901760
          %2887 = vmatpush.msra.mxu0 %v2886
          %v2888 = vand.u32 %v2867, 4294901760
          %2889 = vmatpush.msra.mxu0 %v2888
          %v2890 = vand.u32 %v2870, 4294901760
          %v2891 = vsub.f32 %v2870, %v2890
          %v2892 = vand.u32 %v2891, 4294901760
          %v2893 = vsub.f32 %v2891, %v2892
          %v2894 = vand.u32 %v2893, 4294901760
          %2895 = vmatmul.f32.gmra.mxu0 %v2894
          %v2896 = vpop.f32.mrf.mxu0
          %v2897 = vadd.f32 0.0, %v2896
          %2898 = vdwg.mxu0
          %2899 = vmatpush.msra.mxu0 0.0
          %2900 = vmatpush.msra.mxu0 0.0
          %2901 = vmatpush.msra.mxu0 0.0
          %2902 = vmatpush.msra.mxu0 0.0
          %2903 = vmatpush.msra.mxu0 0.0
          %2904 = vmatpush.msra.mxu0 0.0
          %2905 = vmatpush.msra.mxu0 0.0
          %2906 = vmatpush.msra.mxu0 0.0
          %2907 = vmatpush.msra.mxu0 0.0
          %2908 = vmatpush.msra.mxu0 0.0
          %2909 = vmatpush.msra.mxu0 0.0
          %2910 = vmatpush.msra.mxu0 0.0
          %2911 = vmatpush.msra.mxu0 0.0
          %2912 = vmatpush.msra.mxu0 0.0
          %v2913 = vand.u32 %v2868, 4294901760
          %v2914 = vsub.f32 %v2868, %v2913
          %v2915 = vand.u32 %v2914, 4294901760
          %v2916 = vsub.f32 %v2914, %v2915
          %v2917 = vand.u32 %v2916, 4294901760
          %2918 = vmatpush.msra.mxu0 %v2917
          %v2919 = vand.u32 %v2867, 4294901760
          %v2920 = vsub.f32 %v2867, %v2919
          %v2921 = vand.u32 %v2920, 4294901760
          %v2922 = vsub.f32 %v2920, %v2921
          %v2923 = vand.u32 %v2922, 4294901760
          %2924 = vmatpush.msra.mxu0 %v2923
          %v2925 = vand.u32 %v2870, 4294901760
          %2926 = vmatmul.f32.gmra.mxu0 %v2925
          %v2927 = vpop.f32.mrf.mxu0
          %v2928 = vadd.f32 %v2897, %v2927
          %2929 = vdwg.mxu0
          %2930 = vmatpush.msra.mxu0 0.0
          %2931 = vmatpush.msra.mxu0 0.0
          %2932 = vmatpush.msra.mxu0 0.0
          %2933 = vmatpush.msra.mxu0 0.0
          %2934 = vmatpush.msra.mxu0 0.0
          %2935 = vmatpush.msra.mxu0 0.0
          %2936 = vmatpush.msra.mxu0 0.0
          %2937 = vmatpush.msra.mxu0 0.0
          %2938 = vmatpush.msra.mxu0 0.0
          %2939 = vmatpush.msra.mxu0 0.0
          %2940 = vmatpush.msra.mxu0 0.0
          %2941 = vmatpush.msra.mxu0 0.0
          %2942 = vmatpush.msra.mxu0 0.0
          %2943 = vmatpush.msra.mxu0 0.0
          %v2944 = vand.u32 %v2868, 4294901760
          %v2945 = vsub.f32 %v2868, %v2944
          %2946 = vmatpush.msra.mxu0 %v2945
          %v2947 = vand.u32 %v2867, 4294901760
          %v2948 = vsub.f32 %v2867, %v2947
          %2949 = vmatpush.msra.mxu0 %v2948
          %v2950 = vand.u32 %v2870, 4294901760
          %v2951 = vsub.f32 %v2870, %v2950
          %2952 = vmatmul.f32.gmra.mxu0 %v2951
          %v2953 = vpop.f32.mrf.mxu0
          %v2954 = vadd.f32 %v2928, %v2953
          %2955 = vdwg.mxu0
          %2956 = vmatpush.msra.mxu0 0.0
          %2957 = vmatpush.msra.mxu0 0.0
          %2958 = vmatpush.msra.mxu0 0.0
          %2959 = vmatpush.msra.mxu0 0.0
          %2960 = vmatpush.msra.mxu0 0.0
          %2961 = vmatpush.msra.mxu0 0.0
          %2962 = vmatpush.msra.mxu0 0.0
          %2963 = vmatpush.msra.mxu0 0.0
          %2964 = vmatpush.msra.mxu0 0.0
          %2965 = vmatpush.msra.mxu0 0.0
          %2966 = vmatpush.msra.mxu0 0.0
          %2967 = vmatpush.msra.mxu0 0.0
          %2968 = vmatpush.msra.mxu0 0.0
          %2969 = vmatpush.msra.mxu0 0.0
          %v2970 = vand.u32 %v2868, 4294901760
          %2971 = vmatpush.msra.mxu0 %v2970
          %v2972 = vand.u32 %v2867, 4294901760
          %2973 = vmatpush.msra.mxu0 %v2972
          %v2974 = vand.u32 %v2870, 4294901760
          %v2975 = vsub.f32 %v2870, %v2974
          %v2976 = vand.u32 %v2975, 4294901760
          %2977 = vmatmul.f32.gmra.mxu0 %v2976
          %v2978 = vpop.f32.mrf.mxu0
          %v2979 = vadd.f32 %v2954, %v2978
          %2980 = vdwg.mxu0
          %2981 = vmatpush.msra.mxu0 0.0
          %2982 = vmatpush.msra.mxu0 0.0
          %2983 = vmatpush.msra.mxu0 0.0
          %2984 = vmatpush.msra.mxu0 0.0
          %2985 = vmatpush.msra.mxu0 0.0
          %2986 = vmatpush.msra.mxu0 0.0
          %2987 = vmatpush.msra.mxu0 0.0
          %2988 = vmatpush.msra.mxu0 0.0
          %2989 = vmatpush.msra.mxu0 0.0
          %2990 = vmatpush.msra.mxu0 0.0
          %2991 = vmatpush.msra.mxu0 0.0
          %2992 = vmatpush.msra.mxu0 0.0
          %2993 = vmatpush.msra.mxu0 0.0
          %2994 = vmatpush.msra.mxu0 0.0
          %v2995 = vand.u32 %v2868, 4294901760
          %v2996 = vsub.f32 %v2868, %v2995
          %v2997 = vand.u32 %v2996, 4294901760
          %2998 = vmatpush.msra.mxu0 %v2997
          %v2999 = vand.u32 %v2867, 4294901760
          %v3000 = vsub.f32 %v2867, %v2999
          %v3001 = vand.u32 %v3000, 4294901760
          %3002 = vmatpush.msra.mxu0 %v3001
          %v3003 = vand.u32 %v2870, 4294901760
          %3004 = vmatmul.f32.gmra.mxu0 %v3003
          %v3005 = vpop.f32.mrf.mxu0
          %v3006 = vadd.f32 %v2979, %v3005
          %3007 = vdwg.mxu0
          %3008 = vmatpush.msra.mxu0 0.0
          %3009 = vmatpush.msra.mxu0 0.0
          %3010 = vmatpush.msra.mxu0 0.0
          %3011 = vmatpush.msra.mxu0 0.0
          %3012 = vmatpush.msra.mxu0 0.0
          %3013 = vmatpush.msra.mxu0 0.0
          %3014 = vmatpush.msra.mxu0 0.0
          %3015 = vmatpush.msra.mxu0 0.0
          %3016 = vmatpush.msra.mxu0 0.0
          %3017 = vmatpush.msra.mxu0 0.0
          %3018 = vmatpush.msra.mxu0 0.0
          %3019 = vmatpush.msra.mxu0 0.0
          %3020 = vmatpush.msra.mxu0 0.0
          %3021 = vmatpush.msra.mxu0 0.0
          %v3022 = vand.u32 %v2868, 4294901760
          %3023 = vmatpush.msra.mxu0 %v3022
          %v3024 = vand.u32 %v2867, 4294901760
          %3025 = vmatpush.msra.mxu0 %v3024
          %v3026 = vand.u32 %v2870, 4294901760
          %3027 = vmatmul.f32.gmra.mxu0 %v3026
          %v3028 = vpop.f32.mrf.mxu0
          %v3029 = vadd.f32 %v3006, %v3028
          %3030 = vdwg.mxu0
          %v3032 = vsel %vm343, %v2862, 0
          %3034 = vmatpush.msra.mxu0 0.0
          %3035 = vmatpush.msra.mxu0 0.0
          %3036 = vmatpush.msra.mxu0 0.0
          %3037 = vmatpush.msra.mxu0 0.0
          %3038 = vmatpush.msra.mxu0 0.0
          %3039 = vmatpush.msra.mxu0 0.0
          %3040 = vmatpush.msra.mxu0 0.0
          %3041 = vmatpush.msra.mxu0 0.0
          %3042 = vmatpush.msra.mxu0 0.0
          %3043 = vmatpush.msra.mxu0 0.0
          %3044 = vmatpush.msra.mxu0 0.0
          %3045 = vmatpush.msra.mxu0 0.0
          %3046 = vmatpush.msra.mxu0 0.0
          %3047 = vmatpush.msra.mxu0 0.0
          %v3048 = vand.u32 %v2864, 4294901760
          %3049 = vmatpush.msra.mxu0 %v3048
          %v3050 = vand.u32 %v2863, 4294901760
          %3051 = vmatpush.msra.mxu0 %v3050
          %v3052 = vand.u32 %v3032, 4294901760
          %v3053 = vsub.f32 %v3032, %v3052
          %v3054 = vand.u32 %v3053, 4294901760
          %v3055 = vsub.f32 %v3053, %v3054
          %v3056 = vand.u32 %v3055, 4294901760
          %3057 = vmatmul.f32.gmra.mxu0 %v3056
          %v3058 = vpop.f32.mrf.mxu0
          %v3059 = vadd.f32 %v3029, %v3058
          %3060 = vdwg.mxu0
          %3061 = vmatpush.msra.mxu0 0.0
          %3062 = vmatpush.msra.mxu0 0.0
          %3063 = vmatpush.msra.mxu0 0.0
          %3064 = vmatpush.msra.mxu0 0.0
          %3065 = vmatpush.msra.mxu0 0.0
          %3066 = vmatpush.msra.mxu0 0.0
          %3067 = vmatpush.msra.mxu0 0.0
          %3068 = vmatpush.msra.mxu0 0.0
          %3069 = vmatpush.msra.mxu0 0.0
          %3070 = vmatpush.msra.mxu0 0.0
          %3071 = vmatpush.msra.mxu0 0.0
          %3072 = vmatpush.msra.mxu0 0.0
          %3073 = vmatpush.msra.mxu0 0.0
          %3074 = vmatpush.msra.mxu0 0.0
          %v3075 = vand.u32 %v2864, 4294901760
          %v3076 = vsub.f32 %v2864, %v3075
          %v3077 = vand.u32 %v3076, 4294901760
          %v3078 = vsub.f32 %v3076, %v3077
          %v3079 = vand.u32 %v3078, 4294901760
          %3080 = vmatpush.msra.mxu0 %v3079
          %v3081 = vand.u32 %v2863, 4294901760
          %v3082 = vsub.f32 %v2863, %v3081
          %v3083 = vand.u32 %v3082, 4294901760
          %v3084 = vsub.f32 %v3082, %v3083
          %v3085 = vand.u32 %v3084, 4294901760
          %3086 = vmatpush.msra.mxu0 %v3085
          %v3087 = vand.u32 %v3032, 4294901760
          %3088 = vmatmul.f32.gmra.mxu0 %v3087
          %v3089 = vpop.f32.mrf.mxu0
          %v3090 = vadd.f32 %v3059, %v3089
          %3091 = vdwg.mxu0
          %3092 = vmatpush.msra.mxu0 0.0
          %3093 = vmatpush.msra.mxu0 0.0
          %3094 = vmatpush.msra.mxu0 0.0
          %3095 = vmatpush.msra.mxu0 0.0
          %3096 = vmatpush.msra.mxu0 0.0
          %3097 = vmatpush.msra.mxu0 0.0
          %3098 = vmatpush.msra.mxu0 0.0
          %3099 = vmatpush.msra.mxu0 0.0
          %3100 = vmatpush.msra.mxu0 0.0
          %3101 = vmatpush.msra.mxu0 0.0
          %3102 = vmatpush.msra.mxu0 0.0
          %3103 = vmatpush.msra.mxu0 0.0
          %3104 = vmatpush.msra.mxu0 0.0
          %3105 = vmatpush.msra.mxu0 0.0
          %v3106 = vand.u32 %v2864, 4294901760
          %v3107 = vsub.f32 %v2864, %v3106
          %3108 = vmatpush.msra.mxu0 %v3107
          %v3109 = vand.u32 %v2863, 4294901760
          %v3110 = vsub.f32 %v2863, %v3109
          %3111 = vmatpush.msra.mxu0 %v3110
          %v3112 = vand.u32 %v3032, 4294901760
          %v3113 = vsub.f32 %v3032, %v3112
          %3114 = vmatmul.f32.gmra.mxu0 %v3113
          %v3115 = vpop.f32.mrf.mxu0
          %v3116 = vadd.f32 %v3090, %v3115
          %3117 = vdwg.mxu0
          %3118 = vmatpush.msra.mxu0 0.0
          %3119 = vmatpush.msra.mxu0 0.0
          %3120 = vmatpush.msra.mxu0 0.0
          %3121 = vmatpush.msra.mxu0 0.0
          %3122 = vmatpush.msra.mxu0 0.0
          %3123 = vmatpush.msra.mxu0 0.0
          %3124 = vmatpush.msra.mxu0 0.0
          %3125 = vmatpush.msra.mxu0 0.0
          %3126 = vmatpush.msra.mxu0 0.0
          %3127 = vmatpush.msra.mxu0 0.0
          %3128 = vmatpush.msra.mxu0 0.0
          %3129 = vmatpush.msra.mxu0 0.0
          %3130 = vmatpush.msra.mxu0 0.0
          %3131 = vmatpush.msra.mxu0 0.0
          %v3132 = vand.u32 %v2864, 4294901760
          %3133 = vmatpush.msra.mxu0 %v3132
          %v3134 = vand.u32 %v2863, 4294901760
          %3135 = vmatpush.msra.mxu0 %v3134
          %v3136 = vand.u32 %v3032, 4294901760
          %v3137 = vsub.f32 %v3032, %v3136
          %v3138 = vand.u32 %v3137, 4294901760
          %3139 = vmatmul.f32.gmra.mxu0 %v3138
          %v3140 = vpop.f32.mrf.mxu0
          %v3141 = vadd.f32 %v3116, %v3140
          %3142 = vdwg.mxu0
          %3143 = vmatpush.msra.mxu0 0.0
          %3144 = vmatpush.msra.mxu0 0.0
          %3145 = vmatpush.msra.mxu0 0.0
          %3146 = vmatpush.msra.mxu0 0.0
          %3147 = vmatpush.msra.mxu0 0.0
          %3148 = vmatpush.msra.mxu0 0.0
          %3149 = vmatpush.msra.mxu0 0.0
          %3150 = vmatpush.msra.mxu0 0.0
          %3151 = vmatpush.msra.mxu0 0.0
          %3152 = vmatpush.msra.mxu0 0.0
          %3153 = vmatpush.msra.mxu0 0.0
          %3154 = vmatpush.msra.mxu0 0.0
          %3155 = vmatpush.msra.mxu0 0.0
          %3156 = vmatpush.msra.mxu0 0.0
          %v3157 = vand.u32 %v2864, 4294901760
          %v3158 = vsub.f32 %v2864, %v3157
          %v3159 = vand.u32 %v3158, 4294901760
          %3160 = vmatpush.msra.mxu0 %v3159
          %v3161 = vand.u32 %v2863, 4294901760
          %v3162 = vsub.f32 %v2863, %v3161
          %v3163 = vand.u32 %v3162, 4294901760
          %3164 = vmatpush.msra.mxu0 %v3163
          %v3165 = vand.u32 %v3032, 4294901760
          %3166 = vmatmul.f32.gmra.mxu0 %v3165
          %v3167 = vpop.f32.mrf.mxu0
          %v3168 = vadd.f32 %v3141, %v3167
          %3169 = vdwg.mxu0
          %3170 = vmatpush.msra.mxu0 0.0
          %3171 = vmatpush.msra.mxu0 0.0
          %3172 = vmatpush.msra.mxu0 0.0
          %3173 = vmatpush.msra.mxu0 0.0
          %3174 = vmatpush.msra.mxu0 0.0
          %3175 = vmatpush.msra.mxu0 0.0
          %3176 = vmatpush.msra.mxu0 0.0
          %3177 = vmatpush.msra.mxu0 0.0
          %3178 = vmatpush.msra.mxu0 0.0
          %3179 = vmatpush.msra.mxu0 0.0
          %3180 = vmatpush.msra.mxu0 0.0
          %3181 = vmatpush.msra.mxu0 0.0
          %3182 = vmatpush.msra.mxu0 0.0
          %3183 = vmatpush.msra.mxu0 0.0
          %v3184 = vand.u32 %v2864, 4294901760
          %3185 = vmatpush.msra.mxu0 %v3184
          %v3186 = vand.u32 %v2863, 4294901760
          %3187 = vmatpush.msra.mxu0 %v3186
          %v3188 = vand.u32 %v3032, 4294901760
          %3189 = vmatmul.f32.gmra.mxu0 %v3188
          %v3190 = vpop.f32.mrf.mxu0
          %v3191 = vadd.f32 %v3168, %v3190
          %3192 = vdwg.mxu0
          %v3193 = vld [vmem:[#allocation4 + $0x1] sm:$0xf]
          %s3194 = scalar_lea.vmem [#allocation12], 16
          %v3195 = vld [vmem:[%s3194] sm:$0xff]
          %v3196 = vld [vmem:[%s3194 + $0x8] sm:$0xff]
          %v3198 = vsel %vm343, %v3193, 0
          %3200 = vmatpush.msra.mxu0 0.0
          %3201 = vmatpush.msra.mxu0 0.0
          %3202 = vmatpush.msra.mxu0 0.0
          %3203 = vmatpush.msra.mxu0 0.0
          %3204 = vmatpush.msra.mxu0 0.0
          %3205 = vmatpush.msra.mxu0 0.0
          %3206 = vmatpush.msra.mxu0 0.0
          %3207 = vmatpush.msra.mxu0 0.0
          %3208 = vmatpush.msra.mxu0 0.0
          %3209 = vmatpush.msra.mxu0 0.0
          %3210 = vmatpush.msra.mxu0 0.0
          %3211 = vmatpush.msra.mxu0 0.0
          %3212 = vmatpush.msra.mxu0 0.0
          %3213 = vmatpush.msra.mxu0 0.0
          %v3214 = vand.u32 %v3196, 4294901760
          %3215 = vmatpush.msra.mxu0 %v3214
          %v3216 = vand.u32 %v3195, 4294901760
          %3217 = vmatpush.msra.mxu0 %v3216
          %v3218 = vand.u32 %v3198, 4294901760
          %v3219 = vsub.f32 %v3198, %v3218
          %v3220 = vand.u32 %v3219, 4294901760
          %v3221 = vsub.f32 %v3219, %v3220
          %v3222 = vand.u32 %v3221, 4294901760
          %3223 = vmatmul.f32.gmra.mxu0 %v3222
          %v3224 = vpop.f32.mrf.mxu0
          %v3225 = vadd.f32 0.0, %v3224
          %3226 = vdwg.mxu0
          %3227 = vmatpush.msra.mxu0 0.0
          %3228 = vmatpush.msra.mxu0 0.0
          %3229 = vmatpush.msra.mxu0 0.0
          %3230 = vmatpush.msra.mxu0 0.0
          %3231 = vmatpush.msra.mxu0 0.0
          %3232 = vmatpush.msra.mxu0 0.0
          %3233 = vmatpush.msra.mxu0 0.0
          %3234 = vmatpush.msra.mxu0 0.0
          %3235 = vmatpush.msra.mxu0 0.0
          %3236 = vmatpush.msra.mxu0 0.0
          %3237 = vmatpush.msra.mxu0 0.0
          %3238 = vmatpush.msra.mxu0 0.0
          %3239 = vmatpush.msra.mxu0 0.0
          %3240 = vmatpush.msra.mxu0 0.0
          %v3241 = vand.u32 %v3196, 4294901760
          %v3242 = vsub.f32 %v3196, %v3241
          %v3243 = vand.u32 %v3242, 4294901760
          %v3244 = vsub.f32 %v3242, %v3243
          %v3245 = vand.u32 %v3244, 4294901760
          %3246 = vmatpush.msra.mxu0 %v3245
          %v3247 = vand.u32 %v3195, 4294901760
          %v3248 = vsub.f32 %v3195, %v3247
          %v3249 = vand.u32 %v3248, 4294901760
          %v3250 = vsub.f32 %v3248, %v3249
          %v3251 = vand.u32 %v3250, 4294901760
          %3252 = vmatpush.msra.mxu0 %v3251
          %v3253 = vand.u32 %v3198, 4294901760
          %3254 = vmatmul.f32.gmra.mxu0 %v3253
          %v3255 = vpop.f32.mrf.mxu0
          %v3256 = vadd.f32 %v3225, %v3255
          %3257 = vdwg.mxu0
          %3258 = vmatpush.msra.mxu0 0.0
          %3259 = vmatpush.msra.mxu0 0.0
          %3260 = vmatpush.msra.mxu0 0.0
          %3261 = vmatpush.msra.mxu0 0.0
          %3262 = vmatpush.msra.mxu0 0.0
          %3263 = vmatpush.msra.mxu0 0.0
          %3264 = vmatpush.msra.mxu0 0.0
          %3265 = vmatpush.msra.mxu0 0.0
          %3266 = vmatpush.msra.mxu0 0.0
          %3267 = vmatpush.msra.mxu0 0.0
          %3268 = vmatpush.msra.mxu0 0.0
          %3269 = vmatpush.msra.mxu0 0.0
          %3270 = vmatpush.msra.mxu0 0.0
          %3271 = vmatpush.msra.mxu0 0.0
          %v3272 = vand.u32 %v3196, 4294901760
          %v3273 = vsub.f32 %v3196, %v3272
          %3274 = vmatpush.msra.mxu0 %v3273
          %v3275 = vand.u32 %v3195, 4294901760
          %v3276 = vsub.f32 %v3195, %v3275
          %3277 = vmatpush.msra.mxu0 %v3276
          %v3278 = vand.u32 %v3198, 4294901760
          %v3279 = vsub.f32 %v3198, %v3278
          %3280 = vmatmul.f32.gmra.mxu0 %v3279
          %v3281 = vpop.f32.mrf.mxu0
          %v3282 = vadd.f32 %v3256, %v3281
          %3283 = vdwg.mxu0
          %3284 = vmatpush.msra.mxu0 0.0
          %3285 = vmatpush.msra.mxu0 0.0
          %3286 = vmatpush.msra.mxu0 0.0
          %3287 = vmatpush.msra.mxu0 0.0
          %3288 = vmatpush.msra.mxu0 0.0
          %3289 = vmatpush.msra.mxu0 0.0
          %3290 = vmatpush.msra.mxu0 0.0
          %3291 = vmatpush.msra.mxu0 0.0
          %3292 = vmatpush.msra.mxu0 0.0
          %3293 = vmatpush.msra.mxu0 0.0
          %3294 = vmatpush.msra.mxu0 0.0
          %3295 = vmatpush.msra.mxu0 0.0
          %3296 = vmatpush.msra.mxu0 0.0
          %3297 = vmatpush.msra.mxu0 0.0
          %v3298 = vand.u32 %v3196, 4294901760
          %3299 = vmatpush.msra.mxu0 %v3298
          %v3300 = vand.u32 %v3195, 4294901760
          %3301 = vmatpush.msra.mxu0 %v3300
          %v3302 = vand.u32 %v3198, 4294901760
          %v3303 = vsub.f32 %v3198, %v3302
          %v3304 = vand.u32 %v3303, 4294901760
          %3305 = vmatmul.f32.gmra.mxu0 %v3304
          %v3306 = vpop.f32.mrf.mxu0
          %v3307 = vadd.f32 %v3282, %v3306
          %3308 = vdwg.mxu0
          %3309 = vmatpush.msra.mxu0 0.0
          %3310 = vmatpush.msra.mxu0 0.0
          %3311 = vmatpush.msra.mxu0 0.0
          %3312 = vmatpush.msra.mxu0 0.0
          %3313 = vmatpush.msra.mxu0 0.0
          %3314 = vmatpush.msra.mxu0 0.0
          %3315 = vmatpush.msra.mxu0 0.0
          %3316 = vmatpush.msra.mxu0 0.0
          %3317 = vmatpush.msra.mxu0 0.0
          %3318 = vmatpush.msra.mxu0 0.0
          %3319 = vmatpush.msra.mxu0 0.0
          %3320 = vmatpush.msra.mxu0 0.0
          %3321 = vmatpush.msra.mxu0 0.0
          %3322 = vmatpush.msra.mxu0 0.0
          %v3323 = vand.u32 %v3196, 4294901760
          %v3324 = vsub.f32 %v3196, %v3323
          %v3325 = vand.u32 %v3324, 4294901760
          %3326 = vmatpush.msra.mxu0 %v3325
          %v3327 = vand.u32 %v3195, 4294901760
          %v3328 = vsub.f32 %v3195, %v3327
          %v3329 = vand.u32 %v3328, 4294901760
          %3330 = vmatpush.msra.mxu0 %v3329
          %v3331 = vand.u32 %v3198, 4294901760
          %3332 = vmatmul.f32.gmra.mxu0 %v3331
          %v3333 = vpop.f32.mrf.mxu0
          %v3334 = vadd.f32 %v3307, %v3333
          %3335 = vdwg.mxu0
          %3336 = vmatpush.msra.mxu0 0.0
          %3337 = vmatpush.msra.mxu0 0.0
          %3338 = vmatpush.msra.mxu0 0.0
          %3339 = vmatpush.msra.mxu0 0.0
          %3340 = vmatpush.msra.mxu0 0.0
          %3341 = vmatpush.msra.mxu0 0.0
          %3342 = vmatpush.msra.mxu0 0.0
          %3343 = vmatpush.msra.mxu0 0.0
          %3344 = vmatpush.msra.mxu0 0.0
          %3345 = vmatpush.msra.mxu0 0.0
          %3346 = vmatpush.msra.mxu0 0.0
          %3347 = vmatpush.msra.mxu0 0.0
          %3348 = vmatpush.msra.mxu0 0.0
          %3349 = vmatpush.msra.mxu0 0.0
          %v3350 = vand.u32 %v3196, 4294901760
          %3351 = vmatpush.msra.mxu0 %v3350
          %v3352 = vand.u32 %v3195, 4294901760
          %3353 = vmatpush.msra.mxu0 %v3352
          %v3354 = vand.u32 %v3198, 4294901760
          %3355 = vmatmul.f32.gmra.mxu0 %v3354
          %v3356 = vpop.f32.mrf.mxu0
          %v3357 = vadd.f32 %v3334, %v3356
          %3358 = vdwg.mxu0
          %v3359 = vadd.f32 %v3191, %v3357
          %v3360 = vld [vmem:[#allocation5 + $0x1] sm:$0xf]
          %s3361 = scalar_lea.vmem [#allocation12], 96
          %v3362 = vld [vmem:[%s3361] sm:$0xff]
          %v3363 = vld [vmem:[%s3361 + $0x8] sm:$0xff]
          %v3365 = vsel %vm343, %v3360, 0
          %3367 = vmatpush.msra.mxu0 0.0
          %3368 = vmatpush.msra.mxu0 0.0
          %3369 = vmatpush.msra.mxu0 0.0
          %3370 = vmatpush.msra.mxu0 0.0
          %3371 = vmatpush.msra.mxu0 0.0
          %3372 = vmatpush.msra.mxu0 0.0
          %3373 = vmatpush.msra.mxu0 0.0
          %3374 = vmatpush.msra.mxu0 0.0
          %3375 = vmatpush.msra.mxu0 0.0
          %3376 = vmatpush.msra.mxu0 0.0
          %3377 = vmatpush.msra.mxu0 0.0
          %3378 = vmatpush.msra.mxu0 0.0
          %3379 = vmatpush.msra.mxu0 0.0
          %3380 = vmatpush.msra.mxu0 0.0
          %v3381 = vand.u32 %v3363, 4294901760
          %3382 = vmatpush.msra.mxu0 %v3381
          %v3383 = vand.u32 %v3362, 4294901760
          %3384 = vmatpush.msra.mxu0 %v3383
          %v3385 = vand.u32 %v3365, 4294901760
          %v3386 = vsub.f32 %v3365, %v3385
          %v3387 = vand.u32 %v3386, 4294901760
          %v3388 = vsub.f32 %v3386, %v3387
          %v3389 = vand.u32 %v3388, 4294901760
          %3390 = vmatmul.f32.gmra.mxu0 %v3389
          %v3391 = vpop.f32.mrf.mxu0
          %v3392 = vadd.f32 0.0, %v3391
          %3393 = vdwg.mxu0
          %3394 = vmatpush.msra.mxu0 0.0
          %3395 = vmatpush.msra.mxu0 0.0
          %3396 = vmatpush.msra.mxu0 0.0
          %3397 = vmatpush.msra.mxu0 0.0
          %3398 = vmatpush.msra.mxu0 0.0
          %3399 = vmatpush.msra.mxu0 0.0
          %3400 = vmatpush.msra.mxu0 0.0
          %3401 = vmatpush.msra.mxu0 0.0
          %3402 = vmatpush.msra.mxu0 0.0
          %3403 = vmatpush.msra.mxu0 0.0
          %3404 = vmatpush.msra.mxu0 0.0
          %3405 = vmatpush.msra.mxu0 0.0
          %3406 = vmatpush.msra.mxu0 0.0
          %3407 = vmatpush.msra.mxu0 0.0
          %v3408 = vand.u32 %v3363, 4294901760
          %v3409 = vsub.f32 %v3363, %v3408
          %v3410 = vand.u32 %v3409, 4294901760
          %v3411 = vsub.f32 %v3409, %v3410
          %v3412 = vand.u32 %v3411, 4294901760
          %3413 = vmatpush.msra.mxu0 %v3412
          %v3414 = vand.u32 %v3362, 4294901760
          %v3415 = vsub.f32 %v3362, %v3414
          %v3416 = vand.u32 %v3415, 4294901760
          %v3417 = vsub.f32 %v3415, %v3416
          %v3418 = vand.u32 %v3417, 4294901760
          %3419 = vmatpush.msra.mxu0 %v3418
          %v3420 = vand.u32 %v3365, 4294901760
          %3421 = vmatmul.f32.gmra.mxu0 %v3420
          %v3422 = vpop.f32.mrf.mxu0
          %v3423 = vadd.f32 %v3392, %v3422
          %3424 = vdwg.mxu0
          %3425 = vmatpush.msra.mxu0 0.0
          %3426 = vmatpush.msra.mxu0 0.0
          %3427 = vmatpush.msra.mxu0 0.0
          %3428 = vmatpush.msra.mxu0 0.0
          %3429 = vmatpush.msra.mxu0 0.0
          %3430 = vmatpush.msra.mxu0 0.0
          %3431 = vmatpush.msra.mxu0 0.0
          %3432 = vmatpush.msra.mxu0 0.0
          %3433 = vmatpush.msra.mxu0 0.0
          %3434 = vmatpush.msra.mxu0 0.0
          %3435 = vmatpush.msra.mxu0 0.0
          %3436 = vmatpush.msra.mxu0 0.0
          %3437 = vmatpush.msra.mxu0 0.0
          %3438 = vmatpush.msra.mxu0 0.0
          %v3439 = vand.u32 %v3363, 4294901760
          %v3440 = vsub.f32 %v3363, %v3439
          %3441 = vmatpush.msra.mxu0 %v3440
          %v3442 = vand.u32 %v3362, 4294901760
          %v3443 = vsub.f32 %v3362, %v3442
          %3444 = vmatpush.msra.mxu0 %v3443
          %v3445 = vand.u32 %v3365, 4294901760
          %v3446 = vsub.f32 %v3365, %v3445
          %3447 = vmatmul.f32.gmra.mxu0 %v3446
          %v3448 = vpop.f32.mrf.mxu0
          %v3449 = vadd.f32 %v3423, %v3448
          %3450 = vdwg.mxu0
          %3451 = vmatpush.msra.mxu0 0.0
          %3452 = vmatpush.msra.mxu0 0.0
          %3453 = vmatpush.msra.mxu0 0.0
          %3454 = vmatpush.msra.mxu0 0.0
          %3455 = vmatpush.msra.mxu0 0.0
          %3456 = vmatpush.msra.mxu0 0.0
          %3457 = vmatpush.msra.mxu0 0.0
          %3458 = vmatpush.msra.mxu0 0.0
          %3459 = vmatpush.msra.mxu0 0.0
          %3460 = vmatpush.msra.mxu0 0.0
          %3461 = vmatpush.msra.mxu0 0.0
          %3462 = vmatpush.msra.mxu0 0.0
          %3463 = vmatpush.msra.mxu0 0.0
          %3464 = vmatpush.msra.mxu0 0.0
          %v3465 = vand.u32 %v3363, 4294901760
          %3466 = vmatpush.msra.mxu0 %v3465
          %v3467 = vand.u32 %v3362, 4294901760
          %3468 = vmatpush.msra.mxu0 %v3467
          %v3469 = vand.u32 %v3365, 4294901760
          %v3470 = vsub.f32 %v3365, %v3469
          %v3471 = vand.u32 %v3470, 4294901760
          %3472 = vmatmul.f32.gmra.mxu0 %v3471
          %v3473 = vpop.f32.mrf.mxu0
          %v3474 = vadd.f32 %v3449, %v3473
          %3475 = vdwg.mxu0
          %3476 = vmatpush.msra.mxu0 0.0
          %3477 = vmatpush.msra.mxu0 0.0
          %3478 = vmatpush.msra.mxu0 0.0
          %3479 = vmatpush.msra.mxu0 0.0
          %3480 = vmatpush.msra.mxu0 0.0
          %3481 = vmatpush.msra.mxu0 0.0
          %3482 = vmatpush.msra.mxu0 0.0
          %3483 = vmatpush.msra.mxu0 0.0
          %3484 = vmatpush.msra.mxu0 0.0
          %3485 = vmatpush.msra.mxu0 0.0
          %3486 = vmatpush.msra.mxu0 0.0
          %3487 = vmatpush.msra.mxu0 0.0
          %3488 = vmatpush.msra.mxu0 0.0
          %3489 = vmatpush.msra.mxu0 0.0
          %v3490 = vand.u32 %v3363, 4294901760
          %v3491 = vsub.f32 %v3363, %v3490
          %v3492 = vand.u32 %v3491, 4294901760
          %3493 = vmatpush.msra.mxu0 %v3492
          %v3494 = vand.u32 %v3362, 4294901760
          %v3495 = vsub.f32 %v3362, %v3494
          %v3496 = vand.u32 %v3495, 4294901760
          %3497 = vmatpush.msra.mxu0 %v3496
          %v3498 = vand.u32 %v3365, 4294901760
          %3499 = vmatmul.f32.gmra.mxu0 %v3498
          %v3500 = vpop.f32.mrf.mxu0
          %v3501 = vadd.f32 %v3474, %v3500
          %3502 = vdwg.mxu0
          %3503 = vmatpush.msra.mxu0 0.0
          %3504 = vmatpush.msra.mxu0 0.0
          %3505 = vmatpush.msra.mxu0 0.0
          %3506 = vmatpush.msra.mxu0 0.0
          %3507 = vmatpush.msra.mxu0 0.0
          %3508 = vmatpush.msra.mxu0 0.0
          %3509 = vmatpush.msra.mxu0 0.0
          %3510 = vmatpush.msra.mxu0 0.0
          %3511 = vmatpush.msra.mxu0 0.0
          %3512 = vmatpush.msra.mxu0 0.0
          %3513 = vmatpush.msra.mxu0 0.0
          %3514 = vmatpush.msra.mxu0 0.0
          %3515 = vmatpush.msra.mxu0 0.0
          %3516 = vmatpush.msra.mxu0 0.0
          %v3517 = vand.u32 %v3363, 4294901760
          %3518 = vmatpush.msra.mxu0 %v3517
          %v3519 = vand.u32 %v3362, 4294901760
          %3520 = vmatpush.msra.mxu0 %v3519
          %v3521 = vand.u32 %v3365, 4294901760
          %3522 = vmatmul.f32.gmra.mxu0 %v3521
          %v3523 = vpop.f32.mrf.mxu0
          %v3524 = vadd.f32 %v3501, %v3523
          %3525 = vdwg.mxu0
          %v3526 = vadd.f32 %v3359, %v3524
          %v3527 = vld [vmem:[#allocation4 + $0x2] sm:$0xf]
          %s3528 = scalar_lea.vmem [#allocation12], 32
          %v3529 = vld [vmem:[%s3528] sm:$0xff]
          %v3530 = vld [vmem:[%s3528 + $0x8] sm:$0xff]
          %v3532 = vsel %vm343, %v3527, 0
          %3534 = vmatpush.msra.mxu0 0.0
          %3535 = vmatpush.msra.mxu0 0.0
          %3536 = vmatpush.msra.mxu0 0.0
          %3537 = vmatpush.msra.mxu0 0.0
          %3538 = vmatpush.msra.mxu0 0.0
          %3539 = vmatpush.msra.mxu0 0.0
          %3540 = vmatpush.msra.mxu0 0.0
          %3541 = vmatpush.msra.mxu0 0.0
          %3542 = vmatpush.msra.mxu0 0.0
          %3543 = vmatpush.msra.mxu0 0.0
          %3544 = vmatpush.msra.mxu0 0.0
          %3545 = vmatpush.msra.mxu0 0.0
          %3546 = vmatpush.msra.mxu0 0.0
          %3547 = vmatpush.msra.mxu0 0.0
          %v3548 = vand.u32 %v3530, 4294901760
          %3549 = vmatpush.msra.mxu0 %v3548
          %v3550 = vand.u32 %v3529, 4294901760
          %3551 = vmatpush.msra.mxu0 %v3550
          %v3552 = vand.u32 %v3532, 4294901760
          %v3553 = vsub.f32 %v3532, %v3552
          %v3554 = vand.u32 %v3553, 4294901760
          %v3555 = vsub.f32 %v3553, %v3554
          %v3556 = vand.u32 %v3555, 4294901760
          %3557 = vmatmul.f32.gmra.mxu0 %v3556
          %v3558 = vpop.f32.mrf.mxu0
          %v3559 = vadd.f32 0.0, %v3558
          %3560 = vdwg.mxu0
          %3561 = vmatpush.msra.mxu0 0.0
          %3562 = vmatpush.msra.mxu0 0.0
          %3563 = vmatpush.msra.mxu0 0.0
          %3564 = vmatpush.msra.mxu0 0.0
          %3565 = vmatpush.msra.mxu0 0.0
          %3566 = vmatpush.msra.mxu0 0.0
          %3567 = vmatpush.msra.mxu0 0.0
          %3568 = vmatpush.msra.mxu0 0.0
          %3569 = vmatpush.msra.mxu0 0.0
          %3570 = vmatpush.msra.mxu0 0.0
          %3571 = vmatpush.msra.mxu0 0.0
          %3572 = vmatpush.msra.mxu0 0.0
          %3573 = vmatpush.msra.mxu0 0.0
          %3574 = vmatpush.msra.mxu0 0.0
          %v3575 = vand.u32 %v3530, 4294901760
          %v3576 = vsub.f32 %v3530, %v3575
          %v3577 = vand.u32 %v3576, 4294901760
          %v3578 = vsub.f32 %v3576, %v3577
          %v3579 = vand.u32 %v3578, 4294901760
          %3580 = vmatpush.msra.mxu0 %v3579
          %v3581 = vand.u32 %v3529, 4294901760
          %v3582 = vsub.f32 %v3529, %v3581
          %v3583 = vand.u32 %v3582, 4294901760
          %v3584 = vsub.f32 %v3582, %v3583
          %v3585 = vand.u32 %v3584, 4294901760
          %3586 = vmatpush.msra.mxu0 %v3585
          %v3587 = vand.u32 %v3532, 4294901760
          %3588 = vmatmul.f32.gmra.mxu0 %v3587
          %v3589 = vpop.f32.mrf.mxu0
          %v3590 = vadd.f32 %v3559, %v3589
          %3591 = vdwg.mxu0
          %3592 = vmatpush.msra.mxu0 0.0
          %3593 = vmatpush.msra.mxu0 0.0
          %3594 = vmatpush.msra.mxu0 0.0
          %3595 = vmatpush.msra.mxu0 0.0
          %3596 = vmatpush.msra.mxu0 0.0
          %3597 = vmatpush.msra.mxu0 0.0
          %3598 = vmatpush.msra.mxu0 0.0
          %3599 = vmatpush.msra.mxu0 0.0
          %3600 = vmatpush.msra.mxu0 0.0
          %3601 = vmatpush.msra.mxu0 0.0
          %3602 = vmatpush.msra.mxu0 0.0
          %3603 = vmatpush.msra.mxu0 0.0
          %3604 = vmatpush.msra.mxu0 0.0
          %3605 = vmatpush.msra.mxu0 0.0
          %v3606 = vand.u32 %v3530, 4294901760
          %v3607 = vsub.f32 %v3530, %v3606
          %3608 = vmatpush.msra.mxu0 %v3607
          %v3609 = vand.u32 %v3529, 4294901760
          %v3610 = vsub.f32 %v3529, %v3609
          %3611 = vmatpush.msra.mxu0 %v3610
          %v3612 = vand.u32 %v3532, 4294901760
          %v3613 = vsub.f32 %v3532, %v3612
          %3614 = vmatmul.f32.gmra.mxu0 %v3613
          %v3615 = vpop.f32.mrf.mxu0
          %v3616 = vadd.f32 %v3590, %v3615
          %3617 = vdwg.mxu0
          %3618 = vmatpush.msra.mxu0 0.0
          %3619 = vmatpush.msra.mxu0 0.0
          %3620 = vmatpush.msra.mxu0 0.0
          %3621 = vmatpush.msra.mxu0 0.0
          %3622 = vmatpush.msra.mxu0 0.0
          %3623 = vmatpush.msra.mxu0 0.0
          %3624 = vmatpush.msra.mxu0 0.0
          %3625 = vmatpush.msra.mxu0 0.0
          %3626 = vmatpush.msra.mxu0 0.0
          %3627 = vmatpush.msra.mxu0 0.0
          %3628 = vmatpush.msra.mxu0 0.0
          %3629 = vmatpush.msra.mxu0 0.0
          %3630 = vmatpush.msra.mxu0 0.0
          %3631 = vmatpush.msra.mxu0 0.0
          %v3632 = vand.u32 %v3530, 4294901760
          %3633 = vmatpush.msra.mxu0 %v3632
          %v3634 = vand.u32 %v3529, 4294901760
          %3635 = vmatpush.msra.mxu0 %v3634
          %v3636 = vand.u32 %v3532, 4294901760
          %v3637 = vsub.f32 %v3532, %v3636
          %v3638 = vand.u32 %v3637, 4294901760
          %3639 = vmatmul.f32.gmra.mxu0 %v3638
          %v3640 = vpop.f32.mrf.mxu0
          %v3641 = vadd.f32 %v3616, %v3640
          %3642 = vdwg.mxu0
          %3643 = vmatpush.msra.mxu0 0.0
          %3644 = vmatpush.msra.mxu0 0.0
          %3645 = vmatpush.msra.mxu0 0.0
          %3646 = vmatpush.msra.mxu0 0.0
          %3647 = vmatpush.msra.mxu0 0.0
          %3648 = vmatpush.msra.mxu0 0.0
          %3649 = vmatpush.msra.mxu0 0.0
          %3650 = vmatpush.msra.mxu0 0.0
          %3651 = vmatpush.msra.mxu0 0.0
          %3652 = vmatpush.msra.mxu0 0.0
          %3653 = vmatpush.msra.mxu0 0.0
          %3654 = vmatpush.msra.mxu0 0.0
          %3655 = vmatpush.msra.mxu0 0.0
          %3656 = vmatpush.msra.mxu0 0.0
          %v3657 = vand.u32 %v3530, 4294901760
          %v3658 = vsub.f32 %v3530, %v3657
          %v3659 = vand.u32 %v3658, 4294901760
          %3660 = vmatpush.msra.mxu0 %v3659
          %v3661 = vand.u32 %v3529, 4294901760
          %v3662 = vsub.f32 %v3529, %v3661
          %v3663 = vand.u32 %v3662, 4294901760
          %3664 = vmatpush.msra.mxu0 %v3663
          %v3665 = vand.u32 %v3532, 4294901760
          %3666 = vmatmul.f32.gmra.mxu0 %v3665
          %v3667 = vpop.f32.mrf.mxu0
          %v3668 = vadd.f32 %v3641, %v3667
          %3669 = vdwg.mxu0
          %3670 = vmatpush.msra.mxu0 0.0
          %3671 = vmatpush.msra.mxu0 0.0
          %3672 = vmatpush.msra.mxu0 0.0
          %3673 = vmatpush.msra.mxu0 0.0
          %3674 = vmatpush.msra.mxu0 0.0
          %3675 = vmatpush.msra.mxu0 0.0
          %3676 = vmatpush.msra.mxu0 0.0
          %3677 = vmatpush.msra.mxu0 0.0
          %3678 = vmatpush.msra.mxu0 0.0
          %3679 = vmatpush.msra.mxu0 0.0
          %3680 = vmatpush.msra.mxu0 0.0
          %3681 = vmatpush.msra.mxu0 0.0
          %3682 = vmatpush.msra.mxu0 0.0
          %3683 = vmatpush.msra.mxu0 0.0
          %v3684 = vand.u32 %v3530, 4294901760
          %3685 = vmatpush.msra.mxu0 %v3684
          %v3686 = vand.u32 %v3529, 4294901760
          %3687 = vmatpush.msra.mxu0 %v3686
          %v3688 = vand.u32 %v3532, 4294901760
          %3689 = vmatmul.f32.gmra.mxu0 %v3688
          %v3690 = vpop.f32.mrf.mxu0
          %v3691 = vadd.f32 %v3668, %v3690
          %3692 = vdwg.mxu0
          %v3693 = vadd.f32 %v3526, %v3691
          %v3694 = vld [vmem:[#allocation5 + $0x2] sm:$0xf]
          %s3695 = scalar_lea.vmem [#allocation12], 112
          %v3696 = vld [vmem:[%s3695] sm:$0xff]
          %v3697 = vld [vmem:[%s3695 + $0x8] sm:$0xff]
          %v3699 = vsel %vm343, %v3694, 0
          %3701 = vmatpush.msra.mxu0 0.0
          %3702 = vmatpush.msra.mxu0 0.0
          %3703 = vmatpush.msra.mxu0 0.0
          %3704 = vmatpush.msra.mxu0 0.0
          %3705 = vmatpush.msra.mxu0 0.0
          %3706 = vmatpush.msra.mxu0 0.0
          %3707 = vmatpush.msra.mxu0 0.0
          %3708 = vmatpush.msra.mxu0 0.0
          %3709 = vmatpush.msra.mxu0 0.0
          %3710 = vmatpush.msra.mxu0 0.0
          %3711 = vmatpush.msra.mxu0 0.0
          %3712 = vmatpush.msra.mxu0 0.0
          %3713 = vmatpush.msra.mxu0 0.0
          %3714 = vmatpush.msra.mxu0 0.0
          %v3715 = vand.u32 %v3697, 4294901760
          %3716 = vmatpush.msra.mxu0 %v3715
          %v3717 = vand.u32 %v3696, 4294901760
          %3718 = vmatpush.msra.mxu0 %v3717
          %v3719 = vand.u32 %v3699, 4294901760
          %v3720 = vsub.f32 %v3699, %v3719
          %v3721 = vand.u32 %v3720, 4294901760
          %v3722 = vsub.f32 %v3720, %v3721
          %v3723 = vand.u32 %v3722, 4294901760
          %3724 = vmatmul.f32.gmra.mxu0 %v3723
          %v3725 = vpop.f32.mrf.mxu0
          %v3726 = vadd.f32 0.0, %v3725
          %3727 = vdwg.mxu0
          %3728 = vmatpush.msra.mxu0 0.0
          %3729 = vmatpush.msra.mxu0 0.0
          %3730 = vmatpush.msra.mxu0 0.0
          %3731 = vmatpush.msra.mxu0 0.0
          %3732 = vmatpush.msra.mxu0 0.0
          %3733 = vmatpush.msra.mxu0 0.0
          %3734 = vmatpush.msra.mxu0 0.0
          %3735 = vmatpush.msra.mxu0 0.0
          %3736 = vmatpush.msra.mxu0 0.0
          %3737 = vmatpush.msra.mxu0 0.0
          %3738 = vmatpush.msra.mxu0 0.0
          %3739 = vmatpush.msra.mxu0 0.0
          %3740 = vmatpush.msra.mxu0 0.0
          %3741 = vmatpush.msra.mxu0 0.0
          %v3742 = vand.u32 %v3697, 4294901760
          %v3743 = vsub.f32 %v3697, %v3742
          %v3744 = vand.u32 %v3743, 4294901760
          %v3745 = vsub.f32 %v3743, %v3744
          %v3746 = vand.u32 %v3745, 4294901760
          %3747 = vmatpush.msra.mxu0 %v3746
          %v3748 = vand.u32 %v3696, 4294901760
          %v3749 = vsub.f32 %v3696, %v3748
          %v3750 = vand.u32 %v3749, 4294901760
          %v3751 = vsub.f32 %v3749, %v3750
          %v3752 = vand.u32 %v3751, 4294901760
          %3753 = vmatpush.msra.mxu0 %v3752
          %v3754 = vand.u32 %v3699, 4294901760
          %3755 = vmatmul.f32.gmra.mxu0 %v3754
          %v3756 = vpop.f32.mrf.mxu0
          %v3757 = vadd.f32 %v3726, %v3756
          %3758 = vdwg.mxu0
          %3759 = vmatpush.msra.mxu0 0.0
          %3760 = vmatpush.msra.mxu0 0.0
          %3761 = vmatpush.msra.mxu0 0.0
          %3762 = vmatpush.msra.mxu0 0.0
          %3763 = vmatpush.msra.mxu0 0.0
          %3764 = vmatpush.msra.mxu0 0.0
          %3765 = vmatpush.msra.mxu0 0.0
          %3766 = vmatpush.msra.mxu0 0.0
          %3767 = vmatpush.msra.mxu0 0.0
          %3768 = vmatpush.msra.mxu0 0.0
          %3769 = vmatpush.msra.mxu0 0.0
          %3770 = vmatpush.msra.mxu0 0.0
          %3771 = vmatpush.msra.mxu0 0.0
          %3772 = vmatpush.msra.mxu0 0.0
          %v3773 = vand.u32 %v3697, 4294901760
          %v3774 = vsub.f32 %v3697, %v3773
          %3775 = vmatpush.msra.mxu0 %v3774
          %v3776 = vand.u32 %v3696, 4294901760
          %v3777 = vsub.f32 %v3696, %v3776
          %3778 = vmatpush.msra.mxu0 %v3777
          %v3779 = vand.u32 %v3699, 4294901760
          %v3780 = vsub.f32 %v3699, %v3779
          %3781 = vmatmul.f32.gmra.mxu0 %v3780
          %v3782 = vpop.f32.mrf.mxu0
          %v3783 = vadd.f32 %v3757, %v3782
          %3784 = vdwg.mxu0
          %3785 = vmatpush.msra.mxu0 0.0
          %3786 = vmatpush.msra.mxu0 0.0
          %3787 = vmatpush.msra.mxu0 0.0
          %3788 = vmatpush.msra.mxu0 0.0
          %3789 = vmatpush.msra.mxu0 0.0
          %3790 = vmatpush.msra.mxu0 0.0
          %3791 = vmatpush.msra.mxu0 0.0
          %3792 = vmatpush.msra.mxu0 0.0
          %3793 = vmatpush.msra.mxu0 0.0
          %3794 = vmatpush.msra.mxu0 0.0
          %3795 = vmatpush.msra.mxu0 0.0
          %3796 = vmatpush.msra.mxu0 0.0
          %3797 = vmatpush.msra.mxu0 0.0
          %3798 = vmatpush.msra.mxu0 0.0
          %v3799 = vand.u32 %v3697, 4294901760
          %3800 = vmatpush.msra.mxu0 %v3799
          %v3801 = vand.u32 %v3696, 4294901760
          %3802 = vmatpush.msra.mxu0 %v3801
          %v3803 = vand.u32 %v3699, 4294901760
          %v3804 = vsub.f32 %v3699, %v3803
          %v3805 = vand.u32 %v3804, 4294901760
          %3806 = vmatmul.f32.gmra.mxu0 %v3805
          %v3807 = vpop.f32.mrf.mxu0
          %v3808 = vadd.f32 %v3783, %v3807
          %3809 = vdwg.mxu0
          %3810 = vmatpush.msra.mxu0 0.0
          %3811 = vmatpush.msra.mxu0 0.0
          %3812 = vmatpush.msra.mxu0 0.0
          %3813 = vmatpush.msra.mxu0 0.0
          %3814 = vmatpush.msra.mxu0 0.0
          %3815 = vmatpush.msra.mxu0 0.0
          %3816 = vmatpush.msra.mxu0 0.0
          %3817 = vmatpush.msra.mxu0 0.0
          %3818 = vmatpush.msra.mxu0 0.0
          %3819 = vmatpush.msra.mxu0 0.0
          %3820 = vmatpush.msra.mxu0 0.0
          %3821 = vmatpush.msra.mxu0 0.0
          %3822 = vmatpush.msra.mxu0 0.0
          %3823 = vmatpush.msra.mxu0 0.0
          %v3824 = vand.u32 %v3697, 4294901760
          %v3825 = vsub.f32 %v3697, %v3824
          %v3826 = vand.u32 %v3825, 4294901760
          %3827 = vmatpush.msra.mxu0 %v3826
          %v3828 = vand.u32 %v3696, 4294901760
          %v3829 = vsub.f32 %v3696, %v3828
          %v3830 = vand.u32 %v3829, 4294901760
          %3831 = vmatpush.msra.mxu0 %v3830
          %v3832 = vand.u32 %v3699, 4294901760
          %3833 = vmatmul.f32.gmra.mxu0 %v3832
          %v3834 = vpop.f32.mrf.mxu0
          %v3835 = vadd.f32 %v3808, %v3834
          %3836 = vdwg.mxu0
          %3837 = vmatpush.msra.mxu0 0.0
          %3838 = vmatpush.msra.mxu0 0.0
          %3839 = vmatpush.msra.mxu0 0.0
          %3840 = vmatpush.msra.mxu0 0.0
          %3841 = vmatpush.msra.mxu0 0.0
          %3842 = vmatpush.msra.mxu0 0.0
          %3843 = vmatpush.msra.mxu0 0.0
          %3844 = vmatpush.msra.mxu0 0.0
          %3845 = vmatpush.msra.mxu0 0.0
          %3846 = vmatpush.msra.mxu0 0.0
          %3847 = vmatpush.msra.mxu0 0.0
          %3848 = vmatpush.msra.mxu0 0.0
          %3849 = vmatpush.msra.mxu0 0.0
          %3850 = vmatpush.msra.mxu0 0.0
          %v3851 = vand.u32 %v3697, 4294901760
          %3852 = vmatpush.msra.mxu0 %v3851
          %v3853 = vand.u32 %v3696, 4294901760
          %3854 = vmatpush.msra.mxu0 %v3853
          %v3855 = vand.u32 %v3699, 4294901760
          %3856 = vmatmul.f32.gmra.mxu0 %v3855
          %v3857 = vpop.f32.mrf.mxu0
          %v3858 = vadd.f32 %v3835, %v3857
          %3859 = vdwg.mxu0
          %v3860 = vadd.f32 %v3693, %v3858
          %v3861 = vld [vmem:[#allocation4 + $0x3] sm:$0xf]
          %s3862 = scalar_lea.vmem [#allocation12], 48
          %v3863 = vld [vmem:[%s3862] sm:$0xff]
          %v3864 = vld [vmem:[%s3862 + $0x8] sm:$0xff]
          %v3866 = vsel %vm343, %v3861, 0
          %3868 = vmatpush.msra.mxu0 0.0
          %3869 = vmatpush.msra.mxu0 0.0
          %3870 = vmatpush.msra.mxu0 0.0
          %3871 = vmatpush.msra.mxu0 0.0
          %3872 = vmatpush.msra.mxu0 0.0
          %3873 = vmatpush.msra.mxu0 0.0
          %3874 = vmatpush.msra.mxu0 0.0
          %3875 = vmatpush.msra.mxu0 0.0
          %3876 = vmatpush.msra.mxu0 0.0
          %3877 = vmatpush.msra.mxu0 0.0
          %3878 = vmatpush.msra.mxu0 0.0
          %3879 = vmatpush.msra.mxu0 0.0
          %3880 = vmatpush.msra.mxu0 0.0
          %3881 = vmatpush.msra.mxu0 0.0
          %v3882 = vand.u32 %v3864, 4294901760
          %3883 = vmatpush.msra.mxu0 %v3882
          %v3884 = vand.u32 %v3863, 4294901760
          %3885 = vmatpush.msra.mxu0 %v3884
          %v3886 = vand.u32 %v3866, 4294901760
          %v3887 = vsub.f32 %v3866, %v3886
          %v3888 = vand.u32 %v3887, 4294901760
          %v3889 = vsub.f32 %v3887, %v3888
          %v3890 = vand.u32 %v3889, 4294901760
          %3891 = vmatmul.f32.gmra.mxu0 %v3890
          %v3892 = vpop.f32.mrf.mxu0
          %v3893 = vadd.f32 0.0, %v3892
          %3894 = vdwg.mxu0
          %3895 = vmatpush.msra.mxu0 0.0
          %3896 = vmatpush.msra.mxu0 0.0
          %3897 = vmatpush.msra.mxu0 0.0
          %3898 = vmatpush.msra.mxu0 0.0
          %3899 = vmatpush.msra.mxu0 0.0
          %3900 = vmatpush.msra.mxu0 0.0
          %3901 = vmatpush.msra.mxu0 0.0
          %3902 = vmatpush.msra.mxu0 0.0
          %3903 = vmatpush.msra.mxu0 0.0
          %3904 = vmatpush.msra.mxu0 0.0
          %3905 = vmatpush.msra.mxu0 0.0
          %3906 = vmatpush.msra.mxu0 0.0
          %3907 = vmatpush.msra.mxu0 0.0
          %3908 = vmatpush.msra.mxu0 0.0
          %v3909 = vand.u32 %v3864, 4294901760
          %v3910 = vsub.f32 %v3864, %v3909
          %v3911 = vand.u32 %v3910, 4294901760
          %v3912 = vsub.f32 %v3910, %v3911
          %v3913 = vand.u32 %v3912, 4294901760
          %3914 = vmatpush.msra.mxu0 %v3913
          %v3915 = vand.u32 %v3863, 4294901760
          %v3916 = vsub.f32 %v3863, %v3915
          %v3917 = vand.u32 %v3916, 4294901760
          %v3918 = vsub.f32 %v3916, %v3917
          %v3919 = vand.u32 %v3918, 4294901760
          %3920 = vmatpush.msra.mxu0 %v3919
          %v3921 = vand.u32 %v3866, 4294901760
          %3922 = vmatmul.f32.gmra.mxu0 %v3921
          %v3923 = vpop.f32.mrf.mxu0
          %v3924 = vadd.f32 %v3893, %v3923
          %3925 = vdwg.mxu0
          %3926 = vmatpush.msra.mxu0 0.0
          %3927 = vmatpush.msra.mxu0 0.0
          %3928 = vmatpush.msra.mxu0 0.0
          %3929 = vmatpush.msra.mxu0 0.0
          %3930 = vmatpush.msra.mxu0 0.0
          %3931 = vmatpush.msra.mxu0 0.0
          %3932 = vmatpush.msra.mxu0 0.0
          %3933 = vmatpush.msra.mxu0 0.0
          %3934 = vmatpush.msra.mxu0 0.0
          %3935 = vmatpush.msra.mxu0 0.0
          %3936 = vmatpush.msra.mxu0 0.0
          %3937 = vmatpush.msra.mxu0 0.0
          %3938 = vmatpush.msra.mxu0 0.0
          %3939 = vmatpush.msra.mxu0 0.0
          %v3940 = vand.u32 %v3864, 4294901760
          %v3941 = vsub.f32 %v3864, %v3940
          %3942 = vmatpush.msra.mxu0 %v3941
          %v3943 = vand.u32 %v3863, 4294901760
          %v3944 = vsub.f32 %v3863, %v3943
          %3945 = vmatpush.msra.mxu0 %v3944
          %v3946 = vand.u32 %v3866, 4294901760
          %v3947 = vsub.f32 %v3866, %v3946
          %3948 = vmatmul.f32.gmra.mxu0 %v3947
          %v3949 = vpop.f32.mrf.mxu0
          %v3950 = vadd.f32 %v3924, %v3949
          %3951 = vdwg.mxu0
          %3952 = vmatpush.msra.mxu0 0.0
          %3953 = vmatpush.msra.mxu0 0.0
          %3954 = vmatpush.msra.mxu0 0.0
          %3955 = vmatpush.msra.mxu0 0.0
          %3956 = vmatpush.msra.mxu0 0.0
          %3957 = vmatpush.msra.mxu0 0.0
          %3958 = vmatpush.msra.mxu0 0.0
          %3959 = vmatpush.msra.mxu0 0.0
          %3960 = vmatpush.msra.mxu0 0.0
          %3961 = vmatpush.msra.mxu0 0.0
          %3962 = vmatpush.msra.mxu0 0.0
          %3963 = vmatpush.msra.mxu0 0.0
          %3964 = vmatpush.msra.mxu0 0.0
          %3965 = vmatpush.msra.mxu0 0.0
          %v3966 = vand.u32 %v3864, 4294901760
          %3967 = vmatpush.msra.mxu0 %v3966
          %v3968 = vand.u32 %v3863, 4294901760
          %3969 = vmatpush.msra.mxu0 %v3968
          %v3970 = vand.u32 %v3866, 4294901760
          %v3971 = vsub.f32 %v3866, %v3970
          %v3972 = vand.u32 %v3971, 4294901760
          %3973 = vmatmul.f32.gmra.mxu0 %v3972
          %v3974 = vpop.f32.mrf.mxu0
          %v3975 = vadd.f32 %v3950, %v3974
          %3976 = vdwg.mxu0
          %3977 = vmatpush.msra.mxu0 0.0
          %3978 = vmatpush.msra.mxu0 0.0
          %3979 = vmatpush.msra.mxu0 0.0
          %3980 = vmatpush.msra.mxu0 0.0
          %3981 = vmatpush.msra.mxu0 0.0
          %3982 = vmatpush.msra.mxu0 0.0
          %3983 = vmatpush.msra.mxu0 0.0
          %3984 = vmatpush.msra.mxu0 0.0
          %3985 = vmatpush.msra.mxu0 0.0
          %3986 = vmatpush.msra.mxu0 0.0
          %3987 = vmatpush.msra.mxu0 0.0
          %3988 = vmatpush.msra.mxu0 0.0
          %3989 = vmatpush.msra.mxu0 0.0
          %3990 = vmatpush.msra.mxu0 0.0
          %v3991 = vand.u32 %v3864, 4294901760
          %v3992 = vsub.f32 %v3864, %v3991
          %v3993 = vand.u32 %v3992, 4294901760
          %3994 = vmatpush.msra.mxu0 %v3993
          %v3995 = vand.u32 %v3863, 4294901760
          %v3996 = vsub.f32 %v3863, %v3995
          %v3997 = vand.u32 %v3996, 4294901760
          %3998 = vmatpush.msra.mxu0 %v3997
          %v3999 = vand.u32 %v3866, 4294901760
          %4000 = vmatmul.f32.gmra.mxu0 %v3999
          %v4001 = vpop.f32.mrf.mxu0
          %v4002 = vadd.f32 %v3975, %v4001
          %4003 = vdwg.mxu0
          %4004 = vmatpush.msra.mxu0 0.0
          %4005 = vmatpush.msra.mxu0 0.0
          %4006 = vmatpush.msra.mxu0 0.0
          %4007 = vmatpush.msra.mxu0 0.0
          %4008 = vmatpush.msra.mxu0 0.0
          %4009 = vmatpush.msra.mxu0 0.0
          %4010 = vmatpush.msra.mxu0 0.0
          %4011 = vmatpush.msra.mxu0 0.0
          %4012 = vmatpush.msra.mxu0 0.0
          %4013 = vmatpush.msra.mxu0 0.0
          %4014 = vmatpush.msra.mxu0 0.0
          %4015 = vmatpush.msra.mxu0 0.0
          %4016 = vmatpush.msra.mxu0 0.0
          %4017 = vmatpush.msra.mxu0 0.0
          %v4018 = vand.u32 %v3864, 4294901760
          %4019 = vmatpush.msra.mxu0 %v4018
          %v4020 = vand.u32 %v3863, 4294901760
          %4021 = vmatpush.msra.mxu0 %v4020
          %v4022 = vand.u32 %v3866, 4294901760
          %4023 = vmatmul.f32.gmra.mxu0 %v4022
          %v4024 = vpop.f32.mrf.mxu0
          %v4025 = vadd.f32 %v4002, %v4024
          %4026 = vdwg.mxu0
          %v4027 = vadd.f32 %v3860, %v4025
          %v4028 = vld [vmem:[#allocation5 + $0x3] sm:$0xf]
          %s4029 = scalar_lea.vmem [#allocation12], 128
          %v4030 = vld [vmem:[%s4029] sm:$0xff]
          %v4031 = vld [vmem:[%s4029 + $0x8] sm:$0xff]
          %v4033 = vsel %vm343, %v4028, 0
          %4035 = vmatpush.msra.mxu0 0.0
          %4036 = vmatpush.msra.mxu0 0.0
          %4037 = vmatpush.msra.mxu0 0.0
          %4038 = vmatpush.msra.mxu0 0.0
          %4039 = vmatpush.msra.mxu0 0.0
          %4040 = vmatpush.msra.mxu0 0.0
          %4041 = vmatpush.msra.mxu0 0.0
          %4042 = vmatpush.msra.mxu0 0.0
          %4043 = vmatpush.msra.mxu0 0.0
          %4044 = vmatpush.msra.mxu0 0.0
          %4045 = vmatpush.msra.mxu0 0.0
          %4046 = vmatpush.msra.mxu0 0.0
          %4047 = vmatpush.msra.mxu0 0.0
          %4048 = vmatpush.msra.mxu0 0.0
          %v4049 = vand.u32 %v4031, 4294901760
          %4050 = vmatpush.msra.mxu0 %v4049
          %v4051 = vand.u32 %v4030, 4294901760
          %4052 = vmatpush.msra.mxu0 %v4051
          %v4053 = vand.u32 %v4033, 4294901760
          %v4054 = vsub.f32 %v4033, %v4053
          %v4055 = vand.u32 %v4054, 4294901760
          %v4056 = vsub.f32 %v4054, %v4055
          %v4057 = vand.u32 %v4056, 4294901760
          %4058 = vmatmul.f32.gmra.mxu0 %v4057
          %v4059 = vpop.f32.mrf.mxu0
          %v4060 = vadd.f32 0.0, %v4059
          %4061 = vdwg.mxu0
          %4062 = vmatpush.msra.mxu0 0.0
          %4063 = vmatpush.msra.mxu0 0.0
          %4064 = vmatpush.msra.mxu0 0.0
          %4065 = vmatpush.msra.mxu0 0.0
          %4066 = vmatpush.msra.mxu0 0.0
          %4067 = vmatpush.msra.mxu0 0.0
          %4068 = vmatpush.msra.mxu0 0.0
          %4069 = vmatpush.msra.mxu0 0.0
          %4070 = vmatpush.msra.mxu0 0.0
          %4071 = vmatpush.msra.mxu0 0.0
          %4072 = vmatpush.msra.mxu0 0.0
          %4073 = vmatpush.msra.mxu0 0.0
          %4074 = vmatpush.msra.mxu0 0.0
          %4075 = vmatpush.msra.mxu0 0.0
          %v4076 = vand.u32 %v4031, 4294901760
          %v4077 = vsub.f32 %v4031, %v4076
          %v4078 = vand.u32 %v4077, 4294901760
          %v4079 = vsub.f32 %v4077, %v4078
          %v4080 = vand.u32 %v4079, 4294901760
          %4081 = vmatpush.msra.mxu0 %v4080
          %v4082 = vand.u32 %v4030, 4294901760
          %v4083 = vsub.f32 %v4030, %v4082
          %v4084 = vand.u32 %v4083, 4294901760
          %v4085 = vsub.f32 %v4083, %v4084
          %v4086 = vand.u32 %v4085, 4294901760
          %4087 = vmatpush.msra.mxu0 %v4086
          %v4088 = vand.u32 %v4033, 4294901760
          %4089 = vmatmul.f32.gmra.mxu0 %v4088
          %v4090 = vpop.f32.mrf.mxu0
          %v4091 = vadd.f32 %v4060, %v4090
          %4092 = vdwg.mxu0
          %4093 = vmatpush.msra.mxu0 0.0
          %4094 = vmatpush.msra.mxu0 0.0
          %4095 = vmatpush.msra.mxu0 0.0
          %4096 = vmatpush.msra.mxu0 0.0
          %4097 = vmatpush.msra.mxu0 0.0
          %4098 = vmatpush.msra.mxu0 0.0
          %4099 = vmatpush.msra.mxu0 0.0
          %4100 = vmatpush.msra.mxu0 0.0
          %4101 = vmatpush.msra.mxu0 0.0
          %4102 = vmatpush.msra.mxu0 0.0
          %4103 = vmatpush.msra.mxu0 0.0
          %4104 = vmatpush.msra.mxu0 0.0
          %4105 = vmatpush.msra.mxu0 0.0
          %4106 = vmatpush.msra.mxu0 0.0
          %v4107 = vand.u32 %v4031, 4294901760
          %v4108 = vsub.f32 %v4031, %v4107
          %4109 = vmatpush.msra.mxu0 %v4108
          %v4110 = vand.u32 %v4030, 4294901760
          %v4111 = vsub.f32 %v4030, %v4110
          %4112 = vmatpush.msra.mxu0 %v4111
          %v4113 = vand.u32 %v4033, 4294901760
          %v4114 = vsub.f32 %v4033, %v4113
          %4115 = vmatmul.f32.gmra.mxu0 %v4114
          %v4116 = vpop.f32.mrf.mxu0
          %v4117 = vadd.f32 %v4091, %v4116
          %4118 = vdwg.mxu0
          %4119 = vmatpush.msra.mxu0 0.0
          %4120 = vmatpush.msra.mxu0 0.0
          %4121 = vmatpush.msra.mxu0 0.0
          %4122 = vmatpush.msra.mxu0 0.0
          %4123 = vmatpush.msra.mxu0 0.0
          %4124 = vmatpush.msra.mxu0 0.0
          %4125 = vmatpush.msra.mxu0 0.0
          %4126 = vmatpush.msra.mxu0 0.0
          %4127 = vmatpush.msra.mxu0 0.0
          %4128 = vmatpush.msra.mxu0 0.0
          %4129 = vmatpush.msra.mxu0 0.0
          %4130 = vmatpush.msra.mxu0 0.0
          %4131 = vmatpush.msra.mxu0 0.0
          %4132 = vmatpush.msra.mxu0 0.0
          %v4133 = vand.u32 %v4031, 4294901760
          %4134 = vmatpush.msra.mxu0 %v4133
          %v4135 = vand.u32 %v4030, 4294901760
          %4136 = vmatpush.msra.mxu0 %v4135
          %v4137 = vand.u32 %v4033, 4294901760
          %v4138 = vsub.f32 %v4033, %v4137
          %v4139 = vand.u32 %v4138, 4294901760
          %4140 = vmatmul.f32.gmra.mxu0 %v4139
          %v4141 = vpop.f32.mrf.mxu0
          %v4142 = vadd.f32 %v4117, %v4141
          %4143 = vdwg.mxu0
          %4144 = vmatpush.msra.mxu0 0.0
          %4145 = vmatpush.msra.mxu0 0.0
          %4146 = vmatpush.msra.mxu0 0.0
          %4147 = vmatpush.msra.mxu0 0.0
          %4148 = vmatpush.msra.mxu0 0.0
          %4149 = vmatpush.msra.mxu0 0.0
          %4150 = vmatpush.msra.mxu0 0.0
          %4151 = vmatpush.msra.mxu0 0.0
          %4152 = vmatpush.msra.mxu0 0.0
          %4153 = vmatpush.msra.mxu0 0.0
          %4154 = vmatpush.msra.mxu0 0.0
          %4155 = vmatpush.msra.mxu0 0.0
          %4156 = vmatpush.msra.mxu0 0.0
          %4157 = vmatpush.msra.mxu0 0.0
          %v4158 = vand.u32 %v4031, 4294901760
          %v4159 = vsub.f32 %v4031, %v4158
          %v4160 = vand.u32 %v4159, 4294901760
          %4161 = vmatpush.msra.mxu0 %v4160
          %v4162 = vand.u32 %v4030, 4294901760
          %v4163 = vsub.f32 %v4030, %v4162
          %v4164 = vand.u32 %v4163, 4294901760
          %4165 = vmatpush.msra.mxu0 %v4164
          %v4166 = vand.u32 %v4033, 4294901760
          %4167 = vmatmul.f32.gmra.mxu0 %v4166
          %v4168 = vpop.f32.mrf.mxu0
          %v4169 = vadd.f32 %v4142, %v4168
          %4170 = vdwg.mxu0
          %4171 = vmatpush.msra.mxu0 0.0
          %4172 = vmatpush.msra.mxu0 0.0
          %4173 = vmatpush.msra.mxu0 0.0
          %4174 = vmatpush.msra.mxu0 0.0
          %4175 = vmatpush.msra.mxu0 0.0
          %4176 = vmatpush.msra.mxu0 0.0
          %4177 = vmatpush.msra.mxu0 0.0
          %4178 = vmatpush.msra.mxu0 0.0
          %4179 = vmatpush.msra.mxu0 0.0
          %4180 = vmatpush.msra.mxu0 0.0
          %4181 = vmatpush.msra.mxu0 0.0
          %4182 = vmatpush.msra.mxu0 0.0
          %4183 = vmatpush.msra.mxu0 0.0
          %4184 = vmatpush.msra.mxu0 0.0
          %v4185 = vand.u32 %v4031, 4294901760
          %4186 = vmatpush.msra.mxu0 %v4185
          %v4187 = vand.u32 %v4030, 4294901760
          %4188 = vmatpush.msra.mxu0 %v4187
          %v4189 = vand.u32 %v4033, 4294901760
          %4190 = vmatmul.f32.gmra.mxu0 %v4189
          %v4191 = vpop.f32.mrf.mxu0
          %v4192 = vadd.f32 %v4169, %v4191
          %4193 = vdwg.mxu0
          %v4194 = vadd.f32 %v4027, %v4192
          %v4195 = vld [vmem:[#allocation4 + $0x4] sm:$0xf]
          %s4196 = scalar_lea.vmem [#allocation12], 64
          %v4197 = vld [vmem:[%s4196] sm:$0xff]
          %v4198 = vld [vmem:[%s4196 + $0x8] sm:$0xff]
          %v4200 = vsel %vm343, %v4195, 0
          %4202 = vmatpush.msra.mxu0 0.0
          %4203 = vmatpush.msra.mxu0 0.0
          %4204 = vmatpush.msra.mxu0 0.0
          %4205 = vmatpush.msra.mxu0 0.0
          %4206 = vmatpush.msra.mxu0 0.0
          %4207 = vmatpush.msra.mxu0 0.0
          %4208 = vmatpush.msra.mxu0 0.0
          %4209 = vmatpush.msra.mxu0 0.0
          %4210 = vmatpush.msra.mxu0 0.0
          %4211 = vmatpush.msra.mxu0 0.0
          %4212 = vmatpush.msra.mxu0 0.0
          %4213 = vmatpush.msra.mxu0 0.0
          %4214 = vmatpush.msra.mxu0 0.0
          %4215 = vmatpush.msra.mxu0 0.0
          %v4216 = vand.u32 %v4198, 4294901760
          %4217 = vmatpush.msra.mxu0 %v4216
          %v4218 = vand.u32 %v4197, 4294901760
          %4219 = vmatpush.msra.mxu0 %v4218
          %v4220 = vand.u32 %v4200, 4294901760
          %v4221 = vsub.f32 %v4200, %v4220
          %v4222 = vand.u32 %v4221, 4294901760
          %v4223 = vsub.f32 %v4221, %v4222
          %v4224 = vand.u32 %v4223, 4294901760
          %4225 = vmatmul.f32.gmra.mxu0 %v4224
          %v4226 = vpop.f32.mrf.mxu0
          %v4227 = vadd.f32 0.0, %v4226
          %4228 = vdwg.mxu0
          %4229 = vmatpush.msra.mxu0 0.0
          %4230 = vmatpush.msra.mxu0 0.0
          %4231 = vmatpush.msra.mxu0 0.0
          %4232 = vmatpush.msra.mxu0 0.0
          %4233 = vmatpush.msra.mxu0 0.0
          %4234 = vmatpush.msra.mxu0 0.0
          %4235 = vmatpush.msra.mxu0 0.0
          %4236 = vmatpush.msra.mxu0 0.0
          %4237 = vmatpush.msra.mxu0 0.0
          %4238 = vmatpush.msra.mxu0 0.0
          %4239 = vmatpush.msra.mxu0 0.0
          %4240 = vmatpush.msra.mxu0 0.0
          %4241 = vmatpush.msra.mxu0 0.0
          %4242 = vmatpush.msra.mxu0 0.0
          %v4243 = vand.u32 %v4198, 4294901760
          %v4244 = vsub.f32 %v4198, %v4243
          %v4245 = vand.u32 %v4244, 4294901760
          %v4246 = vsub.f32 %v4244, %v4245
          %v4247 = vand.u32 %v4246, 4294901760
          %4248 = vmatpush.msra.mxu0 %v4247
          %v4249 = vand.u32 %v4197, 4294901760
          %v4250 = vsub.f32 %v4197, %v4249
          %v4251 = vand.u32 %v4250, 4294901760
          %v4252 = vsub.f32 %v4250, %v4251
          %v4253 = vand.u32 %v4252, 4294901760
          %4254 = vmatpush.msra.mxu0 %v4253
          %v4255 = vand.u32 %v4200, 4294901760
          %4256 = vmatmul.f32.gmra.mxu0 %v4255
          %v4257 = vpop.f32.mrf.mxu0
          %v4258 = vadd.f32 %v4227, %v4257
          %4259 = vdwg.mxu0
          %4260 = vmatpush.msra.mxu0 0.0
          %4261 = vmatpush.msra.mxu0 0.0
          %4262 = vmatpush.msra.mxu0 0.0
          %4263 = vmatpush.msra.mxu0 0.0
          %4264 = vmatpush.msra.mxu0 0.0
          %4265 = vmatpush.msra.mxu0 0.0
          %4266 = vmatpush.msra.mxu0 0.0
          %4267 = vmatpush.msra.mxu0 0.0
          %4268 = vmatpush.msra.mxu0 0.0
          %4269 = vmatpush.msra.mxu0 0.0
          %4270 = vmatpush.msra.mxu0 0.0
          %4271 = vmatpush.msra.mxu0 0.0
          %4272 = vmatpush.msra.mxu0 0.0
          %4273 = vmatpush.msra.mxu0 0.0
          %v4274 = vand.u32 %v4198, 4294901760
          %v4275 = vsub.f32 %v4198, %v4274
          %4276 = vmatpush.msra.mxu0 %v4275
          %v4277 = vand.u32 %v4197, 4294901760
          %v4278 = vsub.f32 %v4197, %v4277
          %4279 = vmatpush.msra.mxu0 %v4278
          %v4280 = vand.u32 %v4200, 4294901760
          %v4281 = vsub.f32 %v4200, %v4280
          %4282 = vmatmul.f32.gmra.mxu0 %v4281
          %v4283 = vpop.f32.mrf.mxu0
          %v4284 = vadd.f32 %v4258, %v4283
          %4285 = vdwg.mxu0
          %4286 = vmatpush.msra.mxu0 0.0
          %4287 = vmatpush.msra.mxu0 0.0
          %4288 = vmatpush.msra.mxu0 0.0
          %4289 = vmatpush.msra.mxu0 0.0
          %4290 = vmatpush.msra.mxu0 0.0
          %4291 = vmatpush.msra.mxu0 0.0
          %4292 = vmatpush.msra.mxu0 0.0
          %4293 = vmatpush.msra.mxu0 0.0
          %4294 = vmatpush.msra.mxu0 0.0
          %4295 = vmatpush.msra.mxu0 0.0
          %4296 = vmatpush.msra.mxu0 0.0
          %4297 = vmatpush.msra.mxu0 0.0
          %4298 = vmatpush.msra.mxu0 0.0
          %4299 = vmatpush.msra.mxu0 0.0
          %v4300 = vand.u32 %v4198, 4294901760
          %4301 = vmatpush.msra.mxu0 %v4300
          %v4302 = vand.u32 %v4197, 4294901760
          %4303 = vmatpush.msra.mxu0 %v4302
          %v4304 = vand.u32 %v4200, 4294901760
          %v4305 = vsub.f32 %v4200, %v4304
          %v4306 = vand.u32 %v4305, 4294901760
          %4307 = vmatmul.f32.gmra.mxu0 %v4306
          %v4308 = vpop.f32.mrf.mxu0
          %v4309 = vadd.f32 %v4284, %v4308
          %4310 = vdwg.mxu0
          %4311 = vmatpush.msra.mxu0 0.0
          %4312 = vmatpush.msra.mxu0 0.0
          %4313 = vmatpush.msra.mxu0 0.0
          %4314 = vmatpush.msra.mxu0 0.0
          %4315 = vmatpush.msra.mxu0 0.0
          %4316 = vmatpush.msra.mxu0 0.0
          %4317 = vmatpush.msra.mxu0 0.0
          %4318 = vmatpush.msra.mxu0 0.0
          %4319 = vmatpush.msra.mxu0 0.0
          %4320 = vmatpush.msra.mxu0 0.0
          %4321 = vmatpush.msra.mxu0 0.0
          %4322 = vmatpush.msra.mxu0 0.0
          %4323 = vmatpush.msra.mxu0 0.0
          %4324 = vmatpush.msra.mxu0 0.0
          %v4325 = vand.u32 %v4198, 4294901760
          %v4326 = vsub.f32 %v4198, %v4325
          %v4327 = vand.u32 %v4326, 4294901760
          %4328 = vmatpush.msra.mxu0 %v4327
          %v4329 = vand.u32 %v4197, 4294901760
          %v4330 = vsub.f32 %v4197, %v4329
          %v4331 = vand.u32 %v4330, 4294901760
          %4332 = vmatpush.msra.mxu0 %v4331
          %v4333 = vand.u32 %v4200, 4294901760
          %4334 = vmatmul.f32.gmra.mxu0 %v4333
          %v4335 = vpop.f32.mrf.mxu0
          %v4336 = vadd.f32 %v4309, %v4335
          %4337 = vdwg.mxu0
          %4338 = vmatpush.msra.mxu0 0.0
          %4339 = vmatpush.msra.mxu0 0.0
          %4340 = vmatpush.msra.mxu0 0.0
          %4341 = vmatpush.msra.mxu0 0.0
          %4342 = vmatpush.msra.mxu0 0.0
          %4343 = vmatpush.msra.mxu0 0.0
          %4344 = vmatpush.msra.mxu0 0.0
          %4345 = vmatpush.msra.mxu0 0.0
          %4346 = vmatpush.msra.mxu0 0.0
          %4347 = vmatpush.msra.mxu0 0.0
          %4348 = vmatpush.msra.mxu0 0.0
          %4349 = vmatpush.msra.mxu0 0.0
          %4350 = vmatpush.msra.mxu0 0.0
          %4351 = vmatpush.msra.mxu0 0.0
          %v4352 = vand.u32 %v4198, 4294901760
          %4353 = vmatpush.msra.mxu0 %v4352
          %v4354 = vand.u32 %v4197, 4294901760
          %4355 = vmatpush.msra.mxu0 %v4354
          %v4356 = vand.u32 %v4200, 4294901760
          %4357 = vmatmul.f32.gmra.mxu0 %v4356
          %v4358 = vpop.f32.mrf.mxu0
          %v4359 = vadd.f32 %v4336, %v4358
          %4360 = vdwg.mxu0
          %v4361 = vadd.f32 %v4194, %v4359
          %v4362 = vld [vmem:[#allocation5 + $0x4] sm:$0xf]
          %s4363 = scalar_lea.vmem [#allocation12], 144
          %v4364 = vld [vmem:[%s4363] sm:$0xff]
          %v4365 = vld [vmem:[%s4363 + $0x8] sm:$0xff]
          %v4367 = vsel %vm343, %v4362, 0
          %4369 = vmatpush.msra.mxu0 0.0
          %4370 = vmatpush.msra.mxu0 0.0
          %4371 = vmatpush.msra.mxu0 0.0
          %4372 = vmatpush.msra.mxu0 0.0
          %4373 = vmatpush.msra.mxu0 0.0
          %4374 = vmatpush.msra.mxu0 0.0
          %4375 = vmatpush.msra.mxu0 0.0
          %4376 = vmatpush.msra.mxu0 0.0
          %4377 = vmatpush.msra.mxu0 0.0
          %4378 = vmatpush.msra.mxu0 0.0
          %4379 = vmatpush.msra.mxu0 0.0
          %4380 = vmatpush.msra.mxu0 0.0
          %4381 = vmatpush.msra.mxu0 0.0
          %4382 = vmatpush.msra.mxu0 0.0
          %v4383 = vand.u32 %v4365, 4294901760
          %4384 = vmatpush.msra.mxu0 %v4383
          %v4385 = vand.u32 %v4364, 4294901760
          %4386 = vmatpush.msra.mxu0 %v4385
          %v4387 = vand.u32 %v4367, 4294901760
          %v4388 = vsub.f32 %v4367, %v4387
          %v4389 = vand.u32 %v4388, 4294901760
          %v4390 = vsub.f32 %v4388, %v4389
          %v4391 = vand.u32 %v4390, 4294901760
          %4392 = vmatmul.f32.gmra.mxu0 %v4391
          %v4393 = vpop.f32.mrf.mxu0
          %v4394 = vadd.f32 0.0, %v4393
          %4395 = vdwg.mxu0
          %4396 = vmatpush.msra.mxu0 0.0
          %4397 = vmatpush.msra.mxu0 0.0
          %4398 = vmatpush.msra.mxu0 0.0
          %4399 = vmatpush.msra.mxu0 0.0
          %4400 = vmatpush.msra.mxu0 0.0
          %4401 = vmatpush.msra.mxu0 0.0
          %4402 = vmatpush.msra.mxu0 0.0
          %4403 = vmatpush.msra.mxu0 0.0
          %4404 = vmatpush.msra.mxu0 0.0
          %4405 = vmatpush.msra.mxu0 0.0
          %4406 = vmatpush.msra.mxu0 0.0
          %4407 = vmatpush.msra.mxu0 0.0
          %4408 = vmatpush.msra.mxu0 0.0
          %4409 = vmatpush.msra.mxu0 0.0
          %v4410 = vand.u32 %v4365, 4294901760
          %v4411 = vsub.f32 %v4365, %v4410
          %v4412 = vand.u32 %v4411, 4294901760
          %v4413 = vsub.f32 %v4411, %v4412
          %v4414 = vand.u32 %v4413, 4294901760
          %4415 = vmatpush.msra.mxu0 %v4414
          %v4416 = vand.u32 %v4364, 4294901760
          %v4417 = vsub.f32 %v4364, %v4416
          %v4418 = vand.u32 %v4417, 4294901760
          %v4419 = vsub.f32 %v4417, %v4418
          %v4420 = vand.u32 %v4419, 4294901760
          %4421 = vmatpush.msra.mxu0 %v4420
          %v4422 = vand.u32 %v4367, 4294901760
          %4423 = vmatmul.f32.gmra.mxu0 %v4422
          %v4424 = vpop.f32.mrf.mxu0
          %v4425 = vadd.f32 %v4394, %v4424
          %4426 = vdwg.mxu0
          %4427 = vmatpush.msra.mxu0 0.0
          %4428 = vmatpush.msra.mxu0 0.0
          %4429 = vmatpush.msra.mxu0 0.0
          %4430 = vmatpush.msra.mxu0 0.0
          %4431 = vmatpush.msra.mxu0 0.0
          %4432 = vmatpush.msra.mxu0 0.0
          %4433 = vmatpush.msra.mxu0 0.0
          %4434 = vmatpush.msra.mxu0 0.0
          %4435 = vmatpush.msra.mxu0 0.0
          %4436 = vmatpush.msra.mxu0 0.0
          %4437 = vmatpush.msra.mxu0 0.0
          %4438 = vmatpush.msra.mxu0 0.0
          %4439 = vmatpush.msra.mxu0 0.0
          %4440 = vmatpush.msra.mxu0 0.0
          %v4441 = vand.u32 %v4365, 4294901760
          %v4442 = vsub.f32 %v4365, %v4441
          %4443 = vmatpush.msra.mxu0 %v4442
          %v4444 = vand.u32 %v4364, 4294901760
          %v4445 = vsub.f32 %v4364, %v4444
          %4446 = vmatpush.msra.mxu0 %v4445
          %v4447 = vand.u32 %v4367, 4294901760
          %v4448 = vsub.f32 %v4367, %v4447
          %4449 = vmatmul.f32.gmra.mxu0 %v4448
          %v4450 = vpop.f32.mrf.mxu0
          %v4451 = vadd.f32 %v4425, %v4450
          %4452 = vdwg.mxu0
          %4453 = vmatpush.msra.mxu0 0.0
          %4454 = vmatpush.msra.mxu0 0.0
          %4455 = vmatpush.msra.mxu0 0.0
          %4456 = vmatpush.msra.mxu0 0.0
          %4457 = vmatpush.msra.mxu0 0.0
          %4458 = vmatpush.msra.mxu0 0.0
          %4459 = vmatpush.msra.mxu0 0.0
          %4460 = vmatpush.msra.mxu0 0.0
          %4461 = vmatpush.msra.mxu0 0.0
          %4462 = vmatpush.msra.mxu0 0.0
          %4463 = vmatpush.msra.mxu0 0.0
          %4464 = vmatpush.msra.mxu0 0.0
          %4465 = vmatpush.msra.mxu0 0.0
          %4466 = vmatpush.msra.mxu0 0.0
          %v4467 = vand.u32 %v4365, 4294901760
          %4468 = vmatpush.msra.mxu0 %v4467
          %v4469 = vand.u32 %v4364, 4294901760
          %4470 = vmatpush.msra.mxu0 %v4469
          %v4471 = vand.u32 %v4367, 4294901760
          %v4472 = vsub.f32 %v4367, %v4471
          %v4473 = vand.u32 %v4472, 4294901760
          %4474 = vmatmul.f32.gmra.mxu0 %v4473
          %v4475 = vpop.f32.mrf.mxu0
          %v4476 = vadd.f32 %v4451, %v4475
          %4477 = vdwg.mxu0
          %4478 = vmatpush.msra.mxu0 0.0
          %4479 = vmatpush.msra.mxu0 0.0
          %4480 = vmatpush.msra.mxu0 0.0
          %4481 = vmatpush.msra.mxu0 0.0
          %4482 = vmatpush.msra.mxu0 0.0
          %4483 = vmatpush.msra.mxu0 0.0
          %4484 = vmatpush.msra.mxu0 0.0
          %4485 = vmatpush.msra.mxu0 0.0
          %4486 = vmatpush.msra.mxu0 0.0
          %4487 = vmatpush.msra.mxu0 0.0
          %4488 = vmatpush.msra.mxu0 0.0
          %4489 = vmatpush.msra.mxu0 0.0
          %4490 = vmatpush.msra.mxu0 0.0
          %4491 = vmatpush.msra.mxu0 0.0
          %v4492 = vand.u32 %v4365, 4294901760
          %v4493 = vsub.f32 %v4365, %v4492
          %v4494 = vand.u32 %v4493, 4294901760
          %4495 = vmatpush.msra.mxu0 %v4494
          %v4496 = vand.u32 %v4364, 4294901760
          %v4497 = vsub.f32 %v4364, %v4496
          %v4498 = vand.u32 %v4497, 4294901760
          %4499 = vmatpush.msra.mxu0 %v4498
          %v4500 = vand.u32 %v4367, 4294901760
          %4501 = vmatmul.f32.gmra.mxu0 %v4500
          %v4502 = vpop.f32.mrf.mxu0
          %v4503 = vadd.f32 %v4476, %v4502
          %4504 = vdwg.mxu0
          %4505 = vmatpush.msra.mxu0 0.0
          %4506 = vmatpush.msra.mxu0 0.0
          %4507 = vmatpush.msra.mxu0 0.0
          %4508 = vmatpush.msra.mxu0 0.0
          %4509 = vmatpush.msra.mxu0 0.0
          %4510 = vmatpush.msra.mxu0 0.0
          %4511 = vmatpush.msra.mxu0 0.0
          %4512 = vmatpush.msra.mxu0 0.0
          %4513 = vmatpush.msra.mxu0 0.0
          %4514 = vmatpush.msra.mxu0 0.0
          %4515 = vmatpush.msra.mxu0 0.0
          %4516 = vmatpush.msra.mxu0 0.0
          %4517 = vmatpush.msra.mxu0 0.0
          %4518 = vmatpush.msra.mxu0 0.0
          %v4519 = vand.u32 %v4365, 4294901760
          %4520 = vmatpush.msra.mxu0 %v4519
          %v4521 = vand.u32 %v4364, 4294901760
          %4522 = vmatpush.msra.mxu0 %v4521
          %v4523 = vand.u32 %v4367, 4294901760
          %4524 = vmatmul.f32.gmra.mxu0 %v4523
          %v4525 = vpop.f32.mrf.mxu0
          %v4526 = vadd.f32 %v4503, %v4525
          %4527 = vdwg.mxu0
          %v4528 = vadd.f32 %v4361, %v4526
          %s4529 = sld [smem:[#allocation13]]
          %v4530 = vstv %s4529
          %v4531 = vadd.f32 %v2861, %v4530
          %4532 = vst.msk [vmem:[%s312] sm:$0xf] %vm479, %v4531
          %s4533 = sld [smem:[#allocation13 + $0x1]]
          %v4534 = vstv %s4533
          %v4535 = vadd.f32 %v4528, %v4534
          %4536 = vst.msk [vmem:[%s319] sm:$0xf] %vm479, %v4535
        $region60: #{tpu_custom_call.1} parent=35 // pred_fallthru
          _
        %s4537 = sand.u32 %s139, 1
        %s4538 = scalar_lea.sflag [#allocation8], %s4537
        %s4539 = sand.u32 %s139, 1
        %s4540 = smul.addr %s4539, 4
        %s4541 = scalar_lea.vmem [#allocation14], %s4540
        %s4542 = sand.u32 %s165, 1
        %s4543 = scalar_lea.sflag [#allocation16], %s4542
        %s4544 = sand.u32 %s165, 1
        %s4545 = smul.addr %s4544, 4
        %s4546 = scalar_lea.vmem [#allocation15], %s4545
        // Predicated region
        $region61: #{tpu_custom_call.1} parent=35 // pred_check
          %p4547 = pneg %p149
        $region62: #{tpu_custom_call.1} parent=35 // pred_check_branch
          %4549 = sbr.rel (%p4547) target = $region64
        $region63: #{tpu_custom_call.1} parent=35 // pred_region
          %4551 = vsyncadd %s4538, 0
          %s4552 = smul.addr %s32, 4
          %s4553 = scalar_lea.hbm %s4, %s4552
          %s4555 = sshll.u32 %s4541, 4
          %s4556 = int_to_ptr.vmem [resolvable:$true] %s4555
          %s4557 = sshll.u32 %s4553, 4
          %s4558 = int_to_ptr.hbm [resolvable:$true] %s4557
          %4560 = dma.vmem_to_hbm [thread:$0]  %s4556, 64, %s4558, %s4538
        $region64: #{tpu_custom_call.1} parent=35 // pred_fallthru
          _
        // Predicated region
        $region65: #{tpu_custom_call.1} parent=35 // pred_check
          %p4561 = pneg %p175
        $region66: #{tpu_custom_call.1} parent=35 // pred_check_branch
          %4563 = sbr.rel (%p4561) target = $region68
        $region67: #{tpu_custom_call.1} parent=35 // pred_region
          %4565 = vsyncadd %s4543, 0
          %s4566 = smul.addr %s32, 4
          %s4567 = scalar_lea.hbm %s5, %s4566
          %s4569 = sshll.u32 %s4546, 4
          %s4570 = int_to_ptr.vmem [resolvable:$true] %s4569
          %s4571 = sshll.u32 %s4567, 4
          %s4572 = int_to_ptr.hbm [resolvable:$true] %s4571
          %4574 = dma.vmem_to_hbm [thread:$0]  %s4570, 64, %s4572, %s4543
        $region68: #{tpu_custom_call.1} parent=35 // pred_fallthru
          _
      $region36: #{tpu_custom_call.1} parent=5 // pred_fallthru
        _
      %p4575 = scmp.le.s32.totalorder 2, %s23
      // Predicated region
      $region69: #{tpu_custom_call.1} parent=5 // pred_check
        %p4576 = pneg %p4575
      $region70: #{tpu_custom_call.1} parent=5 // pred_check_branch
        %4578 = sbr.rel (%p4576) target = $region72
      $region71: #{tpu_custom_call.1} parent=5 // pred_region
        %s4579 = ssub.s32 %s23, 2
        // Predicated region
        $region73: #{tpu_custom_call.1} parent=71 // pred_check
          %p4580 = pneg %p155
        $region74: #{tpu_custom_call.1} parent=71 // pred_check_branch
          %4582 = sbr.rel (%p4580) target = $region76
        $region75: #{tpu_custom_call.1} parent=71 // pred_region
          %s4583 = sand.u32 %s140, 1
          %s4584 = scalar_lea.sflag [#allocation8], %s4583
          %s4585 = sand.u32 %s140, 1
          %s4586 = smul.addr %s4585, 4
          %s4587 = scalar_lea.vmem [#allocation14], %s4586
          %4589 = dma.done %s4584, 64
        $region76: #{tpu_custom_call.1} parent=71 // pred_fallthru
          _
        // Predicated region
        $region77: #{tpu_custom_call.1} parent=71 // pred_check
          %p4590 = pneg %p181
        $region78: #{tpu_custom_call.1} parent=71 // pred_check_branch
          %4592 = sbr.rel (%p4590) target = $region80
        $region79: #{tpu_custom_call.1} parent=71 // pred_region
          %s4593 = sand.u32 %s166, 1
          %s4594 = scalar_lea.sflag [#allocation16], %s4593
          %s4595 = sand.u32 %s166, 1
          %s4596 = smul.addr %s4595, 4
          %s4597 = scalar_lea.vmem [#allocation15], %s4596
          %4599 = dma.done %s4594, 64
        $region80: #{tpu_custom_call.1} parent=71 // pred_fallthru
          _
      $region72: #{tpu_custom_call.1} parent=5 // pred_fallthru
        _
    $region6: #{tpu_custom_call.1} parent=1 // loop_footer
      %s27 = sadd.s32 1, %s23
    $region7: #{tpu_custom_call.1} parent=1 // loop_footer_branch
      %22 = sbr.rel target = $region3
    $region8: #{tpu_custom_call.1} parent=1 // loop_exit
      _
    %4600 = vsyncpa [#allocation7], 1
    %s4601 = scalar_lea.sflag [#allocation7], 1
    %4602 = vsyncpa %s4601, 1
    %4603 = vsyncpa [#allocation11], 1
    %4604 = vsyncpa [#allocation8], 1
    %s4605 = scalar_lea.sflag [#allocation8], 1
    %4606 = vsyncpa %s4605, 1
    %4607 = vsyncpa [#allocation16], 1
    %s4608 = scalar_lea.sflag [#allocation16], 1
    %4609 = vsyncpa %s4608, 1
    %4610 = vsyncpa [#allocation9], 1
    %s4611 = scalar_lea.sflag [#allocation9], 1
    %4612 = vsyncpa %s4611, 1

</llo_original>
